<compile_context>
chip_gen: v6e
topology: v6e:2x2x1
jax: 0.10.0
libtpu: 0.0.40
codegen_flags: <defaults>
</compile_context>

<pallas_src>
import math

import jax
import jax.numpy as jnp
from jax import lax
from jax.experimental import pallas as pl
from jax.experimental.pallas import tpu as pltpu

NEG_SLOPE = 0.01   # torch.nn.LeakyReLU default
RMS_EPS = 1e-8


def _leaky_relu(v):
    return jnp.where(v >= 0, v, NEG_SLOPE * v)


def mapping_kernel(z_ref, w0_ref, b0_ref, ws_ref, bs_ref, o_ref):
    """One grid step handles one batch tile.

    z_ref  : (TB, z_dim)          latent tile
    w0_ref : (z_dim, w_dim)       layer-0 weight, pre-scaled & transposed to (in, out)
    b0_ref : (1, w_dim)           layer-0 bias   (lr_multiplier folded)
    ws_ref : (L-1, w_dim, w_dim)  layers 1..L-1 weights, pre-scaled & transposed
    bs_ref : (L-1, 1, w_dim)      layers 1..L-1 biases   (lr_multiplier folded)
    o_ref  : (TB, w_dim)          output tile
    """
    z = z_ref[...]

    # ---- z normalization: z / sqrt(mean(z^2) + eps) ----
    ms = jnp.mean(z * z, axis=1, keepdims=True)                 # (TB, 1)
    h = z / jnp.sqrt(ms + RMS_EPS)                              # (TB, z_dim)

    # ---- layer 0: z_dim -> w_dim ----
    h = _leaky_relu(
        jnp.dot(h, w0_ref[...],
                preferred_element_type=jnp.float32,
                precision=lax.Precision.HIGHEST)
        + b0_ref[...])

    # ---- layers 1 .. L-1: w_dim -> w_dim (static unrolled chain) ----
    for l in range(ws_ref.shape[0]):
        h = _leaky_relu(
            jnp.dot(h, ws_ref[l],
                    preferred_element_type=jnp.float32,
                    precision=lax.Precision.HIGHEST)
            + bs_ref[l])

    o_ref[...] = h.astype(o_ref.dtype)


def mapping_forward(z, w0, b0, ws, bs, lr_multiplier=0.01, block_b=256):
    """z: [B, z_dim]; w0: [w_dim, z_dim]; b0: [w_dim];
    ws: [L-1, w_dim, w_dim] (each stored [out, in]); bs: [L-1, w_dim]."""
    B, z_dim = z.shape
    w_dim = w0.shape[0]
    L1 = ws.shape[0]

    # Fold EqualizedLinear scaling (done per-forward in torch) and transpose each
    # weight to (in, out) so the kernel body is a plain h @ W chain.
    w0_s = (w0 * (lr_multiplier / math.sqrt(z_dim))).T.astype(jnp.float32)           # (z_dim, w_dim)
    b0_s = (b0 * lr_multiplier).reshape(1, w_dim).astype(jnp.float32)                # (1, w_dim)
    ws_s = jnp.transpose(ws * (lr_multiplier / math.sqrt(w_dim)),
                         (0, 2, 1)).astype(jnp.float32)                              # (L-1, w_dim, w_dim)
    bs_s = (bs * lr_multiplier).reshape(L1, 1, w_dim).astype(jnp.float32)            # (L-1, 1, w_dim)

    # Batch tiling: block_b-sized tiles (multiple of 8) when B is large, else one tile.
    if B > block_b:
        tb = block_b
        b_pad = pl.cdiv(B, tb) * tb
    else:
        tb = B
        b_pad = B
    z_in = z.astype(jnp.float32)
    if b_pad != B:
        # Zero rows are harmless: 0 / sqrt(0 + eps) = 0; padded outputs are sliced off.
        z_in = jnp.pad(z_in, ((0, b_pad - B), (0, 0)))

    # VMEM budget: double-buffered params (resident) + activation tiles + headroom.
    param_bytes = 4 * (w0_s.size + b0_s.size + ws_s.size + bs_s.size)
    act_bytes = 4 * (tb * z_dim + tb * w_dim)
    vmem_limit = int(min(2 * (param_bytes + act_bytes) + (8 << 20), 48 << 20))

    out = pl.pallas_call(
        mapping_kernel,
        out_shape=jax.ShapeDtypeStruct((b_pad, w_dim), jnp.float32),
        grid_spec=pltpu.PrefetchScalarGridSpec(
            num_scalar_prefetch=0,
            grid=(b_pad // tb,),
            in_specs=[
                pl.BlockSpec((tb, z_dim), lambda i: (i, 0)),
                pl.BlockSpec((z_dim, w_dim), lambda i: (0, 0)),
                pl.BlockSpec((1, w_dim), lambda i: (0, 0)),
                pl.BlockSpec((L1, w_dim, w_dim), lambda i: (0, 0, 0)),
                pl.BlockSpec((L1, 1, w_dim), lambda i: (0, 0, 0)),
            ],
            out_specs=pl.BlockSpec((tb, w_dim), lambda i: (i, 0)),
        ),
        compiler_params=pltpu.CompilerParams(
            dimension_semantics=("parallel",),
            vmem_limit_bytes=vmem_limit,
        ),
    )(z_in, w0_s, b0_s, ws_s, bs_s)

    return out[:B]


def mapping_reference(z, w0, b0, ws, bs, lr_multiplier=0.01):
    """Pure-JAX reference mirroring the PyTorch MappingNet forward."""
    z = z.astype(jnp.float32)
    h = z / jnp.sqrt(jnp.mean(z * z, axis=1, keepdims=True) + RMS_EPS)
    h = jax.nn.leaky_relu(
        jnp.dot(h, (w0 * (lr_multiplier / math.sqrt(z.shape[1]))).T,
                precision=lax.Precision.HIGHEST) + b0 * lr_multiplier,
        NEG_SLOPE)
    for l in range(ws.shape[0]):
        h = jax.nn.leaky_relu(
            jnp.dot(h, (ws[l] * (lr_multiplier / math.sqrt(ws.shape[-1]))).T,
                    precision=lax.Precision.HIGHEST) + bs[l] * lr_multiplier,
            NEG_SLOPE)
    return h


if __name__ == "__main__":
    B, z_dim, w_dim, num_layers = 2, 32, 32, 8
    lr_multiplier = 0.01

    key = jax.random.PRNGKey(0)
    k_z, k_w0, k_ws, k_b0, k_bs = jax.random.split(key, 5)

    z = jax.random.normal(k_z, (B, z_dim), dtype=jnp.float32)

    # Parameters mirror the torch module init shapes (weights stored / lr_multiplier).
    w0 = jax.random.normal(k_w0, (w_dim, z_dim), dtype=jnp.float32) / lr_multiplier
    ws = jax.random.normal(k_ws, (num_layers - 1, w_dim, w_dim), dtype=jnp.float32) / lr_multiplier
    # Module init is bias_init=0; use small random biases here to exercise the bias path.
    b0 = 0.1 * jax.random.normal(k_b0, (w_dim,), dtype=jnp.float32)
    bs = 0.1 * jax.random.normal(k_bs, (num_layers - 1, w_dim), dtype=jnp.float32)

    out = mapping_forward(z, w0, b0, ws, bs, lr_multiplier=lr_multiplier)
    out = jax.block_until_ready(out)

    ref = mapping_reference(z, w0, b0, ws, bs, lr_multiplier=lr_multiplier)
    assert out.shape == (B, w_dim)
    assert jnp.allclose(out, ref, atol=1e-4, rtol=1e-4), "mismatch vs reference"

    print("KERNEL_OK")
</pallas_src>

<mosaic_0001>
module attributes {stable_mosaic.version = 11 : i64} {
  func.func @mapping_kernel(%arg0: i32, %arg1: memref<2x32xf32, #tpu.memory_space<vmem>>, %arg2: memref<32x32xf32, #tpu.memory_space<vmem>>, %arg3: memref<1x32xf32, #tpu.memory_space<vmem>>, %arg4: memref<7x32x32xf32, #tpu.memory_space<vmem>>, %arg5: memref<7x1x32xf32, #tpu.memory_space<vmem>>, %arg6: memref<2x32xf32, #tpu.memory_space<vmem>>) attributes {dimension_semantics = [#tpu.dimension_semantics<parallel>], iteration_bounds = array<i64: 1>, scalar_prefetch = 0 : i64, scratch_operands = 0 : i64, tpu.core_type = #tpu.core_type<tc>, window_params = [{transform_indices = @transform_0, window_bounds = array<i64: 2, 32>}, {pipeline_mode = #tpu.pipeline_mode<synchronous>, transform_indices = @transform_1, window_bounds = array<i64: 32, 32>}, {pipeline_mode = #tpu.pipeline_mode<synchronous>, transform_indices = @transform_2, window_bounds = array<i64: 1, 32>}, {pipeline_mode = #tpu.pipeline_mode<synchronous>, transform_indices = @transform_3, window_bounds = array<i64: 7, 32, 32>}, {pipeline_mode = #tpu.pipeline_mode<synchronous>, transform_indices = @transform_4, window_bounds = array<i64: 7, 1, 32>}, {transform_indices = @transform_5, window_bounds = array<i64: 2, 32>}]} {
    %c0 = arith.constant 0 : index
    %c0_0 = arith.constant 0 : index
    %0 = vector.load %arg1[%c0, %c0_0] : memref<2x32xf32, #tpu.memory_space<vmem>>, vector<2x32xf32>
    %1 = arith.mulf %0, %0 : vector<2x32xf32>
    %cst = arith.constant dense<0.000000e+00> : vector<2xf32>
    %2 = vector.multi_reduction <add>, %1, %cst [1] : vector<2x32xf32> to vector<2xf32>
    %3 = vector.shape_cast %2 : vector<2xf32> to vector<2x1xf32>
    %cst_1 = arith.constant 3.200000e+01 : f32
    %4 = vector.broadcast %cst_1 : f32 to vector<2x1xf32>
    %5 = arith.divf %3, %4 : vector<2x1xf32>
    %cst_2 = arith.constant 9.99999993E-9 : f32
    %6 = vector.broadcast %cst_2 : f32 to vector<2x1xf32>
    %7 = arith.addf %5, %6 : vector<2x1xf32>
    %8 = math.sqrt %7 : vector<2x1xf32>
    %9 = vector.broadcast %8 : vector<2x1xf32> to vector<2x32xf32>
    %10 = arith.divf %0, %9 : vector<2x32xf32>
    %c0_3 = arith.constant 0 : index
    %c0_4 = arith.constant 0 : index
    %11 = vector.load %arg2[%c0_3, %c0_4] : memref<32x32xf32, #tpu.memory_space<vmem>>, vector<32x32xf32>
    %cst_5 = arith.constant dense<0.000000e+00> : vector<2x32xf32>
    %12 = tpu.matmul %10, %11, %cst_5 {dimension_numbers = #tpu.dot_dimension_numbers<[1], [0], [0], [1], [0, 0, 1, 1], [], []>, precision = #tpu.contract_precision<fp32>} : vector<2x32xf32>, vector<32x32xf32>, vector<2x32xf32> -> vector<2x32xf32>
    %c0_6 = arith.constant 0 : index
    %c0_7 = arith.constant 0 : index
    %13 = vector.load %arg3[%c0_6, %c0_7] : memref<1x32xf32, #tpu.memory_space<vmem>>, vector<1x32xf32>
    %14 = vector.broadcast %13 : vector<1x32xf32> to vector<2x32xf32>
    %15 = arith.addf %12, %14 : vector<2x32xf32>
    %cst_8 = arith.constant 0.000000e+00 : f32
    %16 = vector.broadcast %cst_8 : f32 to vector<2x32xf32>
    %17 = arith.cmpf oge, %15, %16 : vector<2x32xf32>
    %cst_9 = arith.constant 0.00999999977 : f32
    %18 = vector.broadcast %cst_9 : f32 to vector<2x32xf32>
    %19 = arith.mulf %18, %15 : vector<2x32xf32>
    %20 = arith.select %17, %15, %19 : vector<2x32xi1>, vector<2x32xf32>
    %c0_10 = arith.constant 0 : index
    %c0_11 = arith.constant 0 : index
    %c0_12 = arith.constant 0 : index
    %21 = vector.load %arg4[%c0_10, %c0_11, %c0_12] : memref<7x32x32xf32, #tpu.memory_space<vmem>>, vector<1x32x32xf32>
    %22 = vector.shape_cast %21 : vector<1x32x32xf32> to vector<32x32xf32>
    %cst_13 = arith.constant dense<0.000000e+00> : vector<2x32xf32>
    %23 = tpu.matmul %20, %22, %cst_13 {dimension_numbers = #tpu.dot_dimension_numbers<[1], [0], [0], [1], [0, 0, 1, 1], [], []>, precision = #tpu.contract_precision<fp32>} : vector<2x32xf32>, vector<32x32xf32>, vector<2x32xf32> -> vector<2x32xf32>
    %c0_14 = arith.constant 0 : index
    %c0_15 = arith.constant 0 : index
    %c0_16 = arith.constant 0 : index
    %24 = vector.load %arg5[%c0_14, %c0_15, %c0_16] : memref<7x1x32xf32, #tpu.memory_space<vmem>>, vector<1x1x32xf32>
    %25 = vector.shape_cast %24 : vector<1x1x32xf32> to vector<1x32xf32>
    %26 = vector.broadcast %25 : vector<1x32xf32> to vector<2x32xf32>
    %27 = arith.addf %23, %26 : vector<2x32xf32>
    %cst_17 = arith.constant 0.000000e+00 : f32
    %28 = vector.broadcast %cst_17 : f32 to vector<2x32xf32>
    %29 = arith.cmpf oge, %27, %28 : vector<2x32xf32>
    %cst_18 = arith.constant 0.00999999977 : f32
    %30 = vector.broadcast %cst_18 : f32 to vector<2x32xf32>
    %31 = arith.mulf %30, %27 : vector<2x32xf32>
    %32 = arith.select %29, %27, %31 : vector<2x32xi1>, vector<2x32xf32>
    %c1 = arith.constant 1 : index
    %c0_19 = arith.constant 0 : index
    %c0_20 = arith.constant 0 : index
    %33 = vector.load %arg4[%c1, %c0_19, %c0_20] : memref<7x32x32xf32, #tpu.memory_space<vmem>>, vector<1x32x32xf32>
    %34 = vector.shape_cast %33 : vector<1x32x32xf32> to vector<32x32xf32>
    %cst_21 = arith.constant dense<0.000000e+00> : vector<2x32xf32>
    %35 = tpu.matmul %32, %34, %cst_21 {dimension_numbers = #tpu.dot_dimension_numbers<[1], [0], [0], [1], [0, 0, 1, 1], [], []>, precision = #tpu.contract_precision<fp32>} : vector<2x32xf32>, vector<32x32xf32>, vector<2x32xf32> -> vector<2x32xf32>
    %c1_22 = arith.constant 1 : index
    %c0_23 = arith.constant 0 : index
    %c0_24 = arith.constant 0 : index
    %36 = vector.load %arg5[%c1_22, %c0_23, %c0_24] : memref<7x1x32xf32, #tpu.memory_space<vmem>>, vector<1x1x32xf32>
    %37 = vector.shape_cast %36 : vector<1x1x32xf32> to vector<1x32xf32>
    %38 = vector.broadcast %37 : vector<1x32xf32> to vector<2x32xf32>
    %39 = arith.addf %35, %38 : vector<2x32xf32>
    %cst_25 = arith.constant 0.000000e+00 : f32
    %40 = vector.broadcast %cst_25 : f32 to vector<2x32xf32>
    %41 = arith.cmpf oge, %39, %40 : vector<2x32xf32>
    %cst_26 = arith.constant 0.00999999977 : f32
    %42 = vector.broadcast %cst_26 : f32 to vector<2x32xf32>
    %43 = arith.mulf %42, %39 : vector<2x32xf32>
    %44 = arith.select %41, %39, %43 : vector<2x32xi1>, vector<2x32xf32>
    %c2 = arith.constant 2 : index
    %c0_27 = arith.constant 0 : index
    %c0_28 = arith.constant 0 : index
    %45 = vector.load %arg4[%c2, %c0_27, %c0_28] : memref<7x32x32xf32, #tpu.memory_space<vmem>>, vector<1x32x32xf32>
    %46 = vector.shape_cast %45 : vector<1x32x32xf32> to vector<32x32xf32>
    %cst_29 = arith.constant dense<0.000000e+00> : vector<2x32xf32>
    %47 = tpu.matmul %44, %46, %cst_29 {dimension_numbers = #tpu.dot_dimension_numbers<[1], [0], [0], [1], [0, 0, 1, 1], [], []>, precision = #tpu.contract_precision<fp32>} : vector<2x32xf32>, vector<32x32xf32>, vector<2x32xf32> -> vector<2x32xf32>
    %c2_30 = arith.constant 2 : index
    %c0_31 = arith.constant 0 : index
    %c0_32 = arith.constant 0 : index
    %48 = vector.load %arg5[%c2_30, %c0_31, %c0_32] : memref<7x1x32xf32, #tpu.memory_space<vmem>>, vector<1x1x32xf32>
    %49 = vector.shape_cast %48 : vector<1x1x32xf32> to vector<1x32xf32>
    %50 = vector.broadcast %49 : vector<1x32xf32> to vector<2x32xf32>
    %51 = arith.addf %47, %50 : vector<2x32xf32>
    %cst_33 = arith.constant 0.000000e+00 : f32
    %52 = vector.broadcast %cst_33 : f32 to vector<2x32xf32>
    %53 = arith.cmpf oge, %51, %52 : vector<2x32xf32>
    %cst_34 = arith.constant 0.00999999977 : f32
    %54 = vector.broadcast %cst_34 : f32 to vector<2x32xf32>
    %55 = arith.mulf %54, %51 : vector<2x32xf32>
    %56 = arith.select %53, %51, %55 : vector<2x32xi1>, vector<2x32xf32>
    %c3 = arith.constant 3 : index
    %c0_35 = arith.constant 0 : index
    %c0_36 = arith.constant 0 : index
    %57 = vector.load %arg4[%c3, %c0_35, %c0_36] : memref<7x32x32xf32, #tpu.memory_space<vmem>>, vector<1x32x32xf32>
    %58 = vector.shape_cast %57 : vector<1x32x32xf32> to vector<32x32xf32>
    %cst_37 = arith.constant dense<0.000000e+00> : vector<2x32xf32>
    %59 = tpu.matmul %56, %58, %cst_37 {dimension_numbers = #tpu.dot_dimension_numbers<[1], [0], [0], [1], [0, 0, 1, 1], [], []>, precision = #tpu.contract_precision<fp32>} : vector<2x32xf32>, vector<32x32xf32>, vector<2x32xf32> -> vector<2x32xf32>
    %c3_38 = arith.constant 3 : index
    %c0_39 = arith.constant 0 : index
    %c0_40 = arith.constant 0 : index
    %60 = vector.load %arg5[%c3_38, %c0_39, %c0_40] : memref<7x1x32xf32, #tpu.memory_space<vmem>>, vector<1x1x32xf32>
    %61 = vector.shape_cast %60 : vector<1x1x32xf32> to vector<1x32xf32>
    %62 = vector.broadcast %61 : vector<1x32xf32> to vector<2x32xf32>
    %63 = arith.addf %59, %62 : vector<2x32xf32>
    %cst_41 = arith.constant 0.000000e+00 : f32
    %64 = vector.broadcast %cst_41 : f32 to vector<2x32xf32>
    %65 = arith.cmpf oge, %63, %64 : vector<2x32xf32>
    %cst_42 = arith.constant 0.00999999977 : f32
    %66 = vector.broadcast %cst_42 : f32 to vector<2x32xf32>
    %67 = arith.mulf %66, %63 : vector<2x32xf32>
    %68 = arith.select %65, %63, %67 : vector<2x32xi1>, vector<2x32xf32>
    %c4 = arith.constant 4 : index
    %c0_43 = arith.constant 0 : index
    %c0_44 = arith.constant 0 : index
    %69 = vector.load %arg4[%c4, %c0_43, %c0_44] : memref<7x32x32xf32, #tpu.memory_space<vmem>>, vector<1x32x32xf32>
    %70 = vector.shape_cast %69 : vector<1x32x32xf32> to vector<32x32xf32>
    %cst_45 = arith.constant dense<0.000000e+00> : vector<2x32xf32>
    %71 = tpu.matmul %68, %70, %cst_45 {dimension_numbers = #tpu.dot_dimension_numbers<[1], [0], [0], [1], [0, 0, 1, 1], [], []>, precision = #tpu.contract_precision<fp32>} : vector<2x32xf32>, vector<32x32xf32>, vector<2x32xf32> -> vector<2x32xf32>
    %c4_46 = arith.constant 4 : index
    %c0_47 = arith.constant 0 : index
    %c0_48 = arith.constant 0 : index
    %72 = vector.load %arg5[%c4_46, %c0_47, %c0_48] : memref<7x1x32xf32, #tpu.memory_space<vmem>>, vector<1x1x32xf32>
    %73 = vector.shape_cast %72 : vector<1x1x32xf32> to vector<1x32xf32>
    %74 = vector.broadcast %73 : vector<1x32xf32> to vector<2x32xf32>
    %75 = arith.addf %71, %74 : vector<2x32xf32>
    %cst_49 = arith.constant 0.000000e+00 : f32
    %76 = vector.broadcast %cst_49 : f32 to vector<2x32xf32>
    %77 = arith.cmpf oge, %75, %76 : vector<2x32xf32>
    %cst_50 = arith.constant 0.00999999977 : f32
    %78 = vector.broadcast %cst_50 : f32 to vector<2x32xf32>
    %79 = arith.mulf %78, %75 : vector<2x32xf32>
    %80 = arith.select %77, %75, %79 : vector<2x32xi1>, vector<2x32xf32>
    %c5 = arith.constant 5 : index
    %c0_51 = arith.constant 0 : index
    %c0_52 = arith.constant 0 : index
    %81 = vector.load %arg4[%c5, %c0_51, %c0_52] : memref<7x32x32xf32, #tpu.memory_space<vmem>>, vector<1x32x32xf32>
    %82 = vector.shape_cast %81 : vector<1x32x32xf32> to vector<32x32xf32>
    %cst_53 = arith.constant dense<0.000000e+00> : vector<2x32xf32>
    %83 = tpu.matmul %80, %82, %cst_53 {dimension_numbers = #tpu.dot_dimension_numbers<[1], [0], [0], [1], [0, 0, 1, 1], [], []>, precision = #tpu.contract_precision<fp32>} : vector<2x32xf32>, vector<32x32xf32>, vector<2x32xf32> -> vector<2x32xf32>
    %c5_54 = arith.constant 5 : index
    %c0_55 = arith.constant 0 : index
    %c0_56 = arith.constant 0 : index
    %84 = vector.load %arg5[%c5_54, %c0_55, %c0_56] : memref<7x1x32xf32, #tpu.memory_space<vmem>>, vector<1x1x32xf32>
    %85 = vector.shape_cast %84 : vector<1x1x32xf32> to vector<1x32xf32>
    %86 = vector.broadcast %85 : vector<1x32xf32> to vector<2x32xf32>
    %87 = arith.addf %83, %86 : vector<2x32xf32>
    %cst_57 = arith.constant 0.000000e+00 : f32
    %88 = vector.broadcast %cst_57 : f32 to vector<2x32xf32>
    %89 = arith.cmpf oge, %87, %88 : vector<2x32xf32>
    %cst_58 = arith.constant 0.00999999977 : f32
    %90 = vector.broadcast %cst_58 : f32 to vector<2x32xf32>
    %91 = arith.mulf %90, %87 : vector<2x32xf32>
    %92 = arith.select %89, %87, %91 : vector<2x32xi1>, vector<2x32xf32>
    %c6 = arith.constant 6 : index
    %c0_59 = arith.constant 0 : index
    %c0_60 = arith.constant 0 : index
    %93 = vector.load %arg4[%c6, %c0_59, %c0_60] : memref<7x32x32xf32, #tpu.memory_space<vmem>>, vector<1x32x32xf32>
    %94 = vector.shape_cast %93 : vector<1x32x32xf32> to vector<32x32xf32>
    %cst_61 = arith.constant dense<0.000000e+00> : vector<2x32xf32>
    %95 = tpu.matmul %92, %94, %cst_61 {dimension_numbers = #tpu.dot_dimension_numbers<[1], [0], [0], [1], [0, 0, 1, 1], [], []>, precision = #tpu.contract_precision<fp32>} : vector<2x32xf32>, vector<32x32xf32>, vector<2x32xf32> -> vector<2x32xf32>
    %c6_62 = arith.constant 6 : index
    %c0_63 = arith.constant 0 : index
    %c0_64 = arith.constant 0 : index
    %96 = vector.load %arg5[%c6_62, %c0_63, %c0_64] : memref<7x1x32xf32, #tpu.memory_space<vmem>>, vector<1x1x32xf32>
    %97 = vector.shape_cast %96 : vector<1x1x32xf32> to vector<1x32xf32>
    %98 = vector.broadcast %97 : vector<1x32xf32> to vector<2x32xf32>
    %99 = arith.addf %95, %98 : vector<2x32xf32>
    %cst_65 = arith.constant 0.000000e+00 : f32
    %100 = vector.broadcast %cst_65 : f32 to vector<2x32xf32>
    %101 = arith.cmpf oge, %99, %100 : vector<2x32xf32>
    %cst_66 = arith.constant 0.00999999977 : f32
    %102 = vector.broadcast %cst_66 : f32 to vector<2x32xf32>
    %103 = arith.mulf %102, %99 : vector<2x32xf32>
    %104 = arith.select %101, %99, %103 : vector<2x32xi1>, vector<2x32xf32>
    %c0_67 = arith.constant 0 : index
    %c0_68 = arith.constant 0 : index
    %105 = vector.load %arg6[%c0_67, %c0_68] : memref<2x32xf32, #tpu.memory_space<vmem>>, vector<2x32xf32>
    tpu.vector_store %arg6[%c0_67, %c0_68], %104 {strides = array<i32>} : memref<2x32xf32, #tpu.memory_space<vmem>>, vector<2x32xf32>,
    return
  }
  func.func @transform_0(%arg0: i32) -> (i32, i32) {
    %c0_i32 = arith.constant 0 : i32
    %c0_i32_0 = arith.constant 0 : i32
    return %arg0, %c0_i32 : i32, i32
  }
  func.func @transform_1(%arg0: i32) -> (i32, i32) {
    %c0_i32 = arith.constant 0 : i32
    %c0_i32_0 = arith.constant 0 : i32
    %c0_i32_1 = arith.constant 0 : i32
    return %c0_i32, %c0_i32_0 : i32, i32
  }
  func.func @transform_2(%arg0: i32) -> (i32, i32) {
    %c0_i32 = arith.constant 0 : i32
    %c0_i32_0 = arith.constant 0 : i32
    %c0_i32_1 = arith.constant 0 : i32
    return %c0_i32, %c0_i32_0 : i32, i32
  }
  func.func @transform_3(%arg0: i32) -> (i32, i32, i32) {
    %c0_i32 = arith.constant 0 : i32
    %c0_i32_0 = arith.constant 0 : i32
    %c0_i32_1 = arith.constant 0 : i32
    %c0_i32_2 = arith.constant 0 : i32
    return %c0_i32, %c0_i32_0, %c0_i32_1 : i32, i32, i32
  }
  func.func @transform_4(%arg0: i32) -> (i32, i32, i32) {
    %c0_i32 = arith.constant 0 : i32
    %c0_i32_0 = arith.constant 0 : i32
    %c0_i32_1 = arith.constant 0 : i32
    %c0_i32_2 = arith.constant 0 : i32
    return %c0_i32, %c0_i32_0, %c0_i32_1 : i32, i32, i32
  }
  func.func @transform_5(%arg0: i32) -> (i32, i32) {
    %c0_i32 = arith.constant 0 : i32
    %c0_i32_0 = arith.constant 0 : i32
    return %arg0, %c0_i32 : i32, i32
  }
}

</mosaic_0001>

<llo_original>
// kernel: tpu_custom_call.1
$region0: #{tpu_custom_call.1}
  #allocation0 [shape = 'u32[]', space=smem, size = 0x4, offset = 0x4, fixed_abs, tag = 'smem constant byte address 0x4 - core index']
  #allocation1 [shape = 'u32[144,128]{1,0:T(1,128)}', space=vmem, size = 0x12000, scoped, tag = 'internal scratch']
  %s0 = inlined_call_operand.hbm [shape: f32[2,32], index: 0, kind: input, shape index: {}]
  %s1 = inlined_call_operand.hbm [shape: f32[32,32], index: 1, kind: input, shape index: {}]
  %s2 = inlined_call_operand.hbm [shape: f32[1,32], index: 2, kind: input, shape index: {}]
  %s3 = inlined_call_operand.hbm [shape: f32[7,32,32], index: 3, kind: input, shape index: {}]
  %s4 = inlined_call_operand.vmem [shape: f32[7,1,32], index: 4, kind: input, shape index: {}]
  %s5 = inlined_call_operand.hbm [shape: f32[2,32], index: 5, kind: output, shape index: {}]
  %s6 = sld [smem:[#allocation0]]
  $region46: #{tpu_custom_call.1} parent=0
    _
  %s8 = ssub.s32 1, %s6
  %s9 = scalar_select 0, %s8, %s6
  $region1: #{tpu_custom_call.1} parent=0
    #allocation2 [shape = 'u8[1024]{0}', space=vmem, size = 0x400, scoped, tag = 'input window, operand 0, single buffered']
    #allocation3 [shape = 's32[1]{0}', space=sflag, size = 0x4, scoped, tag = 'scoped memory for tpu_custom_call.1']
    #allocation4 [shape = 's32[1]{0}', space=sflag, size = 0x4, scoped, tag = 'scoped memory for tpu_custom_call.1']
    #allocation5 [shape = 'u8[16384]{0}', space=vmem, size = 0x4000, scoped, tag = 'input window, operand 1, single buffered']
    #allocation6 [shape = 's32[1]{0}', space=sflag, size = 0x4, scoped, tag = 'scoped memory for tpu_custom_call.1']
    #allocation7 [shape = 'u8[512]{0}', space=vmem, size = 0x400, scoped, tag = 'input window, operand 2, single buffered']
    #allocation8 [shape = 'u8[114688]{0}', space=vmem, size = 0x1c000, scoped, tag = 'input window, operand 3, single buffered']
    #allocation9 [shape = 's32[1]{0}', space=sflag, size = 0x4, scoped, tag = 'scoped memory for tpu_custom_call.1']
    #allocation10 [shape = 'u8[1024]{0}', space=vmem, size = 0x400, scoped, tag = 'output window, operand 0, single buffered']
    %10 = vsyncpa [#allocation3], 0
    %11 = vsyncpa [#allocation6], 0
    %12 = vsyncpa [#allocation9], 0
    %13 = vsyncpa [#allocation4], 0
    // Predicated region
    $region2: #{tpu_custom_call.1} parent=1 // pred_check
      _
    $region3: #{tpu_custom_call.1} parent=1 // pred_check_branch
      %15 = sbr.rel (0) target = $region5
    $region4: #{tpu_custom_call.1} parent=1 // pred_region
      %s17 = ssub.s32 32, 32
      %18 = vsyncadd [#allocation3], %s17
      %s20 = sshll.u32 [#allocation2], 4
      %s21 = int_to_ptr.vmem [resolvable:$true] %s20
      %23 = dma.hbm_to_vmem [thread:$0]  %s0, 32, %s21, [#allocation3]
    $region5: #{tpu_custom_call.1} parent=1 // pred_fallthru
      _
    // Predicated region
    $region6: #{tpu_custom_call.1} parent=1 // pred_check
      _
    $region7: #{tpu_custom_call.1} parent=1 // pred_check_branch
      %25 = sbr.rel (0) target = $region9
    $region8: #{tpu_custom_call.1} parent=1 // pred_region
      %s27 = ssub.s32 512, 512
      %28 = vsyncadd [#allocation6], %s27
      %s29 = sshll.u32 [#allocation5], 4
      %s30 = int_to_ptr.vmem [resolvable:$true] %s29
      %35 = dma.hbm_to_vmem [thread:$0]  %s1, 512, %s30, [#allocation6], 128, 128, 8
    $region9: #{tpu_custom_call.1} parent=1 // pred_fallthru
      _
    // Predicated region
    $region10: #{tpu_custom_call.1} parent=1 // pred_check
      _
    $region11: #{tpu_custom_call.1} parent=1 // pred_check_branch
      %37 = sbr.rel (0) target = $region13
    $region12: #{tpu_custom_call.1} parent=1 // pred_region
      %s39 = ssub.s32 16, 16
      %40 = vsyncadd [#allocation6], %s39
      %s42 = sshll.u32 [#allocation7], 4
      %s43 = int_to_ptr.vmem [resolvable:$true] %s42
      %45 = dma.hbm_to_vmem [thread:$0]  %s2, 16, %s43, [#allocation6]
    $region13: #{tpu_custom_call.1} parent=1 // pred_fallthru
      _
    // Predicated region
    $region14: #{tpu_custom_call.1} parent=1 // pred_check
      _
    $region15: #{tpu_custom_call.1} parent=1 // pred_check_branch
      %47 = sbr.rel (0) target = $region17
    $region16: #{tpu_custom_call.1} parent=1 // pred_region
      %s49 = ssub.s32 3584, 3584
      %50 = vsyncadd [#allocation9], %s49
      %s51 = sshll.u32 [#allocation8], 4
      %s52 = int_to_ptr.vmem [resolvable:$true] %s51
      %57 = dma.hbm_to_vmem [thread:$0]  %s3, 3584, %s52, [#allocation9], 128, 128, 8
    $region17: #{tpu_custom_call.1} parent=1 // pred_fallthru
      _
    // Predicated region
    $region18: #{tpu_custom_call.1} parent=1 // pred_check
      _
    $region19: #{tpu_custom_call.1} parent=1 // pred_check_branch
      %59 = sbr.rel (0) target = $region21
    $region20: #{tpu_custom_call.1} parent=1 // pred_region
      _
    $region21: #{tpu_custom_call.1} parent=1 // pred_fallthru
      _
    // Predicated region
    $region22: #{tpu_custom_call.1} parent=1 // pred_check
      _
    $region23: #{tpu_custom_call.1} parent=1 // pred_check_branch
      %61 = sbr.rel (0) target = $region25
    $region24: #{tpu_custom_call.1} parent=1 // pred_region
      %62 = dma.done [#allocation3], 32
    $region25: #{tpu_custom_call.1} parent=1 // pred_fallthru
      _
    // Predicated region
    $region26: #{tpu_custom_call.1} parent=1 // pred_check
      _
    $region27: #{tpu_custom_call.1} parent=1 // pred_check_branch
      %64 = sbr.rel (0) target = $region29
    $region28: #{tpu_custom_call.1} parent=1 // pred_region
      %65 = dma.done [#allocation6], 512
    $region29: #{tpu_custom_call.1} parent=1 // pred_fallthru
      _
    // Predicated region
    $region30: #{tpu_custom_call.1} parent=1 // pred_check
      _
    $region31: #{tpu_custom_call.1} parent=1 // pred_check_branch
      %67 = sbr.rel (0) target = $region33
    $region32: #{tpu_custom_call.1} parent=1 // pred_region
      %68 = dma.done [#allocation6], 16
    $region33: #{tpu_custom_call.1} parent=1 // pred_fallthru
      _
    // Predicated region
    $region34: #{tpu_custom_call.1} parent=1 // pred_check
      _
    $region35: #{tpu_custom_call.1} parent=1 // pred_check_branch
      %70 = sbr.rel (0) target = $region37
    $region36: #{tpu_custom_call.1} parent=1 // pred_region
      %71 = dma.done [#allocation9], 3584
    $region37: #{tpu_custom_call.1} parent=1 // pred_fallthru
      _
    %v72 = vld [vmem:[#allocation2] sm:$0x3]
    %v73 = vmul.f32 %v72, %v72
    %vm74 = vcmask 254976
    %v75 = vsel %vm74, %v73, 0.0
    %76 = vadd.xlane.f32.xlu0 %v75
    %v77 = vpop.xlane.xlu0 %76
    %v78 = vrcp.pop 32.0
    %v79 = vmul.f32 %v77, %v78
    %v80 = vadd.f32 %v79, 1e-08
    %v81 = vrsqrt.pop %v80
    %v82 = vmul.f32 %v80, %v81
    %vm83 = vcmp.eq.f32.partialorder %v80, inf
    %v84 = vsel %vm83, %v80, %v82
    %vm85 = vcmp.eq.f32.partialorder %v80, 0.0
    %v86 = vand.u32 %v80, 2147483648
    %v87 = vsel %vm85, %v86, %v84
    %v88 = vrcp.pop %v87
    %v89 = vmul.f32 %v72, %v88
    %v90 = vld [vmem:[#allocation5] sm:$0xff]
    %v91 = vld [vmem:[#allocation5 + $0x8] sm:$0xff]
    %v92 = vld [vmem:[#allocation5 + $0x10] sm:$0xff]
    %v93 = vld [vmem:[#allocation5 + $0x18] sm:$0xff]
    %v94 = vld [vmem:[#allocation7] sm:$0x1]
    %v96 = vlaneseq
    %v97 = vshrl.u32 %v96, 7
    %v98 = vsub.s32 0, %v97
    %v99 = vrot.slane %v94, %v98
    %vm101 = vcmask 261120
    %v103 = vsel %vm101, %v89, 0
    %105 = vmatprep.subr.mxu0 0.0
    %106 = vmatpush1.msra.mxu0 0.0
    %107 = vmatprep.subr.mxu0 0.0
    %108 = vmatpush1.msra.mxu0 0.0
    %109 = vmatprep.subr.mxu0 0.0
    %110 = vmatpush1.msra.mxu0 0.0
    %111 = vmatprep.subr.mxu0 0.0
    %112 = vmatpush1.msra.mxu0 0.0
    %113 = vmatprep.subr.mxu0 0.0
    %114 = vmatpush1.msra.mxu0 0.0
    %115 = vmatprep.subr.mxu0 0.0
    %116 = vmatpush1.msra.mxu0 0.0
    %117 = vmatprep.subr.mxu0 0.0
    %118 = vmatpush1.msra.mxu0 0.0
    %119 = vmatprep.subr.mxu0 0.0
    %120 = vmatpush1.msra.mxu0 0.0
    %121 = vmatprep.subr.mxu0 0.0
    %122 = vmatpush1.msra.mxu0 0.0
    %123 = vmatprep.subr.mxu0 0.0
    %124 = vmatpush1.msra.mxu0 0.0
    %125 = vmatprep.subr.mxu0 0.0
    %126 = vmatpush1.msra.mxu0 0.0
    %127 = vmatprep.subr.mxu0 0.0
    %128 = vmatpush1.msra.mxu0 0.0
    %129 = vmatprep.subr.mxu0 0.0
    %v130 = vand.u32 %v93, 4294901760
    %131 = vmatpush1.msra.mxu0 %v130
    %132 = vmatprep.subr.mxu0 0.0
    %v133 = vand.u32 %v92, 4294901760
    %134 = vmatpush1.msra.mxu0 %v133
    %135 = vmatprep.subr.mxu0 0.0
    %v136 = vand.u32 %v91, 4294901760
    %137 = vmatpush1.msra.mxu0 %v136
    %138 = vmatprep.subr.mxu0 0.0
    %v139 = vand.u32 %v90, 4294901760
    %140 = vmatpush1.msra.mxu0 %v139
    %141 = vmatprep.subr.mxu0 0.0
    %142 = vmatpush2.msra.mxu0 0.0
    %143 = vmatprep.subr.mxu0 0.0
    %144 = vmatpush2.msra.mxu0 0.0
    %145 = vmatprep.subr.mxu0 0.0
    %146 = vmatpush2.msra.mxu0 0.0
    %147 = vmatprep.subr.mxu0 0.0
    %148 = vmatpush2.msra.mxu0 0.0
    %149 = vmatprep.subr.mxu0 0.0
    %150 = vmatpush2.msra.mxu0 0.0
    %151 = vmatprep.subr.mxu0 0.0
    %152 = vmatpush2.msra.mxu0 0.0
    %153 = vmatprep.subr.mxu0 0.0
    %154 = vmatpush2.msra.mxu0 0.0
    %155 = vmatprep.subr.mxu0 0.0
    %156 = vmatpush2.msra.mxu0 0.0
    %157 = vmatprep.subr.mxu0 0.0
    %158 = vmatpush2.msra.mxu0 0.0
    %159 = vmatprep.subr.mxu0 0.0
    %160 = vmatpush2.msra.mxu0 0.0
    %161 = vmatprep.subr.mxu0 0.0
    %162 = vmatpush2.msra.mxu0 0.0
    %163 = vmatprep.subr.mxu0 0.0
    %164 = vmatpush2.msra.mxu0 0.0
    %165 = vmatprep.subr.mxu0 0.0
    %166 = vmatpush2.msra.mxu0 0.0
    %167 = vmatprep.subr.mxu0 0.0
    %168 = vmatpush2.msra.mxu0 0.0
    %169 = vmatprep.subr.mxu0 0.0
    %170 = vmatpush2.msra.mxu0 0.0
    %171 = vmatprep.subr.mxu0 0.0
    %172 = vmatpush2.msra.mxu0 0.0
    %173 = vmatprep.mubr.f32.mxu0 0.0
    %v174 = vand.u32 %v103, 4294901760
    %v175 = vsub.f32 %v103, %v174
    %v176 = vand.u32 %v175, 4294901760
    %v177 = vsub.f32 %v175, %v176
    %v178 = vand.u32 %v177, 4294901760
    %179 = vmatmul.mubr.f32.gmra.mxu0 %v178
    %v180 = vpop.f32.mrf.mxu0
    %v181 = vadd.f32 %v99, %v180
    %v182 = vpop.f32.mrf.mxu0
    %183 = vdwg.mxu0
    %184 = vmatprep.subr.mxu0 0.0
    %185 = vmatpush1.msra.mxu0 0.0
    %186 = vmatprep.subr.mxu0 0.0
    %187 = vmatpush1.msra.mxu0 0.0
    %188 = vmatprep.subr.mxu0 0.0
    %189 = vmatpush1.msra.mxu0 0.0
    %190 = vmatprep.subr.mxu0 0.0
    %191 = vmatpush1.msra.mxu0 0.0
    %192 = vmatprep.subr.mxu0 0.0
    %193 = vmatpush1.msra.mxu0 0.0
    %194 = vmatprep.subr.mxu0 0.0
    %195 = vmatpush1.msra.mxu0 0.0
    %196 = vmatprep.subr.mxu0 0.0
    %197 = vmatpush1.msra.mxu0 0.0
    %198 = vmatprep.subr.mxu0 0.0
    %199 = vmatpush1.msra.mxu0 0.0
    %200 = vmatprep.subr.mxu0 0.0
    %201 = vmatpush1.msra.mxu0 0.0
    %202 = vmatprep.subr.mxu0 0.0
    %203 = vmatpush1.msra.mxu0 0.0
    %204 = vmatprep.subr.mxu0 0.0
    %205 = vmatpush1.msra.mxu0 0.0
    %206 = vmatprep.subr.mxu0 0.0
    %207 = vmatpush1.msra.mxu0 0.0
    %208 = vmatprep.subr.mxu0 0.0
    %v209 = vand.u32 %v93, 4294901760
    %v210 = vsub.f32 %v93, %v209
    %v211 = vand.u32 %v210, 4294901760
    %v212 = vsub.f32 %v210, %v211
    %v213 = vand.u32 %v212, 4294901760
    %214 = vmatpush1.msra.mxu0 %v213
    %215 = vmatprep.subr.mxu0 0.0
    %v216 = vand.u32 %v92, 4294901760
    %v217 = vsub.f32 %v92, %v216
    %v218 = vand.u32 %v217, 4294901760
    %v219 = vsub.f32 %v217, %v218
    %v220 = vand.u32 %v219, 4294901760
    %221 = vmatpush1.msra.mxu0 %v220
    %222 = vmatprep.subr.mxu0 0.0
    %v223 = vand.u32 %v91, 4294901760
    %v224 = vsub.f32 %v91, %v223
    %v225 = vand.u32 %v224, 4294901760
    %v226 = vsub.f32 %v224, %v225
    %v227 = vand.u32 %v226, 4294901760
    %228 = vmatpush1.msra.mxu0 %v227
    %229 = vmatprep.subr.mxu0 0.0
    %v230 = vand.u32 %v90, 4294901760
    %v231 = vsub.f32 %v90, %v230
    %v232 = vand.u32 %v231, 4294901760
    %v233 = vsub.f32 %v231, %v232
    %v234 = vand.u32 %v233, 4294901760
    %235 = vmatpush1.msra.mxu0 %v234
    %236 = vmatprep.subr.mxu0 0.0
    %237 = vmatpush2.msra.mxu0 0.0
    %238 = vmatprep.subr.mxu0 0.0
    %239 = vmatpush2.msra.mxu0 0.0
    %240 = vmatprep.subr.mxu0 0.0
    %241 = vmatpush2.msra.mxu0 0.0
    %242 = vmatprep.subr.mxu0 0.0
    %243 = vmatpush2.msra.mxu0 0.0
    %244 = vmatprep.subr.mxu0 0.0
    %245 = vmatpush2.msra.mxu0 0.0
    %246 = vmatprep.subr.mxu0 0.0
    %247 = vmatpush2.msra.mxu0 0.0
    %248 = vmatprep.subr.mxu0 0.0
    %249 = vmatpush2.msra.mxu0 0.0
    %250 = vmatprep.subr.mxu0 0.0
    %251 = vmatpush2.msra.mxu0 0.0
    %252 = vmatprep.subr.mxu0 0.0
    %253 = vmatpush2.msra.mxu0 0.0
    %254 = vmatprep.subr.mxu0 0.0
    %255 = vmatpush2.msra.mxu0 0.0
    %256 = vmatprep.subr.mxu0 0.0
    %257 = vmatpush2.msra.mxu0 0.0
    %258 = vmatprep.subr.mxu0 0.0
    %259 = vmatpush2.msra.mxu0 0.0
    %260 = vmatprep.subr.mxu0 0.0
    %261 = vmatpush2.msra.mxu0 0.0
    %262 = vmatprep.subr.mxu0 0.0
    %263 = vmatpush2.msra.mxu0 0.0
    %264 = vmatprep.subr.mxu0 0.0
    %265 = vmatpush2.msra.mxu0 0.0
    %266 = vmatprep.subr.mxu0 0.0
    %267 = vmatpush2.msra.mxu0 0.0
    %268 = vmatprep.mubr.f32.mxu0 0.0
    %v269 = vand.u32 %v103, 4294901760
    %270 = vmatmul.mubr.f32.gmra.mxu0 %v269
    %v271 = vpop.f32.mrf.mxu0
    %v272 = vadd.f32 %v181, %v271
    %v273 = vpop.f32.mrf.mxu0
    %274 = vdwg.mxu0
    %275 = vmatprep.subr.mxu0 0.0
    %276 = vmatpush1.msra.mxu0 0.0
    %277 = vmatprep.subr.mxu0 0.0
    %278 = vmatpush1.msra.mxu0 0.0
    %279 = vmatprep.subr.mxu0 0.0
    %280 = vmatpush1.msra.mxu0 0.0
    %281 = vmatprep.subr.mxu0 0.0
    %282 = vmatpush1.msra.mxu0 0.0
    %283 = vmatprep.subr.mxu0 0.0
    %284 = vmatpush1.msra.mxu0 0.0
    %285 = vmatprep.subr.mxu0 0.0
    %286 = vmatpush1.msra.mxu0 0.0
    %287 = vmatprep.subr.mxu0 0.0
    %288 = vmatpush1.msra.mxu0 0.0
    %289 = vmatprep.subr.mxu0 0.0
    %290 = vmatpush1.msra.mxu0 0.0
    %291 = vmatprep.subr.mxu0 0.0
    %292 = vmatpush1.msra.mxu0 0.0
    %293 = vmatprep.subr.mxu0 0.0
    %294 = vmatpush1.msra.mxu0 0.0
    %295 = vmatprep.subr.mxu0 0.0
    %296 = vmatpush1.msra.mxu0 0.0
    %297 = vmatprep.subr.mxu0 0.0
    %298 = vmatpush1.msra.mxu0 0.0
    %299 = vmatprep.subr.mxu0 0.0
    %v300 = vand.u32 %v93, 4294901760
    %v301 = vsub.f32 %v93, %v300
    %302 = vmatpush1.msra.mxu0 %v301
    %303 = vmatprep.subr.mxu0 0.0
    %v304 = vand.u32 %v92, 4294901760
    %v305 = vsub.f32 %v92, %v304
    %306 = vmatpush1.msra.mxu0 %v305
    %307 = vmatprep.subr.mxu0 0.0
    %v308 = vand.u32 %v91, 4294901760
    %v309 = vsub.f32 %v91, %v308
    %310 = vmatpush1.msra.mxu0 %v309
    %311 = vmatprep.subr.mxu0 0.0
    %v312 = vand.u32 %v90, 4294901760
    %v313 = vsub.f32 %v90, %v312
    %314 = vmatpush1.msra.mxu0 %v313
    %315 = vmatprep.subr.mxu0 0.0
    %316 = vmatpush2.msra.mxu0 0.0
    %317 = vmatprep.subr.mxu0 0.0
    %318 = vmatpush2.msra.mxu0 0.0
    %319 = vmatprep.subr.mxu0 0.0
    %320 = vmatpush2.msra.mxu0 0.0
    %321 = vmatprep.subr.mxu0 0.0
    %322 = vmatpush2.msra.mxu0 0.0
    %323 = vmatprep.subr.mxu0 0.0
    %324 = vmatpush2.msra.mxu0 0.0
    %325 = vmatprep.subr.mxu0 0.0
    %326 = vmatpush2.msra.mxu0 0.0
    %327 = vmatprep.subr.mxu0 0.0
    %328 = vmatpush2.msra.mxu0 0.0
    %329 = vmatprep.subr.mxu0 0.0
    %330 = vmatpush2.msra.mxu0 0.0
    %331 = vmatprep.subr.mxu0 0.0
    %332 = vmatpush2.msra.mxu0 0.0
    %333 = vmatprep.subr.mxu0 0.0
    %334 = vmatpush2.msra.mxu0 0.0
    %335 = vmatprep.subr.mxu0 0.0
    %336 = vmatpush2.msra.mxu0 0.0
    %337 = vmatprep.subr.mxu0 0.0
    %338 = vmatpush2.msra.mxu0 0.0
    %339 = vmatprep.subr.mxu0 0.0
    %340 = vmatpush2.msra.mxu0 0.0
    %341 = vmatprep.subr.mxu0 0.0
    %342 = vmatpush2.msra.mxu0 0.0
    %343 = vmatprep.subr.mxu0 0.0
    %344 = vmatpush2.msra.mxu0 0.0
    %345 = vmatprep.subr.mxu0 0.0
    %346 = vmatpush2.msra.mxu0 0.0
    %347 = vmatprep.mubr.f32.mxu0 0.0
    %v348 = vand.u32 %v103, 4294901760
    %v349 = vsub.f32 %v103, %v348
    %350 = vmatmul.mubr.f32.gmra.mxu0 %v349
    %v351 = vpop.f32.mrf.mxu0
    %v352 = vadd.f32 %v272, %v351
    %v353 = vpop.f32.mrf.mxu0
    %354 = vdwg.mxu0
    %355 = vmatprep.subr.mxu0 0.0
    %356 = vmatpush1.msra.mxu0 0.0
    %357 = vmatprep.subr.mxu0 0.0
    %358 = vmatpush1.msra.mxu0 0.0
    %359 = vmatprep.subr.mxu0 0.0
    %360 = vmatpush1.msra.mxu0 0.0
    %361 = vmatprep.subr.mxu0 0.0
    %362 = vmatpush1.msra.mxu0 0.0
    %363 = vmatprep.subr.mxu0 0.0
    %364 = vmatpush1.msra.mxu0 0.0
    %365 = vmatprep.subr.mxu0 0.0
    %366 = vmatpush1.msra.mxu0 0.0
    %367 = vmatprep.subr.mxu0 0.0
    %368 = vmatpush1.msra.mxu0 0.0
    %369 = vmatprep.subr.mxu0 0.0
    %370 = vmatpush1.msra.mxu0 0.0
    %371 = vmatprep.subr.mxu0 0.0
    %372 = vmatpush1.msra.mxu0 0.0
    %373 = vmatprep.subr.mxu0 0.0
    %374 = vmatpush1.msra.mxu0 0.0
    %375 = vmatprep.subr.mxu0 0.0
    %376 = vmatpush1.msra.mxu0 0.0
    %377 = vmatprep.subr.mxu0 0.0
    %378 = vmatpush1.msra.mxu0 0.0
    %379 = vmatprep.subr.mxu0 0.0
    %v380 = vand.u32 %v93, 4294901760
    %381 = vmatpush1.msra.mxu0 %v380
    %382 = vmatprep.subr.mxu0 0.0
    %v383 = vand.u32 %v92, 4294901760
    %384 = vmatpush1.msra.mxu0 %v383
    %385 = vmatprep.subr.mxu0 0.0
    %v386 = vand.u32 %v91, 4294901760
    %387 = vmatpush1.msra.mxu0 %v386
    %388 = vmatprep.subr.mxu0 0.0
    %v389 = vand.u32 %v90, 4294901760
    %390 = vmatpush1.msra.mxu0 %v389
    %391 = vmatprep.subr.mxu0 0.0
    %392 = vmatpush2.msra.mxu0 0.0
    %393 = vmatprep.subr.mxu0 0.0
    %394 = vmatpush2.msra.mxu0 0.0
    %395 = vmatprep.subr.mxu0 0.0
    %396 = vmatpush2.msra.mxu0 0.0
    %397 = vmatprep.subr.mxu0 0.0
    %398 = vmatpush2.msra.mxu0 0.0
    %399 = vmatprep.subr.mxu0 0.0
    %400 = vmatpush2.msra.mxu0 0.0
    %401 = vmatprep.subr.mxu0 0.0
    %402 = vmatpush2.msra.mxu0 0.0
    %403 = vmatprep.subr.mxu0 0.0
    %404 = vmatpush2.msra.mxu0 0.0
    %405 = vmatprep.subr.mxu0 0.0
    %406 = vmatpush2.msra.mxu0 0.0
    %407 = vmatprep.subr.mxu0 0.0
    %408 = vmatpush2.msra.mxu0 0.0
    %409 = vmatprep.subr.mxu0 0.0
    %410 = vmatpush2.msra.mxu0 0.0
    %411 = vmatprep.subr.mxu0 0.0
    %412 = vmatpush2.msra.mxu0 0.0
    %413 = vmatprep.subr.mxu0 0.0
    %414 = vmatpush2.msra.mxu0 0.0
    %415 = vmatprep.subr.mxu0 0.0
    %416 = vmatpush2.msra.mxu0 0.0
    %417 = vmatprep.subr.mxu0 0.0
    %418 = vmatpush2.msra.mxu0 0.0
    %419 = vmatprep.subr.mxu0 0.0
    %420 = vmatpush2.msra.mxu0 0.0
    %421 = vmatprep.subr.mxu0 0.0
    %422 = vmatpush2.msra.mxu0 0.0
    %423 = vmatprep.mubr.f32.mxu0 0.0
    %v424 = vand.u32 %v103, 4294901760
    %v425 = vsub.f32 %v103, %v424
    %v426 = vand.u32 %v425, 4294901760
    %427 = vmatmul.mubr.f32.gmra.mxu0 %v426
    %v428 = vpop.f32.mrf.mxu0
    %v429 = vadd.f32 %v352, %v428
    %v430 = vpop.f32.mrf.mxu0
    %431 = vdwg.mxu0
    %432 = vmatprep.subr.mxu0 0.0
    %433 = vmatpush1.msra.mxu0 0.0
    %434 = vmatprep.subr.mxu0 0.0
    %435 = vmatpush1.msra.mxu0 0.0
    %436 = vmatprep.subr.mxu0 0.0
    %437 = vmatpush1.msra.mxu0 0.0
    %438 = vmatprep.subr.mxu0 0.0
    %439 = vmatpush1.msra.mxu0 0.0
    %440 = vmatprep.subr.mxu0 0.0
    %441 = vmatpush1.msra.mxu0 0.0
    %442 = vmatprep.subr.mxu0 0.0
    %443 = vmatpush1.msra.mxu0 0.0
    %444 = vmatprep.subr.mxu0 0.0
    %445 = vmatpush1.msra.mxu0 0.0
    %446 = vmatprep.subr.mxu0 0.0
    %447 = vmatpush1.msra.mxu0 0.0
    %448 = vmatprep.subr.mxu0 0.0
    %449 = vmatpush1.msra.mxu0 0.0
    %450 = vmatprep.subr.mxu0 0.0
    %451 = vmatpush1.msra.mxu0 0.0
    %452 = vmatprep.subr.mxu0 0.0
    %453 = vmatpush1.msra.mxu0 0.0
    %454 = vmatprep.subr.mxu0 0.0
    %455 = vmatpush1.msra.mxu0 0.0
    %456 = vmatprep.subr.mxu0 0.0
    %v457 = vand.u32 %v93, 4294901760
    %v458 = vsub.f32 %v93, %v457
    %v459 = vand.u32 %v458, 4294901760
    %460 = vmatpush1.msra.mxu0 %v459
    %461 = vmatprep.subr.mxu0 0.0
    %v462 = vand.u32 %v92, 4294901760
    %v463 = vsub.f32 %v92, %v462
    %v464 = vand.u32 %v463, 4294901760
    %465 = vmatpush1.msra.mxu0 %v464
    %466 = vmatprep.subr.mxu0 0.0
    %v467 = vand.u32 %v91, 4294901760
    %v468 = vsub.f32 %v91, %v467
    %v469 = vand.u32 %v468, 4294901760
    %470 = vmatpush1.msra.mxu0 %v469
    %471 = vmatprep.subr.mxu0 0.0
    %v472 = vand.u32 %v90, 4294901760
    %v473 = vsub.f32 %v90, %v472
    %v474 = vand.u32 %v473, 4294901760
    %475 = vmatpush1.msra.mxu0 %v474
    %476 = vmatprep.subr.mxu0 0.0
    %477 = vmatpush2.msra.mxu0 0.0
    %478 = vmatprep.subr.mxu0 0.0
    %479 = vmatpush2.msra.mxu0 0.0
    %480 = vmatprep.subr.mxu0 0.0
    %481 = vmatpush2.msra.mxu0 0.0
    %482 = vmatprep.subr.mxu0 0.0
    %483 = vmatpush2.msra.mxu0 0.0
    %484 = vmatprep.subr.mxu0 0.0
    %485 = vmatpush2.msra.mxu0 0.0
    %486 = vmatprep.subr.mxu0 0.0
    %487 = vmatpush2.msra.mxu0 0.0
    %488 = vmatprep.subr.mxu0 0.0
    %489 = vmatpush2.msra.mxu0 0.0
    %490 = vmatprep.subr.mxu0 0.0
    %491 = vmatpush2.msra.mxu0 0.0
    %492 = vmatprep.subr.mxu0 0.0
    %493 = vmatpush2.msra.mxu0 0.0
    %494 = vmatprep.subr.mxu0 0.0
    %495 = vmatpush2.msra.mxu0 0.0
    %496 = vmatprep.subr.mxu0 0.0
    %497 = vmatpush2.msra.mxu0 0.0
    %498 = vmatprep.subr.mxu0 0.0
    %499 = vmatpush2.msra.mxu0 0.0
    %500 = vmatprep.subr.mxu0 0.0
    %501 = vmatpush2.msra.mxu0 0.0
    %502 = vmatprep.subr.mxu0 0.0
    %503 = vmatpush2.msra.mxu0 0.0
    %504 = vmatprep.subr.mxu0 0.0
    %505 = vmatpush2.msra.mxu0 0.0
    %506 = vmatprep.subr.mxu0 0.0
    %507 = vmatpush2.msra.mxu0 0.0
    %508 = vmatprep.mubr.f32.mxu0 0.0
    %v509 = vand.u32 %v103, 4294901760
    %510 = vmatmul.mubr.f32.gmra.mxu0 %v509
    %v511 = vpop.f32.mrf.mxu0
    %v512 = vadd.f32 %v429, %v511
    %v513 = vpop.f32.mrf.mxu0
    %514 = vdwg.mxu0
    %515 = vmatprep.subr.mxu0 0.0
    %516 = vmatpush1.msra.mxu0 0.0
    %517 = vmatprep.subr.mxu0 0.0
    %518 = vmatpush1.msra.mxu0 0.0
    %519 = vmatprep.subr.mxu0 0.0
    %520 = vmatpush1.msra.mxu0 0.0
    %521 = vmatprep.subr.mxu0 0.0
    %522 = vmatpush1.msra.mxu0 0.0
    %523 = vmatprep.subr.mxu0 0.0
    %524 = vmatpush1.msra.mxu0 0.0
    %525 = vmatprep.subr.mxu0 0.0
    %526 = vmatpush1.msra.mxu0 0.0
    %527 = vmatprep.subr.mxu0 0.0
    %528 = vmatpush1.msra.mxu0 0.0
    %529 = vmatprep.subr.mxu0 0.0
    %530 = vmatpush1.msra.mxu0 0.0
    %531 = vmatprep.subr.mxu0 0.0
    %532 = vmatpush1.msra.mxu0 0.0
    %533 = vmatprep.subr.mxu0 0.0
    %534 = vmatpush1.msra.mxu0 0.0
    %535 = vmatprep.subr.mxu0 0.0
    %536 = vmatpush1.msra.mxu0 0.0
    %537 = vmatprep.subr.mxu0 0.0
    %538 = vmatpush1.msra.mxu0 0.0
    %539 = vmatprep.subr.mxu0 0.0
    %v540 = vand.u32 %v93, 4294901760
    %541 = vmatpush1.msra.mxu0 %v540
    %542 = vmatprep.subr.mxu0 0.0
    %v543 = vand.u32 %v92, 4294901760
    %544 = vmatpush1.msra.mxu0 %v543
    %545 = vmatprep.subr.mxu0 0.0
    %v546 = vand.u32 %v91, 4294901760
    %547 = vmatpush1.msra.mxu0 %v546
    %548 = vmatprep.subr.mxu0 0.0
    %v549 = vand.u32 %v90, 4294901760
    %550 = vmatpush1.msra.mxu0 %v549
    %551 = vmatprep.subr.mxu0 0.0
    %552 = vmatpush2.msra.mxu0 0.0
    %553 = vmatprep.subr.mxu0 0.0
    %554 = vmatpush2.msra.mxu0 0.0
    %555 = vmatprep.subr.mxu0 0.0
    %556 = vmatpush2.msra.mxu0 0.0
    %557 = vmatprep.subr.mxu0 0.0
    %558 = vmatpush2.msra.mxu0 0.0
    %559 = vmatprep.subr.mxu0 0.0
    %560 = vmatpush2.msra.mxu0 0.0
    %561 = vmatprep.subr.mxu0 0.0
    %562 = vmatpush2.msra.mxu0 0.0
    %563 = vmatprep.subr.mxu0 0.0
    %564 = vmatpush2.msra.mxu0 0.0
    %565 = vmatprep.subr.mxu0 0.0
    %566 = vmatpush2.msra.mxu0 0.0
    %567 = vmatprep.subr.mxu0 0.0
    %568 = vmatpush2.msra.mxu0 0.0
    %569 = vmatprep.subr.mxu0 0.0
    %570 = vmatpush2.msra.mxu0 0.0
    %571 = vmatprep.subr.mxu0 0.0
    %572 = vmatpush2.msra.mxu0 0.0
    %573 = vmatprep.subr.mxu0 0.0
    %574 = vmatpush2.msra.mxu0 0.0
    %575 = vmatprep.subr.mxu0 0.0
    %576 = vmatpush2.msra.mxu0 0.0
    %577 = vmatprep.subr.mxu0 0.0
    %578 = vmatpush2.msra.mxu0 0.0
    %579 = vmatprep.subr.mxu0 0.0
    %580 = vmatpush2.msra.mxu0 0.0
    %581 = vmatprep.subr.mxu0 0.0
    %582 = vmatpush2.msra.mxu0 0.0
    %583 = vmatprep.mubr.f32.mxu0 0.0
    %v584 = vand.u32 %v103, 4294901760
    %585 = vmatmul.mubr.f32.gmra.mxu0 %v584
    %v586 = vpop.f32.mrf.mxu0
    %v587 = vadd.f32 %v512, %v586
    %v588 = vpop.f32.mrf.mxu0
    %589 = vdwg.mxu0
    %vm590 = vcmp.ge.f32.partialorder %v587, 0.0
    %v591 = vmul.f32 %v587, 0.01
    %v592 = vsel %vm590, %v587, %v591
    %v593 = vld [vmem:[#allocation8] sm:$0xff]
    %v594 = vld [vmem:[#allocation8 + $0x8] sm:$0xff]
    %v595 = vld [vmem:[#allocation8 + $0x10] sm:$0xff]
    %v596 = vld [vmem:[#allocation8 + $0x18] sm:$0xff]
    %v597 = vld [vmem:[%s4] sm:$0x1]
    %v599 = vlaneseq
    %v600 = vshrl.u32 %v599, 7
    %v601 = vsub.s32 0, %v600
    %v602 = vrot.slane %v597, %v601
    %v605 = vsel %vm101, %v592, 0
    %607 = vmatprep.subr.mxu0 0.0
    %608 = vmatpush1.msra.mxu0 0.0
    %609 = vmatprep.subr.mxu0 0.0
    %610 = vmatpush1.msra.mxu0 0.0
    %611 = vmatprep.subr.mxu0 0.0
    %612 = vmatpush1.msra.mxu0 0.0
    %613 = vmatprep.subr.mxu0 0.0
    %614 = vmatpush1.msra.mxu0 0.0
    %615 = vmatprep.subr.mxu0 0.0
    %616 = vmatpush1.msra.mxu0 0.0
    %617 = vmatprep.subr.mxu0 0.0
    %618 = vmatpush1.msra.mxu0 0.0
    %619 = vmatprep.subr.mxu0 0.0
    %620 = vmatpush1.msra.mxu0 0.0
    %621 = vmatprep.subr.mxu0 0.0
    %622 = vmatpush1.msra.mxu0 0.0
    %623 = vmatprep.subr.mxu0 0.0
    %624 = vmatpush1.msra.mxu0 0.0
    %625 = vmatprep.subr.mxu0 0.0
    %626 = vmatpush1.msra.mxu0 0.0
    %627 = vmatprep.subr.mxu0 0.0
    %628 = vmatpush1.msra.mxu0 0.0
    %629 = vmatprep.subr.mxu0 0.0
    %630 = vmatpush1.msra.mxu0 0.0
    %631 = vmatprep.subr.mxu0 0.0
    %v632 = vand.u32 %v596, 4294901760
    %633 = vmatpush1.msra.mxu0 %v632
    %634 = vmatprep.subr.mxu0 0.0
    %v635 = vand.u32 %v595, 4294901760
    %636 = vmatpush1.msra.mxu0 %v635
    %637 = vmatprep.subr.mxu0 0.0
    %v638 = vand.u32 %v594, 4294901760
    %639 = vmatpush1.msra.mxu0 %v638
    %640 = vmatprep.subr.mxu0 0.0
    %v641 = vand.u32 %v593, 4294901760
    %642 = vmatpush1.msra.mxu0 %v641
    %643 = vmatprep.subr.mxu0 0.0
    %644 = vmatpush2.msra.mxu0 0.0
    %645 = vmatprep.subr.mxu0 0.0
    %646 = vmatpush2.msra.mxu0 0.0
    %647 = vmatprep.subr.mxu0 0.0
    %648 = vmatpush2.msra.mxu0 0.0
    %649 = vmatprep.subr.mxu0 0.0
    %650 = vmatpush2.msra.mxu0 0.0
    %651 = vmatprep.subr.mxu0 0.0
    %652 = vmatpush2.msra.mxu0 0.0
    %653 = vmatprep.subr.mxu0 0.0
    %654 = vmatpush2.msra.mxu0 0.0
    %655 = vmatprep.subr.mxu0 0.0
    %656 = vmatpush2.msra.mxu0 0.0
    %657 = vmatprep.subr.mxu0 0.0
    %658 = vmatpush2.msra.mxu0 0.0
    %659 = vmatprep.subr.mxu0 0.0
    %660 = vmatpush2.msra.mxu0 0.0
    %661 = vmatprep.subr.mxu0 0.0
    %662 = vmatpush2.msra.mxu0 0.0
    %663 = vmatprep.subr.mxu0 0.0
    %664 = vmatpush2.msra.mxu0 0.0
    %665 = vmatprep.subr.mxu0 0.0
    %666 = vmatpush2.msra.mxu0 0.0
    %667 = vmatprep.subr.mxu0 0.0
    %668 = vmatpush2.msra.mxu0 0.0
    %669 = vmatprep.subr.mxu0 0.0
    %670 = vmatpush2.msra.mxu0 0.0
    %671 = vmatprep.subr.mxu0 0.0
    %672 = vmatpush2.msra.mxu0 0.0
    %673 = vmatprep.subr.mxu0 0.0
    %674 = vmatpush2.msra.mxu0 0.0
    %675 = vmatprep.mubr.f32.mxu0 0.0
    %v676 = vand.u32 %v605, 4294901760
    %v677 = vsub.f32 %v605, %v676
    %v678 = vand.u32 %v677, 4294901760
    %v679 = vsub.f32 %v677, %v678
    %v680 = vand.u32 %v679, 4294901760
    %681 = vmatmul.mubr.f32.gmra.mxu0 %v680
    %v682 = vpop.f32.mrf.mxu0
    %v683 = vadd.f32 %v602, %v682
    %v684 = vpop.f32.mrf.mxu0
    %685 = vdwg.mxu0
    %686 = vmatprep.subr.mxu0 0.0
    %687 = vmatpush1.msra.mxu0 0.0
    %688 = vmatprep.subr.mxu0 0.0
    %689 = vmatpush1.msra.mxu0 0.0
    %690 = vmatprep.subr.mxu0 0.0
    %691 = vmatpush1.msra.mxu0 0.0
    %692 = vmatprep.subr.mxu0 0.0
    %693 = vmatpush1.msra.mxu0 0.0
    %694 = vmatprep.subr.mxu0 0.0
    %695 = vmatpush1.msra.mxu0 0.0
    %696 = vmatprep.subr.mxu0 0.0
    %697 = vmatpush1.msra.mxu0 0.0
    %698 = vmatprep.subr.mxu0 0.0
    %699 = vmatpush1.msra.mxu0 0.0
    %700 = vmatprep.subr.mxu0 0.0
    %701 = vmatpush1.msra.mxu0 0.0
    %702 = vmatprep.subr.mxu0 0.0
    %703 = vmatpush1.msra.mxu0 0.0
    %704 = vmatprep.subr.mxu0 0.0
    %705 = vmatpush1.msra.mxu0 0.0
    %706 = vmatprep.subr.mxu0 0.0
    %707 = vmatpush1.msra.mxu0 0.0
    %708 = vmatprep.subr.mxu0 0.0
    %709 = vmatpush1.msra.mxu0 0.0
    %710 = vmatprep.subr.mxu0 0.0
    %v711 = vand.u32 %v596, 4294901760
    %v712 = vsub.f32 %v596, %v711
    %v713 = vand.u32 %v712, 4294901760
    %v714 = vsub.f32 %v712, %v713
    %v715 = vand.u32 %v714, 4294901760
    %716 = vmatpush1.msra.mxu0 %v715
    %717 = vmatprep.subr.mxu0 0.0
    %v718 = vand.u32 %v595, 4294901760
    %v719 = vsub.f32 %v595, %v718
    %v720 = vand.u32 %v719, 4294901760
    %v721 = vsub.f32 %v719, %v720
    %v722 = vand.u32 %v721, 4294901760
    %723 = vmatpush1.msra.mxu0 %v722
    %724 = vmatprep.subr.mxu0 0.0
    %v725 = vand.u32 %v594, 4294901760
    %v726 = vsub.f32 %v594, %v725
    %v727 = vand.u32 %v726, 4294901760
    %v728 = vsub.f32 %v726, %v727
    %v729 = vand.u32 %v728, 4294901760
    %730 = vmatpush1.msra.mxu0 %v729
    %731 = vmatprep.subr.mxu0 0.0
    %v732 = vand.u32 %v593, 4294901760
    %v733 = vsub.f32 %v593, %v732
    %v734 = vand.u32 %v733, 4294901760
    %v735 = vsub.f32 %v733, %v734
    %v736 = vand.u32 %v735, 4294901760
    %737 = vmatpush1.msra.mxu0 %v736
    %738 = vmatprep.subr.mxu0 0.0
    %739 = vmatpush2.msra.mxu0 0.0
    %740 = vmatprep.subr.mxu0 0.0
    %741 = vmatpush2.msra.mxu0 0.0
    %742 = vmatprep.subr.mxu0 0.0
    %743 = vmatpush2.msra.mxu0 0.0
    %744 = vmatprep.subr.mxu0 0.0
    %745 = vmatpush2.msra.mxu0 0.0
    %746 = vmatprep.subr.mxu0 0.0
    %747 = vmatpush2.msra.mxu0 0.0
    %748 = vmatprep.subr.mxu0 0.0
    %749 = vmatpush2.msra.mxu0 0.0
    %750 = vmatprep.subr.mxu0 0.0
    %751 = vmatpush2.msra.mxu0 0.0
    %752 = vmatprep.subr.mxu0 0.0
    %753 = vmatpush2.msra.mxu0 0.0
    %754 = vmatprep.subr.mxu0 0.0
    %755 = vmatpush2.msra.mxu0 0.0
    %756 = vmatprep.subr.mxu0 0.0
    %757 = vmatpush2.msra.mxu0 0.0
    %758 = vmatprep.subr.mxu0 0.0
    %759 = vmatpush2.msra.mxu0 0.0
    %760 = vmatprep.subr.mxu0 0.0
    %761 = vmatpush2.msra.mxu0 0.0
    %762 = vmatprep.subr.mxu0 0.0
    %763 = vmatpush2.msra.mxu0 0.0
    %764 = vmatprep.subr.mxu0 0.0
    %765 = vmatpush2.msra.mxu0 0.0
    %766 = vmatprep.subr.mxu0 0.0
    %767 = vmatpush2.msra.mxu0 0.0
    %768 = vmatprep.subr.mxu0 0.0
    %769 = vmatpush2.msra.mxu0 0.0
    %770 = vmatprep.mubr.f32.mxu0 0.0
    %v771 = vand.u32 %v605, 4294901760
    %772 = vmatmul.mubr.f32.gmra.mxu0 %v771
    %v773 = vpop.f32.mrf.mxu0
    %v774 = vadd.f32 %v683, %v773
    %v775 = vpop.f32.mrf.mxu0
    %776 = vdwg.mxu0
    %777 = vmatprep.subr.mxu0 0.0
    %778 = vmatpush1.msra.mxu0 0.0
    %779 = vmatprep.subr.mxu0 0.0
    %780 = vmatpush1.msra.mxu0 0.0
    %781 = vmatprep.subr.mxu0 0.0
    %782 = vmatpush1.msra.mxu0 0.0
    %783 = vmatprep.subr.mxu0 0.0
    %784 = vmatpush1.msra.mxu0 0.0
    %785 = vmatprep.subr.mxu0 0.0
    %786 = vmatpush1.msra.mxu0 0.0
    %787 = vmatprep.subr.mxu0 0.0
    %788 = vmatpush1.msra.mxu0 0.0
    %789 = vmatprep.subr.mxu0 0.0
    %790 = vmatpush1.msra.mxu0 0.0
    %791 = vmatprep.subr.mxu0 0.0
    %792 = vmatpush1.msra.mxu0 0.0
    %793 = vmatprep.subr.mxu0 0.0
    %794 = vmatpush1.msra.mxu0 0.0
    %795 = vmatprep.subr.mxu0 0.0
    %796 = vmatpush1.msra.mxu0 0.0
    %797 = vmatprep.subr.mxu0 0.0
    %798 = vmatpush1.msra.mxu0 0.0
    %799 = vmatprep.subr.mxu0 0.0
    %800 = vmatpush1.msra.mxu0 0.0
    %801 = vmatprep.subr.mxu0 0.0
    %v802 = vand.u32 %v596, 4294901760
    %v803 = vsub.f32 %v596, %v802
    %804 = vmatpush1.msra.mxu0 %v803
    %805 = vmatprep.subr.mxu0 0.0
    %v806 = vand.u32 %v595, 4294901760
    %v807 = vsub.f32 %v595, %v806
    %808 = vmatpush1.msra.mxu0 %v807
    %809 = vmatprep.subr.mxu0 0.0
    %v810 = vand.u32 %v594, 4294901760
    %v811 = vsub.f32 %v594, %v810
    %812 = vmatpush1.msra.mxu0 %v811
    %813 = vmatprep.subr.mxu0 0.0
    %v814 = vand.u32 %v593, 4294901760
    %v815 = vsub.f32 %v593, %v814
    %816 = vmatpush1.msra.mxu0 %v815
    %817 = vmatprep.subr.mxu0 0.0
    %818 = vmatpush2.msra.mxu0 0.0
    %819 = vmatprep.subr.mxu0 0.0
    %820 = vmatpush2.msra.mxu0 0.0
    %821 = vmatprep.subr.mxu0 0.0
    %822 = vmatpush2.msra.mxu0 0.0
    %823 = vmatprep.subr.mxu0 0.0
    %824 = vmatpush2.msra.mxu0 0.0
    %825 = vmatprep.subr.mxu0 0.0
    %826 = vmatpush2.msra.mxu0 0.0
    %827 = vmatprep.subr.mxu0 0.0
    %828 = vmatpush2.msra.mxu0 0.0
    %829 = vmatprep.subr.mxu0 0.0
    %830 = vmatpush2.msra.mxu0 0.0
    %831 = vmatprep.subr.mxu0 0.0
    %832 = vmatpush2.msra.mxu0 0.0
    %833 = vmatprep.subr.mxu0 0.0
    %834 = vmatpush2.msra.mxu0 0.0
    %835 = vmatprep.subr.mxu0 0.0
    %836 = vmatpush2.msra.mxu0 0.0
    %837 = vmatprep.subr.mxu0 0.0
    %838 = vmatpush2.msra.mxu0 0.0
    %839 = vmatprep.subr.mxu0 0.0
    %840 = vmatpush2.msra.mxu0 0.0
    %841 = vmatprep.subr.mxu0 0.0
    %842 = vmatpush2.msra.mxu0 0.0
    %843 = vmatprep.subr.mxu0 0.0
    %844 = vmatpush2.msra.mxu0 0.0
    %845 = vmatprep.subr.mxu0 0.0
    %846 = vmatpush2.msra.mxu0 0.0
    %847 = vmatprep.subr.mxu0 0.0
    %848 = vmatpush2.msra.mxu0 0.0
    %849 = vmatprep.mubr.f32.mxu0 0.0
    %v850 = vand.u32 %v605, 4294901760
    %v851 = vsub.f32 %v605, %v850
    %852 = vmatmul.mubr.f32.gmra.mxu0 %v851
    %v853 = vpop.f32.mrf.mxu0
    %v854 = vadd.f32 %v774, %v853
    %v855 = vpop.f32.mrf.mxu0
    %856 = vdwg.mxu0
    %857 = vmatprep.subr.mxu0 0.0
    %858 = vmatpush1.msra.mxu0 0.0
    %859 = vmatprep.subr.mxu0 0.0
    %860 = vmatpush1.msra.mxu0 0.0
    %861 = vmatprep.subr.mxu0 0.0
    %862 = vmatpush1.msra.mxu0 0.0
    %863 = vmatprep.subr.mxu0 0.0
    %864 = vmatpush1.msra.mxu0 0.0
    %865 = vmatprep.subr.mxu0 0.0
    %866 = vmatpush1.msra.mxu0 0.0
    %867 = vmatprep.subr.mxu0 0.0
    %868 = vmatpush1.msra.mxu0 0.0
    %869 = vmatprep.subr.mxu0 0.0
    %870 = vmatpush1.msra.mxu0 0.0
    %871 = vmatprep.subr.mxu0 0.0
    %872 = vmatpush1.msra.mxu0 0.0
    %873 = vmatprep.subr.mxu0 0.0
    %874 = vmatpush1.msra.mxu0 0.0
    %875 = vmatprep.subr.mxu0 0.0
    %876 = vmatpush1.msra.mxu0 0.0
    %877 = vmatprep.subr.mxu0 0.0
    %878 = vmatpush1.msra.mxu0 0.0
    %879 = vmatprep.subr.mxu0 0.0
    %880 = vmatpush1.msra.mxu0 0.0
    %881 = vmatprep.subr.mxu0 0.0
    %v882 = vand.u32 %v596, 4294901760
    %883 = vmatpush1.msra.mxu0 %v882
    %884 = vmatprep.subr.mxu0 0.0
    %v885 = vand.u32 %v595, 4294901760
    %886 = vmatpush1.msra.mxu0 %v885
    %887 = vmatprep.subr.mxu0 0.0
    %v888 = vand.u32 %v594, 4294901760
    %889 = vmatpush1.msra.mxu0 %v888
    %890 = vmatprep.subr.mxu0 0.0
    %v891 = vand.u32 %v593, 4294901760
    %892 = vmatpush1.msra.mxu0 %v891
    %893 = vmatprep.subr.mxu0 0.0
    %894 = vmatpush2.msra.mxu0 0.0
    %895 = vmatprep.subr.mxu0 0.0
    %896 = vmatpush2.msra.mxu0 0.0
    %897 = vmatprep.subr.mxu0 0.0
    %898 = vmatpush2.msra.mxu0 0.0
    %899 = vmatprep.subr.mxu0 0.0
    %900 = vmatpush2.msra.mxu0 0.0
    %901 = vmatprep.subr.mxu0 0.0
    %902 = vmatpush2.msra.mxu0 0.0
    %903 = vmatprep.subr.mxu0 0.0
    %904 = vmatpush2.msra.mxu0 0.0
    %905 = vmatprep.subr.mxu0 0.0
    %906 = vmatpush2.msra.mxu0 0.0
    %907 = vmatprep.subr.mxu0 0.0
    %908 = vmatpush2.msra.mxu0 0.0
    %909 = vmatprep.subr.mxu0 0.0
    %910 = vmatpush2.msra.mxu0 0.0
    %911 = vmatprep.subr.mxu0 0.0
    %912 = vmatpush2.msra.mxu0 0.0
    %913 = vmatprep.subr.mxu0 0.0
    %914 = vmatpush2.msra.mxu0 0.0
    %915 = vmatprep.subr.mxu0 0.0
    %916 = vmatpush2.msra.mxu0 0.0
    %917 = vmatprep.subr.mxu0 0.0
    %918 = vmatpush2.msra.mxu0 0.0
    %919 = vmatprep.subr.mxu0 0.0
    %920 = vmatpush2.msra.mxu0 0.0
    %921 = vmatprep.subr.mxu0 0.0
    %922 = vmatpush2.msra.mxu0 0.0
    %923 = vmatprep.subr.mxu0 0.0
    %924 = vmatpush2.msra.mxu0 0.0
    %925 = vmatprep.mubr.f32.mxu0 0.0
    %v926 = vand.u32 %v605, 4294901760
    %v927 = vsub.f32 %v605, %v926
    %v928 = vand.u32 %v927, 4294901760
    %929 = vmatmul.mubr.f32.gmra.mxu0 %v928
    %v930 = vpop.f32.mrf.mxu0
    %v931 = vadd.f32 %v854, %v930
    %v932 = vpop.f32.mrf.mxu0
    %933 = vdwg.mxu0
    %934 = vmatprep.subr.mxu0 0.0
    %935 = vmatpush1.msra.mxu0 0.0
    %936 = vmatprep.subr.mxu0 0.0
    %937 = vmatpush1.msra.mxu0 0.0
    %938 = vmatprep.subr.mxu0 0.0
    %939 = vmatpush1.msra.mxu0 0.0
    %940 = vmatprep.subr.mxu0 0.0
    %941 = vmatpush1.msra.mxu0 0.0
    %942 = vmatprep.subr.mxu0 0.0
    %943 = vmatpush1.msra.mxu0 0.0
    %944 = vmatprep.subr.mxu0 0.0
    %945 = vmatpush1.msra.mxu0 0.0
    %946 = vmatprep.subr.mxu0 0.0
    %947 = vmatpush1.msra.mxu0 0.0
    %948 = vmatprep.subr.mxu0 0.0
    %949 = vmatpush1.msra.mxu0 0.0
    %950 = vmatprep.subr.mxu0 0.0
    %951 = vmatpush1.msra.mxu0 0.0
    %952 = vmatprep.subr.mxu0 0.0
    %953 = vmatpush1.msra.mxu0 0.0
    %954 = vmatprep.subr.mxu0 0.0
    %955 = vmatpush1.msra.mxu0 0.0
    %956 = vmatprep.subr.mxu0 0.0
    %957 = vmatpush1.msra.mxu0 0.0
    %958 = vmatprep.subr.mxu0 0.0
    %v959 = vand.u32 %v596, 4294901760
    %v960 = vsub.f32 %v596, %v959
    %v961 = vand.u32 %v960, 4294901760
    %962 = vmatpush1.msra.mxu0 %v961
    %963 = vmatprep.subr.mxu0 0.0
    %v964 = vand.u32 %v595, 4294901760
    %v965 = vsub.f32 %v595, %v964
    %v966 = vand.u32 %v965, 4294901760
    %967 = vmatpush1.msra.mxu0 %v966
    %968 = vmatprep.subr.mxu0 0.0
    %v969 = vand.u32 %v594, 4294901760
    %v970 = vsub.f32 %v594, %v969
    %v971 = vand.u32 %v970, 4294901760
    %972 = vmatpush1.msra.mxu0 %v971
    %973 = vmatprep.subr.mxu0 0.0
    %v974 = vand.u32 %v593, 4294901760
    %v975 = vsub.f32 %v593, %v974
    %v976 = vand.u32 %v975, 4294901760
    %977 = vmatpush1.msra.mxu0 %v976
    %978 = vmatprep.subr.mxu0 0.0
    %979 = vmatpush2.msra.mxu0 0.0
    %980 = vmatprep.subr.mxu0 0.0
    %981 = vmatpush2.msra.mxu0 0.0
    %982 = vmatprep.subr.mxu0 0.0
    %983 = vmatpush2.msra.mxu0 0.0
    %984 = vmatprep.subr.mxu0 0.0
    %985 = vmatpush2.msra.mxu0 0.0
    %986 = vmatprep.subr.mxu0 0.0
    %987 = vmatpush2.msra.mxu0 0.0
    %988 = vmatprep.subr.mxu0 0.0
    %989 = vmatpush2.msra.mxu0 0.0
    %990 = vmatprep.subr.mxu0 0.0
    %991 = vmatpush2.msra.mxu0 0.0
    %992 = vmatprep.subr.mxu0 0.0
    %993 = vmatpush2.msra.mxu0 0.0
    %994 = vmatprep.subr.mxu0 0.0
    %995 = vmatpush2.msra.mxu0 0.0
    %996 = vmatprep.subr.mxu0 0.0
    %997 = vmatpush2.msra.mxu0 0.0
    %998 = vmatprep.subr.mxu0 0.0
    %999 = vmatpush2.msra.mxu0 0.0
    %1000 = vmatprep.subr.mxu0 0.0
    %1001 = vmatpush2.msra.mxu0 0.0
    %1002 = vmatprep.subr.mxu0 0.0
    %1003 = vmatpush2.msra.mxu0 0.0
    %1004 = vmatprep.subr.mxu0 0.0
    %1005 = vmatpush2.msra.mxu0 0.0
    %1006 = vmatprep.subr.mxu0 0.0
    %1007 = vmatpush2.msra.mxu0 0.0
    %1008 = vmatprep.subr.mxu0 0.0
    %1009 = vmatpush2.msra.mxu0 0.0
    %1010 = vmatprep.mubr.f32.mxu0 0.0
    %v1011 = vand.u32 %v605, 4294901760
    %1012 = vmatmul.mubr.f32.gmra.mxu0 %v1011
    %v1013 = vpop.f32.mrf.mxu0
    %v1014 = vadd.f32 %v931, %v1013
    %v1015 = vpop.f32.mrf.mxu0
    %1016 = vdwg.mxu0
    %1017 = vmatprep.subr.mxu0 0.0
    %1018 = vmatpush1.msra.mxu0 0.0
    %1019 = vmatprep.subr.mxu0 0.0
    %1020 = vmatpush1.msra.mxu0 0.0
    %1021 = vmatprep.subr.mxu0 0.0
    %1022 = vmatpush1.msra.mxu0 0.0
    %1023 = vmatprep.subr.mxu0 0.0
    %1024 = vmatpush1.msra.mxu0 0.0
    %1025 = vmatprep.subr.mxu0 0.0
    %1026 = vmatpush1.msra.mxu0 0.0
    %1027 = vmatprep.subr.mxu0 0.0
    %1028 = vmatpush1.msra.mxu0 0.0
    %1029 = vmatprep.subr.mxu0 0.0
    %1030 = vmatpush1.msra.mxu0 0.0
    %1031 = vmatprep.subr.mxu0 0.0
    %1032 = vmatpush1.msra.mxu0 0.0
    %1033 = vmatprep.subr.mxu0 0.0
    %1034 = vmatpush1.msra.mxu0 0.0
    %1035 = vmatprep.subr.mxu0 0.0
    %1036 = vmatpush1.msra.mxu0 0.0
    %1037 = vmatprep.subr.mxu0 0.0
    %1038 = vmatpush1.msra.mxu0 0.0
    %1039 = vmatprep.subr.mxu0 0.0
    %1040 = vmatpush1.msra.mxu0 0.0
    %1041 = vmatprep.subr.mxu0 0.0
    %v1042 = vand.u32 %v596, 4294901760
    %1043 = vmatpush1.msra.mxu0 %v1042
    %1044 = vmatprep.subr.mxu0 0.0
    %v1045 = vand.u32 %v595, 4294901760
    %1046 = vmatpush1.msra.mxu0 %v1045
    %1047 = vmatprep.subr.mxu0 0.0
    %v1048 = vand.u32 %v594, 4294901760
    %1049 = vmatpush1.msra.mxu0 %v1048
    %1050 = vmatprep.subr.mxu0 0.0
    %v1051 = vand.u32 %v593, 4294901760
    %1052 = vmatpush1.msra.mxu0 %v1051
    %1053 = vmatprep.subr.mxu0 0.0
    %1054 = vmatpush2.msra.mxu0 0.0
    %1055 = vmatprep.subr.mxu0 0.0
    %1056 = vmatpush2.msra.mxu0 0.0
    %1057 = vmatprep.subr.mxu0 0.0
    %1058 = vmatpush2.msra.mxu0 0.0
    %1059 = vmatprep.subr.mxu0 0.0
    %1060 = vmatpush2.msra.mxu0 0.0
    %1061 = vmatprep.subr.mxu0 0.0
    %1062 = vmatpush2.msra.mxu0 0.0
    %1063 = vmatprep.subr.mxu0 0.0
    %1064 = vmatpush2.msra.mxu0 0.0
    %1065 = vmatprep.subr.mxu0 0.0
    %1066 = vmatpush2.msra.mxu0 0.0
    %1067 = vmatprep.subr.mxu0 0.0
    %1068 = vmatpush2.msra.mxu0 0.0
    %1069 = vmatprep.subr.mxu0 0.0
    %1070 = vmatpush2.msra.mxu0 0.0
    %1071 = vmatprep.subr.mxu0 0.0
    %1072 = vmatpush2.msra.mxu0 0.0
    %1073 = vmatprep.subr.mxu0 0.0
    %1074 = vmatpush2.msra.mxu0 0.0
    %1075 = vmatprep.subr.mxu0 0.0
    %1076 = vmatpush2.msra.mxu0 0.0
    %1077 = vmatprep.subr.mxu0 0.0
    %1078 = vmatpush2.msra.mxu0 0.0
    %1079 = vmatprep.subr.mxu0 0.0
    %1080 = vmatpush2.msra.mxu0 0.0
    %1081 = vmatprep.subr.mxu0 0.0
    %1082 = vmatpush2.msra.mxu0 0.0
    %1083 = vmatprep.subr.mxu0 0.0
    %1084 = vmatpush2.msra.mxu0 0.0
    %1085 = vmatprep.mubr.f32.mxu0 0.0
    %v1086 = vand.u32 %v605, 4294901760
    %1087 = vmatmul.mubr.f32.gmra.mxu0 %v1086
    %v1088 = vpop.f32.mrf.mxu0
    %v1089 = vadd.f32 %v1014, %v1088
    %v1090 = vpop.f32.mrf.mxu0
    %1091 = vdwg.mxu0
    %vm1092 = vcmp.ge.f32.partialorder %v1089, 0.0
    %v1093 = vmul.f32 %v1089, 0.01
    %v1094 = vsel %vm1092, %v1089, %v1093
    %s1095 = scalar_lea.vmem [#allocation8], 32
    %v1096 = vld [vmem:[%s1095] sm:$0xff]
    %v1097 = vld [vmem:[%s1095 + $0x8] sm:$0xff]
    %v1098 = vld [vmem:[%s1095 + $0x10] sm:$0xff]
    %v1099 = vld [vmem:[%s1095 + $0x18] sm:$0xff]
    %s1100 = scalar_lea.vmem %s4, 1
    %v1101 = vld [vmem:[%s1100] sm:$0x1]
    %v1103 = vlaneseq
    %v1104 = vshrl.u32 %v1103, 7
    %v1105 = vsub.s32 0, %v1104
    %v1106 = vrot.slane %v1101, %v1105
    %v1109 = vsel %vm101, %v1094, 0
    %1111 = vmatprep.subr.mxu0 0.0
    %1112 = vmatpush1.msra.mxu0 0.0
    %1113 = vmatprep.subr.mxu0 0.0
    %1114 = vmatpush1.msra.mxu0 0.0
    %1115 = vmatprep.subr.mxu0 0.0
    %1116 = vmatpush1.msra.mxu0 0.0
    %1117 = vmatprep.subr.mxu0 0.0
    %1118 = vmatpush1.msra.mxu0 0.0
    %1119 = vmatprep.subr.mxu0 0.0
    %1120 = vmatpush1.msra.mxu0 0.0
    %1121 = vmatprep.subr.mxu0 0.0
    %1122 = vmatpush1.msra.mxu0 0.0
    %1123 = vmatprep.subr.mxu0 0.0
    %1124 = vmatpush1.msra.mxu0 0.0
    %1125 = vmatprep.subr.mxu0 0.0
    %1126 = vmatpush1.msra.mxu0 0.0
    %1127 = vmatprep.subr.mxu0 0.0
    %1128 = vmatpush1.msra.mxu0 0.0
    %1129 = vmatprep.subr.mxu0 0.0
    %1130 = vmatpush1.msra.mxu0 0.0
    %1131 = vmatprep.subr.mxu0 0.0
    %1132 = vmatpush1.msra.mxu0 0.0
    %1133 = vmatprep.subr.mxu0 0.0
    %1134 = vmatpush1.msra.mxu0 0.0
    %1135 = vmatprep.subr.mxu0 0.0
    %v1136 = vand.u32 %v1099, 4294901760
    %1137 = vmatpush1.msra.mxu0 %v1136
    %1138 = vmatprep.subr.mxu0 0.0
    %v1139 = vand.u32 %v1098, 4294901760
    %1140 = vmatpush1.msra.mxu0 %v1139
    %1141 = vmatprep.subr.mxu0 0.0
    %v1142 = vand.u32 %v1097, 4294901760
    %1143 = vmatpush1.msra.mxu0 %v1142
    %1144 = vmatprep.subr.mxu0 0.0
    %v1145 = vand.u32 %v1096, 4294901760
    %1146 = vmatpush1.msra.mxu0 %v1145
    %1147 = vmatprep.subr.mxu0 0.0
    %1148 = vmatpush2.msra.mxu0 0.0
    %1149 = vmatprep.subr.mxu0 0.0
    %1150 = vmatpush2.msra.mxu0 0.0
    %1151 = vmatprep.subr.mxu0 0.0
    %1152 = vmatpush2.msra.mxu0 0.0
    %1153 = vmatprep.subr.mxu0 0.0
    %1154 = vmatpush2.msra.mxu0 0.0
    %1155 = vmatprep.subr.mxu0 0.0
    %1156 = vmatpush2.msra.mxu0 0.0
    %1157 = vmatprep.subr.mxu0 0.0
    %1158 = vmatpush2.msra.mxu0 0.0
    %1159 = vmatprep.subr.mxu0 0.0
    %1160 = vmatpush2.msra.mxu0 0.0
    %1161 = vmatprep.subr.mxu0 0.0
    %1162 = vmatpush2.msra.mxu0 0.0
    %1163 = vmatprep.subr.mxu0 0.0
    %1164 = vmatpush2.msra.mxu0 0.0
    %1165 = vmatprep.subr.mxu0 0.0
    %1166 = vmatpush2.msra.mxu0 0.0
    %1167 = vmatprep.subr.mxu0 0.0
    %1168 = vmatpush2.msra.mxu0 0.0
    %1169 = vmatprep.subr.mxu0 0.0
    %1170 = vmatpush2.msra.mxu0 0.0
    %1171 = vmatprep.subr.mxu0 0.0
    %1172 = vmatpush2.msra.mxu0 0.0
    %1173 = vmatprep.subr.mxu0 0.0
    %1174 = vmatpush2.msra.mxu0 0.0
    %1175 = vmatprep.subr.mxu0 0.0
    %1176 = vmatpush2.msra.mxu0 0.0
    %1177 = vmatprep.subr.mxu0 0.0
    %1178 = vmatpush2.msra.mxu0 0.0
    %1179 = vmatprep.mubr.f32.mxu0 0.0
    %v1180 = vand.u32 %v1109, 4294901760
    %v1181 = vsub.f32 %v1109, %v1180
    %v1182 = vand.u32 %v1181, 4294901760
    %v1183 = vsub.f32 %v1181, %v1182
    %v1184 = vand.u32 %v1183, 4294901760
    %1185 = vmatmul.mubr.f32.gmra.mxu0 %v1184
    %v1186 = vpop.f32.mrf.mxu0
    %v1187 = vadd.f32 %v1106, %v1186
    %v1188 = vpop.f32.mrf.mxu0
    %1189 = vdwg.mxu0
    %1190 = vmatprep.subr.mxu0 0.0
    %1191 = vmatpush1.msra.mxu0 0.0
    %1192 = vmatprep.subr.mxu0 0.0
    %1193 = vmatpush1.msra.mxu0 0.0
    %1194 = vmatprep.subr.mxu0 0.0
    %1195 = vmatpush1.msra.mxu0 0.0
    %1196 = vmatprep.subr.mxu0 0.0
    %1197 = vmatpush1.msra.mxu0 0.0
    %1198 = vmatprep.subr.mxu0 0.0
    %1199 = vmatpush1.msra.mxu0 0.0
    %1200 = vmatprep.subr.mxu0 0.0
    %1201 = vmatpush1.msra.mxu0 0.0
    %1202 = vmatprep.subr.mxu0 0.0
    %1203 = vmatpush1.msra.mxu0 0.0
    %1204 = vmatprep.subr.mxu0 0.0
    %1205 = vmatpush1.msra.mxu0 0.0
    %1206 = vmatprep.subr.mxu0 0.0
    %1207 = vmatpush1.msra.mxu0 0.0
    %1208 = vmatprep.subr.mxu0 0.0
    %1209 = vmatpush1.msra.mxu0 0.0
    %1210 = vmatprep.subr.mxu0 0.0
    %1211 = vmatpush1.msra.mxu0 0.0
    %1212 = vmatprep.subr.mxu0 0.0
    %1213 = vmatpush1.msra.mxu0 0.0
    %1214 = vmatprep.subr.mxu0 0.0
    %v1215 = vand.u32 %v1099, 4294901760
    %v1216 = vsub.f32 %v1099, %v1215
    %v1217 = vand.u32 %v1216, 4294901760
    %v1218 = vsub.f32 %v1216, %v1217
    %v1219 = vand.u32 %v1218, 4294901760
    %1220 = vmatpush1.msra.mxu0 %v1219
    %1221 = vmatprep.subr.mxu0 0.0
    %v1222 = vand.u32 %v1098, 4294901760
    %v1223 = vsub.f32 %v1098, %v1222
    %v1224 = vand.u32 %v1223, 4294901760
    %v1225 = vsub.f32 %v1223, %v1224
    %v1226 = vand.u32 %v1225, 4294901760
    %1227 = vmatpush1.msra.mxu0 %v1226
    %1228 = vmatprep.subr.mxu0 0.0
    %v1229 = vand.u32 %v1097, 4294901760
    %v1230 = vsub.f32 %v1097, %v1229
    %v1231 = vand.u32 %v1230, 4294901760
    %v1232 = vsub.f32 %v1230, %v1231
    %v1233 = vand.u32 %v1232, 4294901760
    %1234 = vmatpush1.msra.mxu0 %v1233
    %1235 = vmatprep.subr.mxu0 0.0
    %v1236 = vand.u32 %v1096, 4294901760
    %v1237 = vsub.f32 %v1096, %v1236
    %v1238 = vand.u32 %v1237, 4294901760
    %v1239 = vsub.f32 %v1237, %v1238
    %v1240 = vand.u32 %v1239, 4294901760
    %1241 = vmatpush1.msra.mxu0 %v1240
    %1242 = vmatprep.subr.mxu0 0.0
    %1243 = vmatpush2.msra.mxu0 0.0
    %1244 = vmatprep.subr.mxu0 0.0
    %1245 = vmatpush2.msra.mxu0 0.0
    %1246 = vmatprep.subr.mxu0 0.0
    %1247 = vmatpush2.msra.mxu0 0.0
    %1248 = vmatprep.subr.mxu0 0.0
    %1249 = vmatpush2.msra.mxu0 0.0
    %1250 = vmatprep.subr.mxu0 0.0
    %1251 = vmatpush2.msra.mxu0 0.0
    %1252 = vmatprep.subr.mxu0 0.0
    %1253 = vmatpush2.msra.mxu0 0.0
    %1254 = vmatprep.subr.mxu0 0.0
    %1255 = vmatpush2.msra.mxu0 0.0
    %1256 = vmatprep.subr.mxu0 0.0
    %1257 = vmatpush2.msra.mxu0 0.0
    %1258 = vmatprep.subr.mxu0 0.0
    %1259 = vmatpush2.msra.mxu0 0.0
    %1260 = vmatprep.subr.mxu0 0.0
    %1261 = vmatpush2.msra.mxu0 0.0
    %1262 = vmatprep.subr.mxu0 0.0
    %1263 = vmatpush2.msra.mxu0 0.0
    %1264 = vmatprep.subr.mxu0 0.0
    %1265 = vmatpush2.msra.mxu0 0.0
    %1266 = vmatprep.subr.mxu0 0.0
    %1267 = vmatpush2.msra.mxu0 0.0
    %1268 = vmatprep.subr.mxu0 0.0
    %1269 = vmatpush2.msra.mxu0 0.0
    %1270 = vmatprep.subr.mxu0 0.0
    %1271 = vmatpush2.msra.mxu0 0.0
    %1272 = vmatprep.subr.mxu0 0.0
    %1273 = vmatpush2.msra.mxu0 0.0
    %1274 = vmatprep.mubr.f32.mxu0 0.0
    %v1275 = vand.u32 %v1109, 4294901760
    %1276 = vmatmul.mubr.f32.gmra.mxu0 %v1275
    %v1277 = vpop.f32.mrf.mxu0
    %v1278 = vadd.f32 %v1187, %v1277
    %v1279 = vpop.f32.mrf.mxu0
    %1280 = vdwg.mxu0
    %1281 = vmatprep.subr.mxu0 0.0
    %1282 = vmatpush1.msra.mxu0 0.0
    %1283 = vmatprep.subr.mxu0 0.0
    %1284 = vmatpush1.msra.mxu0 0.0
    %1285 = vmatprep.subr.mxu0 0.0
    %1286 = vmatpush1.msra.mxu0 0.0
    %1287 = vmatprep.subr.mxu0 0.0
    %1288 = vmatpush1.msra.mxu0 0.0
    %1289 = vmatprep.subr.mxu0 0.0
    %1290 = vmatpush1.msra.mxu0 0.0
    %1291 = vmatprep.subr.mxu0 0.0
    %1292 = vmatpush1.msra.mxu0 0.0
    %1293 = vmatprep.subr.mxu0 0.0
    %1294 = vmatpush1.msra.mxu0 0.0
    %1295 = vmatprep.subr.mxu0 0.0
    %1296 = vmatpush1.msra.mxu0 0.0
    %1297 = vmatprep.subr.mxu0 0.0
    %1298 = vmatpush1.msra.mxu0 0.0
    %1299 = vmatprep.subr.mxu0 0.0
    %1300 = vmatpush1.msra.mxu0 0.0
    %1301 = vmatprep.subr.mxu0 0.0
    %1302 = vmatpush1.msra.mxu0 0.0
    %1303 = vmatprep.subr.mxu0 0.0
    %1304 = vmatpush1.msra.mxu0 0.0
    %1305 = vmatprep.subr.mxu0 0.0
    %v1306 = vand.u32 %v1099, 4294901760
    %v1307 = vsub.f32 %v1099, %v1306
    %1308 = vmatpush1.msra.mxu0 %v1307
    %1309 = vmatprep.subr.mxu0 0.0
    %v1310 = vand.u32 %v1098, 4294901760
    %v1311 = vsub.f32 %v1098, %v1310
    %1312 = vmatpush1.msra.mxu0 %v1311
    %1313 = vmatprep.subr.mxu0 0.0
    %v1314 = vand.u32 %v1097, 4294901760
    %v1315 = vsub.f32 %v1097, %v1314
    %1316 = vmatpush1.msra.mxu0 %v1315
    %1317 = vmatprep.subr.mxu0 0.0
    %v1318 = vand.u32 %v1096, 4294901760
    %v1319 = vsub.f32 %v1096, %v1318
    %1320 = vmatpush1.msra.mxu0 %v1319
    %1321 = vmatprep.subr.mxu0 0.0
    %1322 = vmatpush2.msra.mxu0 0.0
    %1323 = vmatprep.subr.mxu0 0.0
    %1324 = vmatpush2.msra.mxu0 0.0
    %1325 = vmatprep.subr.mxu0 0.0
    %1326 = vmatpush2.msra.mxu0 0.0
    %1327 = vmatprep.subr.mxu0 0.0
    %1328 = vmatpush2.msra.mxu0 0.0
    %1329 = vmatprep.subr.mxu0 0.0
    %1330 = vmatpush2.msra.mxu0 0.0
    %1331 = vmatprep.subr.mxu0 0.0
    %1332 = vmatpush2.msra.mxu0 0.0
    %1333 = vmatprep.subr.mxu0 0.0
    %1334 = vmatpush2.msra.mxu0 0.0
    %1335 = vmatprep.subr.mxu0 0.0
    %1336 = vmatpush2.msra.mxu0 0.0
    %1337 = vmatprep.subr.mxu0 0.0
    %1338 = vmatpush2.msra.mxu0 0.0
    %1339 = vmatprep.subr.mxu0 0.0
    %1340 = vmatpush2.msra.mxu0 0.0
    %1341 = vmatprep.subr.mxu0 0.0
    %1342 = vmatpush2.msra.mxu0 0.0
    %1343 = vmatprep.subr.mxu0 0.0
    %1344 = vmatpush2.msra.mxu0 0.0
    %1345 = vmatprep.subr.mxu0 0.0
    %1346 = vmatpush2.msra.mxu0 0.0
    %1347 = vmatprep.subr.mxu0 0.0
    %1348 = vmatpush2.msra.mxu0 0.0
    %1349 = vmatprep.subr.mxu0 0.0
    %1350 = vmatpush2.msra.mxu0 0.0
    %1351 = vmatprep.subr.mxu0 0.0
    %1352 = vmatpush2.msra.mxu0 0.0
    %1353 = vmatprep.mubr.f32.mxu0 0.0
    %v1354 = vand.u32 %v1109, 4294901760
    %v1355 = vsub.f32 %v1109, %v1354
    %1356 = vmatmul.mubr.f32.gmra.mxu0 %v1355
    %v1357 = vpop.f32.mrf.mxu0
    %v1358 = vadd.f32 %v1278, %v1357
    %v1359 = vpop.f32.mrf.mxu0
    %1360 = vdwg.mxu0
    %1361 = vmatprep.subr.mxu0 0.0
    %1362 = vmatpush1.msra.mxu0 0.0
    %1363 = vmatprep.subr.mxu0 0.0
    %1364 = vmatpush1.msra.mxu0 0.0
    %1365 = vmatprep.subr.mxu0 0.0
    %1366 = vmatpush1.msra.mxu0 0.0
    %1367 = vmatprep.subr.mxu0 0.0
    %1368 = vmatpush1.msra.mxu0 0.0
    %1369 = vmatprep.subr.mxu0 0.0
    %1370 = vmatpush1.msra.mxu0 0.0
    %1371 = vmatprep.subr.mxu0 0.0
    %1372 = vmatpush1.msra.mxu0 0.0
    %1373 = vmatprep.subr.mxu0 0.0
    %1374 = vmatpush1.msra.mxu0 0.0
    %1375 = vmatprep.subr.mxu0 0.0
    %1376 = vmatpush1.msra.mxu0 0.0
    %1377 = vmatprep.subr.mxu0 0.0
    %1378 = vmatpush1.msra.mxu0 0.0
    %1379 = vmatprep.subr.mxu0 0.0
    %1380 = vmatpush1.msra.mxu0 0.0
    %1381 = vmatprep.subr.mxu0 0.0
    %1382 = vmatpush1.msra.mxu0 0.0
    %1383 = vmatprep.subr.mxu0 0.0
    %1384 = vmatpush1.msra.mxu0 0.0
    %1385 = vmatprep.subr.mxu0 0.0
    %v1386 = vand.u32 %v1099, 4294901760
    %1387 = vmatpush1.msra.mxu0 %v1386
    %1388 = vmatprep.subr.mxu0 0.0
    %v1389 = vand.u32 %v1098, 4294901760
    %1390 = vmatpush1.msra.mxu0 %v1389
    %1391 = vmatprep.subr.mxu0 0.0
    %v1392 = vand.u32 %v1097, 4294901760
    %1393 = vmatpush1.msra.mxu0 %v1392
    %1394 = vmatprep.subr.mxu0 0.0
    %v1395 = vand.u32 %v1096, 4294901760
    %1396 = vmatpush1.msra.mxu0 %v1395
    %1397 = vmatprep.subr.mxu0 0.0
    %1398 = vmatpush2.msra.mxu0 0.0
    %1399 = vmatprep.subr.mxu0 0.0
    %1400 = vmatpush2.msra.mxu0 0.0
    %1401 = vmatprep.subr.mxu0 0.0
    %1402 = vmatpush2.msra.mxu0 0.0
    %1403 = vmatprep.subr.mxu0 0.0
    %1404 = vmatpush2.msra.mxu0 0.0
    %1405 = vmatprep.subr.mxu0 0.0
    %1406 = vmatpush2.msra.mxu0 0.0
    %1407 = vmatprep.subr.mxu0 0.0
    %1408 = vmatpush2.msra.mxu0 0.0
    %1409 = vmatprep.subr.mxu0 0.0
    %1410 = vmatpush2.msra.mxu0 0.0
    %1411 = vmatprep.subr.mxu0 0.0
    %1412 = vmatpush2.msra.mxu0 0.0
    %1413 = vmatprep.subr.mxu0 0.0
    %1414 = vmatpush2.msra.mxu0 0.0
    %1415 = vmatprep.subr.mxu0 0.0
    %1416 = vmatpush2.msra.mxu0 0.0
    %1417 = vmatprep.subr.mxu0 0.0
    %1418 = vmatpush2.msra.mxu0 0.0
    %1419 = vmatprep.subr.mxu0 0.0
    %1420 = vmatpush2.msra.mxu0 0.0
    %1421 = vmatprep.subr.mxu0 0.0
    %1422 = vmatpush2.msra.mxu0 0.0
    %1423 = vmatprep.subr.mxu0 0.0
    %1424 = vmatpush2.msra.mxu0 0.0
    %1425 = vmatprep.subr.mxu0 0.0
    %1426 = vmatpush2.msra.mxu0 0.0
    %1427 = vmatprep.subr.mxu0 0.0
    %1428 = vmatpush2.msra.mxu0 0.0
    %1429 = vmatprep.mubr.f32.mxu0 0.0
    %v1430 = vand.u32 %v1109, 4294901760
    %v1431 = vsub.f32 %v1109, %v1430
    %v1432 = vand.u32 %v1431, 4294901760
    %1433 = vmatmul.mubr.f32.gmra.mxu0 %v1432
    %v1434 = vpop.f32.mrf.mxu0
    %v1435 = vadd.f32 %v1358, %v1434
    %v1436 = vpop.f32.mrf.mxu0
    %1437 = vdwg.mxu0
    %1438 = vmatprep.subr.mxu0 0.0
    %1439 = vmatpush1.msra.mxu0 0.0
    %1440 = vmatprep.subr.mxu0 0.0
    %1441 = vmatpush1.msra.mxu0 0.0
    %1442 = vmatprep.subr.mxu0 0.0
    %1443 = vmatpush1.msra.mxu0 0.0
    %1444 = vmatprep.subr.mxu0 0.0
    %1445 = vmatpush1.msra.mxu0 0.0
    %1446 = vmatprep.subr.mxu0 0.0
    %1447 = vmatpush1.msra.mxu0 0.0
    %1448 = vmatprep.subr.mxu0 0.0
    %1449 = vmatpush1.msra.mxu0 0.0
    %1450 = vmatprep.subr.mxu0 0.0
    %1451 = vmatpush1.msra.mxu0 0.0
    %1452 = vmatprep.subr.mxu0 0.0
    %1453 = vmatpush1.msra.mxu0 0.0
    %1454 = vmatprep.subr.mxu0 0.0
    %1455 = vmatpush1.msra.mxu0 0.0
    %1456 = vmatprep.subr.mxu0 0.0
    %1457 = vmatpush1.msra.mxu0 0.0
    %1458 = vmatprep.subr.mxu0 0.0
    %1459 = vmatpush1.msra.mxu0 0.0
    %1460 = vmatprep.subr.mxu0 0.0
    %1461 = vmatpush1.msra.mxu0 0.0
    %1462 = vmatprep.subr.mxu0 0.0
    %v1463 = vand.u32 %v1099, 4294901760
    %v1464 = vsub.f32 %v1099, %v1463
    %v1465 = vand.u32 %v1464, 4294901760
    %1466 = vmatpush1.msra.mxu0 %v1465
    %1467 = vmatprep.subr.mxu0 0.0
    %v1468 = vand.u32 %v1098, 4294901760
    %v1469 = vsub.f32 %v1098, %v1468
    %v1470 = vand.u32 %v1469, 4294901760
    %1471 = vmatpush1.msra.mxu0 %v1470
    %1472 = vmatprep.subr.mxu0 0.0
    %v1473 = vand.u32 %v1097, 4294901760
    %v1474 = vsub.f32 %v1097, %v1473
    %v1475 = vand.u32 %v1474, 4294901760
    %1476 = vmatpush1.msra.mxu0 %v1475
    %1477 = vmatprep.subr.mxu0 0.0
    %v1478 = vand.u32 %v1096, 4294901760
    %v1479 = vsub.f32 %v1096, %v1478
    %v1480 = vand.u32 %v1479, 4294901760
    %1481 = vmatpush1.msra.mxu0 %v1480
    %1482 = vmatprep.subr.mxu0 0.0
    %1483 = vmatpush2.msra.mxu0 0.0
    %1484 = vmatprep.subr.mxu0 0.0
    %1485 = vmatpush2.msra.mxu0 0.0
    %1486 = vmatprep.subr.mxu0 0.0
    %1487 = vmatpush2.msra.mxu0 0.0
    %1488 = vmatprep.subr.mxu0 0.0
    %1489 = vmatpush2.msra.mxu0 0.0
    %1490 = vmatprep.subr.mxu0 0.0
    %1491 = vmatpush2.msra.mxu0 0.0
    %1492 = vmatprep.subr.mxu0 0.0
    %1493 = vmatpush2.msra.mxu0 0.0
    %1494 = vmatprep.subr.mxu0 0.0
    %1495 = vmatpush2.msra.mxu0 0.0
    %1496 = vmatprep.subr.mxu0 0.0
    %1497 = vmatpush2.msra.mxu0 0.0
    %1498 = vmatprep.subr.mxu0 0.0
    %1499 = vmatpush2.msra.mxu0 0.0
    %1500 = vmatprep.subr.mxu0 0.0
    %1501 = vmatpush2.msra.mxu0 0.0
    %1502 = vmatprep.subr.mxu0 0.0
    %1503 = vmatpush2.msra.mxu0 0.0
    %1504 = vmatprep.subr.mxu0 0.0
    %1505 = vmatpush2.msra.mxu0 0.0
    %1506 = vmatprep.subr.mxu0 0.0
    %1507 = vmatpush2.msra.mxu0 0.0
    %1508 = vmatprep.subr.mxu0 0.0
    %1509 = vmatpush2.msra.mxu0 0.0
    %1510 = vmatprep.subr.mxu0 0.0
    %1511 = vmatpush2.msra.mxu0 0.0
    %1512 = vmatprep.subr.mxu0 0.0
    %1513 = vmatpush2.msra.mxu0 0.0
    %1514 = vmatprep.mubr.f32.mxu0 0.0
    %v1515 = vand.u32 %v1109, 4294901760
    %1516 = vmatmul.mubr.f32.gmra.mxu0 %v1515
    %v1517 = vpop.f32.mrf.mxu0
    %v1518 = vadd.f32 %v1435, %v1517
    %v1519 = vpop.f32.mrf.mxu0
    %1520 = vdwg.mxu0
    %1521 = vmatprep.subr.mxu0 0.0
    %1522 = vmatpush1.msra.mxu0 0.0
    %1523 = vmatprep.subr.mxu0 0.0
    %1524 = vmatpush1.msra.mxu0 0.0
    %1525 = vmatprep.subr.mxu0 0.0
    %1526 = vmatpush1.msra.mxu0 0.0
    %1527 = vmatprep.subr.mxu0 0.0
    %1528 = vmatpush1.msra.mxu0 0.0
    %1529 = vmatprep.subr.mxu0 0.0
    %1530 = vmatpush1.msra.mxu0 0.0
    %1531 = vmatprep.subr.mxu0 0.0
    %1532 = vmatpush1.msra.mxu0 0.0
    %1533 = vmatprep.subr.mxu0 0.0
    %1534 = vmatpush1.msra.mxu0 0.0
    %1535 = vmatprep.subr.mxu0 0.0
    %1536 = vmatpush1.msra.mxu0 0.0
    %1537 = vmatprep.subr.mxu0 0.0
    %1538 = vmatpush1.msra.mxu0 0.0
    %1539 = vmatprep.subr.mxu0 0.0
    %1540 = vmatpush1.msra.mxu0 0.0
    %1541 = vmatprep.subr.mxu0 0.0
    %1542 = vmatpush1.msra.mxu0 0.0
    %1543 = vmatprep.subr.mxu0 0.0
    %1544 = vmatpush1.msra.mxu0 0.0
    %1545 = vmatprep.subr.mxu0 0.0
    %v1546 = vand.u32 %v1099, 4294901760
    %1547 = vmatpush1.msra.mxu0 %v1546
    %1548 = vmatprep.subr.mxu0 0.0
    %v1549 = vand.u32 %v1098, 4294901760
    %1550 = vmatpush1.msra.mxu0 %v1549
    %1551 = vmatprep.subr.mxu0 0.0
    %v1552 = vand.u32 %v1097, 4294901760
    %1553 = vmatpush1.msra.mxu0 %v1552
    %1554 = vmatprep.subr.mxu0 0.0
    %v1555 = vand.u32 %v1096, 4294901760
    %1556 = vmatpush1.msra.mxu0 %v1555
    %1557 = vmatprep.subr.mxu0 0.0
    %1558 = vmatpush2.msra.mxu0 0.0
    %1559 = vmatprep.subr.mxu0 0.0
    %1560 = vmatpush2.msra.mxu0 0.0
    %1561 = vmatprep.subr.mxu0 0.0
    %1562 = vmatpush2.msra.mxu0 0.0
    %1563 = vmatprep.subr.mxu0 0.0
    %1564 = vmatpush2.msra.mxu0 0.0
    %1565 = vmatprep.subr.mxu0 0.0
    %1566 = vmatpush2.msra.mxu0 0.0
    %1567 = vmatprep.subr.mxu0 0.0
    %1568 = vmatpush2.msra.mxu0 0.0
    %1569 = vmatprep.subr.mxu0 0.0
    %1570 = vmatpush2.msra.mxu0 0.0
    %1571 = vmatprep.subr.mxu0 0.0
    %1572 = vmatpush2.msra.mxu0 0.0
    %1573 = vmatprep.subr.mxu0 0.0
    %1574 = vmatpush2.msra.mxu0 0.0
    %1575 = vmatprep.subr.mxu0 0.0
    %1576 = vmatpush2.msra.mxu0 0.0
    %1577 = vmatprep.subr.mxu0 0.0
    %1578 = vmatpush2.msra.mxu0 0.0
    %1579 = vmatprep.subr.mxu0 0.0
    %1580 = vmatpush2.msra.mxu0 0.0
    %1581 = vmatprep.subr.mxu0 0.0
    %1582 = vmatpush2.msra.mxu0 0.0
    %1583 = vmatprep.subr.mxu0 0.0
    %1584 = vmatpush2.msra.mxu0 0.0
    %1585 = vmatprep.subr.mxu0 0.0
    %1586 = vmatpush2.msra.mxu0 0.0
    %1587 = vmatprep.subr.mxu0 0.0
    %1588 = vmatpush2.msra.mxu0 0.0
    %1589 = vmatprep.mubr.f32.mxu0 0.0
    %v1590 = vand.u32 %v1109, 4294901760
    %1591 = vmatmul.mubr.f32.gmra.mxu0 %v1590
    %v1592 = vpop.f32.mrf.mxu0
    %v1593 = vadd.f32 %v1518, %v1592
    %v1594 = vpop.f32.mrf.mxu0
    %1595 = vdwg.mxu0
    %vm1596 = vcmp.ge.f32.partialorder %v1593, 0.0
    %v1597 = vmul.f32 %v1593, 0.01
    %v1598 = vsel %vm1596, %v1593, %v1597
    %s1599 = scalar_lea.vmem [#allocation8], 64
    %v1600 = vld [vmem:[%s1599] sm:$0xff]
    %v1601 = vld [vmem:[%s1599 + $0x8] sm:$0xff]
    %v1602 = vld [vmem:[%s1599 + $0x10] sm:$0xff]
    %v1603 = vld [vmem:[%s1599 + $0x18] sm:$0xff]
    %s1604 = scalar_lea.vmem %s4, 2
    %v1605 = vld [vmem:[%s1604] sm:$0x1]
    %v1607 = vlaneseq
    %v1608 = vshrl.u32 %v1607, 7
    %v1609 = vsub.s32 0, %v1608
    %v1610 = vrot.slane %v1605, %v1609
    %v1613 = vsel %vm101, %v1598, 0
    %1615 = vmatprep.subr.mxu0 0.0
    %1616 = vmatpush1.msra.mxu0 0.0
    %1617 = vmatprep.subr.mxu0 0.0
    %1618 = vmatpush1.msra.mxu0 0.0
    %1619 = vmatprep.subr.mxu0 0.0
    %1620 = vmatpush1.msra.mxu0 0.0
    %1621 = vmatprep.subr.mxu0 0.0
    %1622 = vmatpush1.msra.mxu0 0.0
    %1623 = vmatprep.subr.mxu0 0.0
    %1624 = vmatpush1.msra.mxu0 0.0
    %1625 = vmatprep.subr.mxu0 0.0
    %1626 = vmatpush1.msra.mxu0 0.0
    %1627 = vmatprep.subr.mxu0 0.0
    %1628 = vmatpush1.msra.mxu0 0.0
    %1629 = vmatprep.subr.mxu0 0.0
    %1630 = vmatpush1.msra.mxu0 0.0
    %1631 = vmatprep.subr.mxu0 0.0
    %1632 = vmatpush1.msra.mxu0 0.0
    %1633 = vmatprep.subr.mxu0 0.0
    %1634 = vmatpush1.msra.mxu0 0.0
    %1635 = vmatprep.subr.mxu0 0.0
    %1636 = vmatpush1.msra.mxu0 0.0
    %1637 = vmatprep.subr.mxu0 0.0
    %1638 = vmatpush1.msra.mxu0 0.0
    %1639 = vmatprep.subr.mxu0 0.0
    %v1640 = vand.u32 %v1603, 4294901760
    %1641 = vmatpush1.msra.mxu0 %v1640
    %1642 = vmatprep.subr.mxu0 0.0
    %v1643 = vand.u32 %v1602, 4294901760
    %1644 = vmatpush1.msra.mxu0 %v1643
    %1645 = vmatprep.subr.mxu0 0.0
    %v1646 = vand.u32 %v1601, 4294901760
    %1647 = vmatpush1.msra.mxu0 %v1646
    %1648 = vmatprep.subr.mxu0 0.0
    %v1649 = vand.u32 %v1600, 4294901760
    %1650 = vmatpush1.msra.mxu0 %v1649
    %1651 = vmatprep.subr.mxu0 0.0
    %1652 = vmatpush2.msra.mxu0 0.0
    %1653 = vmatprep.subr.mxu0 0.0
    %1654 = vmatpush2.msra.mxu0 0.0
    %1655 = vmatprep.subr.mxu0 0.0
    %1656 = vmatpush2.msra.mxu0 0.0
    %1657 = vmatprep.subr.mxu0 0.0
    %1658 = vmatpush2.msra.mxu0 0.0
    %1659 = vmatprep.subr.mxu0 0.0
    %1660 = vmatpush2.msra.mxu0 0.0
    %1661 = vmatprep.subr.mxu0 0.0
    %1662 = vmatpush2.msra.mxu0 0.0
    %1663 = vmatprep.subr.mxu0 0.0
    %1664 = vmatpush2.msra.mxu0 0.0
    %1665 = vmatprep.subr.mxu0 0.0
    %1666 = vmatpush2.msra.mxu0 0.0
    %1667 = vmatprep.subr.mxu0 0.0
    %1668 = vmatpush2.msra.mxu0 0.0
    %1669 = vmatprep.subr.mxu0 0.0
    %1670 = vmatpush2.msra.mxu0 0.0
    %1671 = vmatprep.subr.mxu0 0.0
    %1672 = vmatpush2.msra.mxu0 0.0
    %1673 = vmatprep.subr.mxu0 0.0
    %1674 = vmatpush2.msra.mxu0 0.0
    %1675 = vmatprep.subr.mxu0 0.0
    %1676 = vmatpush2.msra.mxu0 0.0
    %1677 = vmatprep.subr.mxu0 0.0
    %1678 = vmatpush2.msra.mxu0 0.0
    %1679 = vmatprep.subr.mxu0 0.0
    %1680 = vmatpush2.msra.mxu0 0.0
    %1681 = vmatprep.subr.mxu0 0.0
    %1682 = vmatpush2.msra.mxu0 0.0
    %1683 = vmatprep.mubr.f32.mxu0 0.0
    %v1684 = vand.u32 %v1613, 4294901760
    %v1685 = vsub.f32 %v1613, %v1684
    %v1686 = vand.u32 %v1685, 4294901760
    %v1687 = vsub.f32 %v1685, %v1686
    %v1688 = vand.u32 %v1687, 4294901760
    %1689 = vmatmul.mubr.f32.gmra.mxu0 %v1688
    %v1690 = vpop.f32.mrf.mxu0
    %v1691 = vadd.f32 %v1610, %v1690
    %v1692 = vpop.f32.mrf.mxu0
    %1693 = vdwg.mxu0
    %1694 = vmatprep.subr.mxu0 0.0
    %1695 = vmatpush1.msra.mxu0 0.0
    %1696 = vmatprep.subr.mxu0 0.0
    %1697 = vmatpush1.msra.mxu0 0.0
    %1698 = vmatprep.subr.mxu0 0.0
    %1699 = vmatpush1.msra.mxu0 0.0
    %1700 = vmatprep.subr.mxu0 0.0
    %1701 = vmatpush1.msra.mxu0 0.0
    %1702 = vmatprep.subr.mxu0 0.0
    %1703 = vmatpush1.msra.mxu0 0.0
    %1704 = vmatprep.subr.mxu0 0.0
    %1705 = vmatpush1.msra.mxu0 0.0
    %1706 = vmatprep.subr.mxu0 0.0
    %1707 = vmatpush1.msra.mxu0 0.0
    %1708 = vmatprep.subr.mxu0 0.0
    %1709 = vmatpush1.msra.mxu0 0.0
    %1710 = vmatprep.subr.mxu0 0.0
    %1711 = vmatpush1.msra.mxu0 0.0
    %1712 = vmatprep.subr.mxu0 0.0
    %1713 = vmatpush1.msra.mxu0 0.0
    %1714 = vmatprep.subr.mxu0 0.0
    %1715 = vmatpush1.msra.mxu0 0.0
    %1716 = vmatprep.subr.mxu0 0.0
    %1717 = vmatpush1.msra.mxu0 0.0
    %1718 = vmatprep.subr.mxu0 0.0
    %v1719 = vand.u32 %v1603, 4294901760
    %v1720 = vsub.f32 %v1603, %v1719
    %v1721 = vand.u32 %v1720, 4294901760
    %v1722 = vsub.f32 %v1720, %v1721
    %v1723 = vand.u32 %v1722, 4294901760
    %1724 = vmatpush1.msra.mxu0 %v1723
    %1725 = vmatprep.subr.mxu0 0.0
    %v1726 = vand.u32 %v1602, 4294901760
    %v1727 = vsub.f32 %v1602, %v1726
    %v1728 = vand.u32 %v1727, 4294901760
    %v1729 = vsub.f32 %v1727, %v1728
    %v1730 = vand.u32 %v1729, 4294901760
    %1731 = vmatpush1.msra.mxu0 %v1730
    %1732 = vmatprep.subr.mxu0 0.0
    %v1733 = vand.u32 %v1601, 4294901760
    %v1734 = vsub.f32 %v1601, %v1733
    %v1735 = vand.u32 %v1734, 4294901760
    %v1736 = vsub.f32 %v1734, %v1735
    %v1737 = vand.u32 %v1736, 4294901760
    %1738 = vmatpush1.msra.mxu0 %v1737
    %1739 = vmatprep.subr.mxu0 0.0
    %v1740 = vand.u32 %v1600, 4294901760
    %v1741 = vsub.f32 %v1600, %v1740
    %v1742 = vand.u32 %v1741, 4294901760
    %v1743 = vsub.f32 %v1741, %v1742
    %v1744 = vand.u32 %v1743, 4294901760
    %1745 = vmatpush1.msra.mxu0 %v1744
    %1746 = vmatprep.subr.mxu0 0.0
    %1747 = vmatpush2.msra.mxu0 0.0
    %1748 = vmatprep.subr.mxu0 0.0
    %1749 = vmatpush2.msra.mxu0 0.0
    %1750 = vmatprep.subr.mxu0 0.0
    %1751 = vmatpush2.msra.mxu0 0.0
    %1752 = vmatprep.subr.mxu0 0.0
    %1753 = vmatpush2.msra.mxu0 0.0
    %1754 = vmatprep.subr.mxu0 0.0
    %1755 = vmatpush2.msra.mxu0 0.0
    %1756 = vmatprep.subr.mxu0 0.0
    %1757 = vmatpush2.msra.mxu0 0.0
    %1758 = vmatprep.subr.mxu0 0.0
    %1759 = vmatpush2.msra.mxu0 0.0
    %1760 = vmatprep.subr.mxu0 0.0
    %1761 = vmatpush2.msra.mxu0 0.0
    %1762 = vmatprep.subr.mxu0 0.0
    %1763 = vmatpush2.msra.mxu0 0.0
    %1764 = vmatprep.subr.mxu0 0.0
    %1765 = vmatpush2.msra.mxu0 0.0
    %1766 = vmatprep.subr.mxu0 0.0
    %1767 = vmatpush2.msra.mxu0 0.0
    %1768 = vmatprep.subr.mxu0 0.0
    %1769 = vmatpush2.msra.mxu0 0.0
    %1770 = vmatprep.subr.mxu0 0.0
    %1771 = vmatpush2.msra.mxu0 0.0
    %1772 = vmatprep.subr.mxu0 0.0
    %1773 = vmatpush2.msra.mxu0 0.0
    %1774 = vmatprep.subr.mxu0 0.0
    %1775 = vmatpush2.msra.mxu0 0.0
    %1776 = vmatprep.subr.mxu0 0.0
    %1777 = vmatpush2.msra.mxu0 0.0
    %1778 = vmatprep.mubr.f32.mxu0 0.0
    %v1779 = vand.u32 %v1613, 4294901760
    %1780 = vmatmul.mubr.f32.gmra.mxu0 %v1779
    %v1781 = vpop.f32.mrf.mxu0
    %v1782 = vadd.f32 %v1691, %v1781
    %v1783 = vpop.f32.mrf.mxu0
    %1784 = vdwg.mxu0
    %1785 = vmatprep.subr.mxu0 0.0
    %1786 = vmatpush1.msra.mxu0 0.0
    %1787 = vmatprep.subr.mxu0 0.0
    %1788 = vmatpush1.msra.mxu0 0.0
    %1789 = vmatprep.subr.mxu0 0.0
    %1790 = vmatpush1.msra.mxu0 0.0
    %1791 = vmatprep.subr.mxu0 0.0
    %1792 = vmatpush1.msra.mxu0 0.0
    %1793 = vmatprep.subr.mxu0 0.0
    %1794 = vmatpush1.msra.mxu0 0.0
    %1795 = vmatprep.subr.mxu0 0.0
    %1796 = vmatpush1.msra.mxu0 0.0
    %1797 = vmatprep.subr.mxu0 0.0
    %1798 = vmatpush1.msra.mxu0 0.0
    %1799 = vmatprep.subr.mxu0 0.0
    %1800 = vmatpush1.msra.mxu0 0.0
    %1801 = vmatprep.subr.mxu0 0.0
    %1802 = vmatpush1.msra.mxu0 0.0
    %1803 = vmatprep.subr.mxu0 0.0
    %1804 = vmatpush1.msra.mxu0 0.0
    %1805 = vmatprep.subr.mxu0 0.0
    %1806 = vmatpush1.msra.mxu0 0.0
    %1807 = vmatprep.subr.mxu0 0.0
    %1808 = vmatpush1.msra.mxu0 0.0
    %1809 = vmatprep.subr.mxu0 0.0
    %v1810 = vand.u32 %v1603, 4294901760
    %v1811 = vsub.f32 %v1603, %v1810
    %1812 = vmatpush1.msra.mxu0 %v1811
    %1813 = vmatprep.subr.mxu0 0.0
    %v1814 = vand.u32 %v1602, 4294901760
    %v1815 = vsub.f32 %v1602, %v1814
    %1816 = vmatpush1.msra.mxu0 %v1815
    %1817 = vmatprep.subr.mxu0 0.0
    %v1818 = vand.u32 %v1601, 4294901760
    %v1819 = vsub.f32 %v1601, %v1818
    %1820 = vmatpush1.msra.mxu0 %v1819
    %1821 = vmatprep.subr.mxu0 0.0
    %v1822 = vand.u32 %v1600, 4294901760
    %v1823 = vsub.f32 %v1600, %v1822
    %1824 = vmatpush1.msra.mxu0 %v1823
    %1825 = vmatprep.subr.mxu0 0.0
    %1826 = vmatpush2.msra.mxu0 0.0
    %1827 = vmatprep.subr.mxu0 0.0
    %1828 = vmatpush2.msra.mxu0 0.0
    %1829 = vmatprep.subr.mxu0 0.0
    %1830 = vmatpush2.msra.mxu0 0.0
    %1831 = vmatprep.subr.mxu0 0.0
    %1832 = vmatpush2.msra.mxu0 0.0
    %1833 = vmatprep.subr.mxu0 0.0
    %1834 = vmatpush2.msra.mxu0 0.0
    %1835 = vmatprep.subr.mxu0 0.0
    %1836 = vmatpush2.msra.mxu0 0.0
    %1837 = vmatprep.subr.mxu0 0.0
    %1838 = vmatpush2.msra.mxu0 0.0
    %1839 = vmatprep.subr.mxu0 0.0
    %1840 = vmatpush2.msra.mxu0 0.0
    %1841 = vmatprep.subr.mxu0 0.0
    %1842 = vmatpush2.msra.mxu0 0.0
    %1843 = vmatprep.subr.mxu0 0.0
    %1844 = vmatpush2.msra.mxu0 0.0
    %1845 = vmatprep.subr.mxu0 0.0
    %1846 = vmatpush2.msra.mxu0 0.0
    %1847 = vmatprep.subr.mxu0 0.0
    %1848 = vmatpush2.msra.mxu0 0.0
    %1849 = vmatprep.subr.mxu0 0.0
    %1850 = vmatpush2.msra.mxu0 0.0
    %1851 = vmatprep.subr.mxu0 0.0
    %1852 = vmatpush2.msra.mxu0 0.0
    %1853 = vmatprep.subr.mxu0 0.0
    %1854 = vmatpush2.msra.mxu0 0.0
    %1855 = vmatprep.subr.mxu0 0.0
    %1856 = vmatpush2.msra.mxu0 0.0
    %1857 = vmatprep.mubr.f32.mxu0 0.0
    %v1858 = vand.u32 %v1613, 4294901760
    %v1859 = vsub.f32 %v1613, %v1858
    %1860 = vmatmul.mubr.f32.gmra.mxu0 %v1859
    %v1861 = vpop.f32.mrf.mxu0
    %v1862 = vadd.f32 %v1782, %v1861
    %v1863 = vpop.f32.mrf.mxu0
    %1864 = vdwg.mxu0
    %1865 = vmatprep.subr.mxu0 0.0
    %1866 = vmatpush1.msra.mxu0 0.0
    %1867 = vmatprep.subr.mxu0 0.0
    %1868 = vmatpush1.msra.mxu0 0.0
    %1869 = vmatprep.subr.mxu0 0.0
    %1870 = vmatpush1.msra.mxu0 0.0
    %1871 = vmatprep.subr.mxu0 0.0
    %1872 = vmatpush1.msra.mxu0 0.0
    %1873 = vmatprep.subr.mxu0 0.0
    %1874 = vmatpush1.msra.mxu0 0.0
    %1875 = vmatprep.subr.mxu0 0.0
    %1876 = vmatpush1.msra.mxu0 0.0
    %1877 = vmatprep.subr.mxu0 0.0
    %1878 = vmatpush1.msra.mxu0 0.0
    %1879 = vmatprep.subr.mxu0 0.0
    %1880 = vmatpush1.msra.mxu0 0.0
    %1881 = vmatprep.subr.mxu0 0.0
    %1882 = vmatpush1.msra.mxu0 0.0
    %1883 = vmatprep.subr.mxu0 0.0
    %1884 = vmatpush1.msra.mxu0 0.0
    %1885 = vmatprep.subr.mxu0 0.0
    %1886 = vmatpush1.msra.mxu0 0.0
    %1887 = vmatprep.subr.mxu0 0.0
    %1888 = vmatpush1.msra.mxu0 0.0
    %1889 = vmatprep.subr.mxu0 0.0
    %v1890 = vand.u32 %v1603, 4294901760
    %1891 = vmatpush1.msra.mxu0 %v1890
    %1892 = vmatprep.subr.mxu0 0.0
    %v1893 = vand.u32 %v1602, 4294901760
    %1894 = vmatpush1.msra.mxu0 %v1893
    %1895 = vmatprep.subr.mxu0 0.0
    %v1896 = vand.u32 %v1601, 4294901760
    %1897 = vmatpush1.msra.mxu0 %v1896
    %1898 = vmatprep.subr.mxu0 0.0
    %v1899 = vand.u32 %v1600, 4294901760
    %1900 = vmatpush1.msra.mxu0 %v1899
    %1901 = vmatprep.subr.mxu0 0.0
    %1902 = vmatpush2.msra.mxu0 0.0
    %1903 = vmatprep.subr.mxu0 0.0
    %1904 = vmatpush2.msra.mxu0 0.0
    %1905 = vmatprep.subr.mxu0 0.0
    %1906 = vmatpush2.msra.mxu0 0.0
    %1907 = vmatprep.subr.mxu0 0.0
    %1908 = vmatpush2.msra.mxu0 0.0
    %1909 = vmatprep.subr.mxu0 0.0
    %1910 = vmatpush2.msra.mxu0 0.0
    %1911 = vmatprep.subr.mxu0 0.0
    %1912 = vmatpush2.msra.mxu0 0.0
    %1913 = vmatprep.subr.mxu0 0.0
    %1914 = vmatpush2.msra.mxu0 0.0
    %1915 = vmatprep.subr.mxu0 0.0
    %1916 = vmatpush2.msra.mxu0 0.0
    %1917 = vmatprep.subr.mxu0 0.0
    %1918 = vmatpush2.msra.mxu0 0.0
    %1919 = vmatprep.subr.mxu0 0.0
    %1920 = vmatpush2.msra.mxu0 0.0
    %1921 = vmatprep.subr.mxu0 0.0
    %1922 = vmatpush2.msra.mxu0 0.0
    %1923 = vmatprep.subr.mxu0 0.0
    %1924 = vmatpush2.msra.mxu0 0.0
    %1925 = vmatprep.subr.mxu0 0.0
    %1926 = vmatpush2.msra.mxu0 0.0
    %1927 = vmatprep.subr.mxu0 0.0
    %1928 = vmatpush2.msra.mxu0 0.0
    %1929 = vmatprep.subr.mxu0 0.0
    %1930 = vmatpush2.msra.mxu0 0.0
    %1931 = vmatprep.subr.mxu0 0.0
    %1932 = vmatpush2.msra.mxu0 0.0
    %1933 = vmatprep.mubr.f32.mxu0 0.0
    %v1934 = vand.u32 %v1613, 4294901760
    %v1935 = vsub.f32 %v1613, %v1934
    %v1936 = vand.u32 %v1935, 4294901760
    %1937 = vmatmul.mubr.f32.gmra.mxu0 %v1936
    %v1938 = vpop.f32.mrf.mxu0
    %v1939 = vadd.f32 %v1862, %v1938
    %v1940 = vpop.f32.mrf.mxu0
    %1941 = vdwg.mxu0
    %1942 = vmatprep.subr.mxu0 0.0
    %1943 = vmatpush1.msra.mxu0 0.0
    %1944 = vmatprep.subr.mxu0 0.0
    %1945 = vmatpush1.msra.mxu0 0.0
    %1946 = vmatprep.subr.mxu0 0.0
    %1947 = vmatpush1.msra.mxu0 0.0
    %1948 = vmatprep.subr.mxu0 0.0
    %1949 = vmatpush1.msra.mxu0 0.0
    %1950 = vmatprep.subr.mxu0 0.0
    %1951 = vmatpush1.msra.mxu0 0.0
    %1952 = vmatprep.subr.mxu0 0.0
    %1953 = vmatpush1.msra.mxu0 0.0
    %1954 = vmatprep.subr.mxu0 0.0
    %1955 = vmatpush1.msra.mxu0 0.0
    %1956 = vmatprep.subr.mxu0 0.0
    %1957 = vmatpush1.msra.mxu0 0.0
    %1958 = vmatprep.subr.mxu0 0.0
    %1959 = vmatpush1.msra.mxu0 0.0
    %1960 = vmatprep.subr.mxu0 0.0
    %1961 = vmatpush1.msra.mxu0 0.0
    %1962 = vmatprep.subr.mxu0 0.0
    %1963 = vmatpush1.msra.mxu0 0.0
    %1964 = vmatprep.subr.mxu0 0.0
    %1965 = vmatpush1.msra.mxu0 0.0
    %1966 = vmatprep.subr.mxu0 0.0
    %v1967 = vand.u32 %v1603, 4294901760
    %v1968 = vsub.f32 %v1603, %v1967
    %v1969 = vand.u32 %v1968, 4294901760
    %1970 = vmatpush1.msra.mxu0 %v1969
    %1971 = vmatprep.subr.mxu0 0.0
    %v1972 = vand.u32 %v1602, 4294901760
    %v1973 = vsub.f32 %v1602, %v1972
    %v1974 = vand.u32 %v1973, 4294901760
    %1975 = vmatpush1.msra.mxu0 %v1974
    %1976 = vmatprep.subr.mxu0 0.0
    %v1977 = vand.u32 %v1601, 4294901760
    %v1978 = vsub.f32 %v1601, %v1977
    %v1979 = vand.u32 %v1978, 4294901760
    %1980 = vmatpush1.msra.mxu0 %v1979
    %1981 = vmatprep.subr.mxu0 0.0
    %v1982 = vand.u32 %v1600, 4294901760
    %v1983 = vsub.f32 %v1600, %v1982
    %v1984 = vand.u32 %v1983, 4294901760
    %1985 = vmatpush1.msra.mxu0 %v1984
    %1986 = vmatprep.subr.mxu0 0.0
    %1987 = vmatpush2.msra.mxu0 0.0
    %1988 = vmatprep.subr.mxu0 0.0
    %1989 = vmatpush2.msra.mxu0 0.0
    %1990 = vmatprep.subr.mxu0 0.0
    %1991 = vmatpush2.msra.mxu0 0.0
    %1992 = vmatprep.subr.mxu0 0.0
    %1993 = vmatpush2.msra.mxu0 0.0
    %1994 = vmatprep.subr.mxu0 0.0
    %1995 = vmatpush2.msra.mxu0 0.0
    %1996 = vmatprep.subr.mxu0 0.0
    %1997 = vmatpush2.msra.mxu0 0.0
    %1998 = vmatprep.subr.mxu0 0.0
    %1999 = vmatpush2.msra.mxu0 0.0
    %2000 = vmatprep.subr.mxu0 0.0
    %2001 = vmatpush2.msra.mxu0 0.0
    %2002 = vmatprep.subr.mxu0 0.0
    %2003 = vmatpush2.msra.mxu0 0.0
    %2004 = vmatprep.subr.mxu0 0.0
    %2005 = vmatpush2.msra.mxu0 0.0
    %2006 = vmatprep.subr.mxu0 0.0
    %2007 = vmatpush2.msra.mxu0 0.0
    %2008 = vmatprep.subr.mxu0 0.0
    %2009 = vmatpush2.msra.mxu0 0.0
    %2010 = vmatprep.subr.mxu0 0.0
    %2011 = vmatpush2.msra.mxu0 0.0
    %2012 = vmatprep.subr.mxu0 0.0
    %2013 = vmatpush2.msra.mxu0 0.0
    %2014 = vmatprep.subr.mxu0 0.0
    %2015 = vmatpush2.msra.mxu0 0.0
    %2016 = vmatprep.subr.mxu0 0.0
    %2017 = vmatpush2.msra.mxu0 0.0
    %2018 = vmatprep.mubr.f32.mxu0 0.0
    %v2019 = vand.u32 %v1613, 4294901760
    %2020 = vmatmul.mubr.f32.gmra.mxu0 %v2019
    %v2021 = vpop.f32.mrf.mxu0
    %v2022 = vadd.f32 %v1939, %v2021
    %v2023 = vpop.f32.mrf.mxu0
    %2024 = vdwg.mxu0
    %2025 = vmatprep.subr.mxu0 0.0
    %2026 = vmatpush1.msra.mxu0 0.0
    %2027 = vmatprep.subr.mxu0 0.0
    %2028 = vmatpush1.msra.mxu0 0.0
    %2029 = vmatprep.subr.mxu0 0.0
    %2030 = vmatpush1.msra.mxu0 0.0
    %2031 = vmatprep.subr.mxu0 0.0
    %2032 = vmatpush1.msra.mxu0 0.0
    %2033 = vmatprep.subr.mxu0 0.0
    %2034 = vmatpush1.msra.mxu0 0.0
    %2035 = vmatprep.subr.mxu0 0.0
    %2036 = vmatpush1.msra.mxu0 0.0
    %2037 = vmatprep.subr.mxu0 0.0
    %2038 = vmatpush1.msra.mxu0 0.0
    %2039 = vmatprep.subr.mxu0 0.0
    %2040 = vmatpush1.msra.mxu0 0.0
    %2041 = vmatprep.subr.mxu0 0.0
    %2042 = vmatpush1.msra.mxu0 0.0
    %2043 = vmatprep.subr.mxu0 0.0
    %2044 = vmatpush1.msra.mxu0 0.0
    %2045 = vmatprep.subr.mxu0 0.0
    %2046 = vmatpush1.msra.mxu0 0.0
    %2047 = vmatprep.subr.mxu0 0.0
    %2048 = vmatpush1.msra.mxu0 0.0
    %2049 = vmatprep.subr.mxu0 0.0
    %v2050 = vand.u32 %v1603, 4294901760
    %2051 = vmatpush1.msra.mxu0 %v2050
    %2052 = vmatprep.subr.mxu0 0.0
    %v2053 = vand.u32 %v1602, 4294901760
    %2054 = vmatpush1.msra.mxu0 %v2053
    %2055 = vmatprep.subr.mxu0 0.0
    %v2056 = vand.u32 %v1601, 4294901760
    %2057 = vmatpush1.msra.mxu0 %v2056
    %2058 = vmatprep.subr.mxu0 0.0
    %v2059 = vand.u32 %v1600, 4294901760
    %2060 = vmatpush1.msra.mxu0 %v2059
    %2061 = vmatprep.subr.mxu0 0.0
    %2062 = vmatpush2.msra.mxu0 0.0
    %2063 = vmatprep.subr.mxu0 0.0
    %2064 = vmatpush2.msra.mxu0 0.0
    %2065 = vmatprep.subr.mxu0 0.0
    %2066 = vmatpush2.msra.mxu0 0.0
    %2067 = vmatprep.subr.mxu0 0.0
    %2068 = vmatpush2.msra.mxu0 0.0
    %2069 = vmatprep.subr.mxu0 0.0
    %2070 = vmatpush2.msra.mxu0 0.0
    %2071 = vmatprep.subr.mxu0 0.0
    %2072 = vmatpush2.msra.mxu0 0.0
    %2073 = vmatprep.subr.mxu0 0.0
    %2074 = vmatpush2.msra.mxu0 0.0
    %2075 = vmatprep.subr.mxu0 0.0
    %2076 = vmatpush2.msra.mxu0 0.0
    %2077 = vmatprep.subr.mxu0 0.0
    %2078 = vmatpush2.msra.mxu0 0.0
    %2079 = vmatprep.subr.mxu0 0.0
    %2080 = vmatpush2.msra.mxu0 0.0
    %2081 = vmatprep.subr.mxu0 0.0
    %2082 = vmatpush2.msra.mxu0 0.0
    %2083 = vmatprep.subr.mxu0 0.0
    %2084 = vmatpush2.msra.mxu0 0.0
    %2085 = vmatprep.subr.mxu0 0.0
    %2086 = vmatpush2.msra.mxu0 0.0
    %2087 = vmatprep.subr.mxu0 0.0
    %2088 = vmatpush2.msra.mxu0 0.0
    %2089 = vmatprep.subr.mxu0 0.0
    %2090 = vmatpush2.msra.mxu0 0.0
    %2091 = vmatprep.subr.mxu0 0.0
    %2092 = vmatpush2.msra.mxu0 0.0
    %2093 = vmatprep.mubr.f32.mxu0 0.0
    %v2094 = vand.u32 %v1613, 4294901760
    %2095 = vmatmul.mubr.f32.gmra.mxu0 %v2094
    %v2096 = vpop.f32.mrf.mxu0
    %v2097 = vadd.f32 %v2022, %v2096
    %v2098 = vpop.f32.mrf.mxu0
    %2099 = vdwg.mxu0
    %vm2100 = vcmp.ge.f32.partialorder %v2097, 0.0
    %v2101 = vmul.f32 %v2097, 0.01
    %v2102 = vsel %vm2100, %v2097, %v2101
    %s2103 = scalar_lea.vmem [#allocation8], 96
    %v2104 = vld [vmem:[%s2103] sm:$0xff]
    %v2105 = vld [vmem:[%s2103 + $0x8] sm:$0xff]
    %v2106 = vld [vmem:[%s2103 + $0x10] sm:$0xff]
    %v2107 = vld [vmem:[%s2103 + $0x18] sm:$0xff]
    %s2108 = scalar_lea.vmem %s4, 3
    %v2109 = vld [vmem:[%s2108] sm:$0x1]
    %v2111 = vlaneseq
    %v2112 = vshrl.u32 %v2111, 7
    %v2113 = vsub.s32 0, %v2112
    %v2114 = vrot.slane %v2109, %v2113
    %v2117 = vsel %vm101, %v2102, 0
    %2119 = vmatprep.subr.mxu0 0.0
    %2120 = vmatpush1.msra.mxu0 0.0
    %2121 = vmatprep.subr.mxu0 0.0
    %2122 = vmatpush1.msra.mxu0 0.0
    %2123 = vmatprep.subr.mxu0 0.0
    %2124 = vmatpush1.msra.mxu0 0.0
    %2125 = vmatprep.subr.mxu0 0.0
    %2126 = vmatpush1.msra.mxu0 0.0
    %2127 = vmatprep.subr.mxu0 0.0
    %2128 = vmatpush1.msra.mxu0 0.0
    %2129 = vmatprep.subr.mxu0 0.0
    %2130 = vmatpush1.msra.mxu0 0.0
    %2131 = vmatprep.subr.mxu0 0.0
    %2132 = vmatpush1.msra.mxu0 0.0
    %2133 = vmatprep.subr.mxu0 0.0
    %2134 = vmatpush1.msra.mxu0 0.0
    %2135 = vmatprep.subr.mxu0 0.0
    %2136 = vmatpush1.msra.mxu0 0.0
    %2137 = vmatprep.subr.mxu0 0.0
    %2138 = vmatpush1.msra.mxu0 0.0
    %2139 = vmatprep.subr.mxu0 0.0
    %2140 = vmatpush1.msra.mxu0 0.0
    %2141 = vmatprep.subr.mxu0 0.0
    %2142 = vmatpush1.msra.mxu0 0.0
    %2143 = vmatprep.subr.mxu0 0.0
    %v2144 = vand.u32 %v2107, 4294901760
    %2145 = vmatpush1.msra.mxu0 %v2144
    %2146 = vmatprep.subr.mxu0 0.0
    %v2147 = vand.u32 %v2106, 4294901760
    %2148 = vmatpush1.msra.mxu0 %v2147
    %2149 = vmatprep.subr.mxu0 0.0
    %v2150 = vand.u32 %v2105, 4294901760
    %2151 = vmatpush1.msra.mxu0 %v2150
    %2152 = vmatprep.subr.mxu0 0.0
    %v2153 = vand.u32 %v2104, 4294901760
    %2154 = vmatpush1.msra.mxu0 %v2153
    %2155 = vmatprep.subr.mxu0 0.0
    %2156 = vmatpush2.msra.mxu0 0.0
    %2157 = vmatprep.subr.mxu0 0.0
    %2158 = vmatpush2.msra.mxu0 0.0
    %2159 = vmatprep.subr.mxu0 0.0
    %2160 = vmatpush2.msra.mxu0 0.0
    %2161 = vmatprep.subr.mxu0 0.0
    %2162 = vmatpush2.msra.mxu0 0.0
    %2163 = vmatprep.subr.mxu0 0.0
    %2164 = vmatpush2.msra.mxu0 0.0
    %2165 = vmatprep.subr.mxu0 0.0
    %2166 = vmatpush2.msra.mxu0 0.0
    %2167 = vmatprep.subr.mxu0 0.0
    %2168 = vmatpush2.msra.mxu0 0.0
    %2169 = vmatprep.subr.mxu0 0.0
    %2170 = vmatpush2.msra.mxu0 0.0
    %2171 = vmatprep.subr.mxu0 0.0
    %2172 = vmatpush2.msra.mxu0 0.0
    %2173 = vmatprep.subr.mxu0 0.0
    %2174 = vmatpush2.msra.mxu0 0.0
    %2175 = vmatprep.subr.mxu0 0.0
    %2176 = vmatpush2.msra.mxu0 0.0
    %2177 = vmatprep.subr.mxu0 0.0
    %2178 = vmatpush2.msra.mxu0 0.0
    %2179 = vmatprep.subr.mxu0 0.0
    %2180 = vmatpush2.msra.mxu0 0.0
    %2181 = vmatprep.subr.mxu0 0.0
    %2182 = vmatpush2.msra.mxu0 0.0
    %2183 = vmatprep.subr.mxu0 0.0
    %2184 = vmatpush2.msra.mxu0 0.0
    %2185 = vmatprep.subr.mxu0 0.0
    %2186 = vmatpush2.msra.mxu0 0.0
    %2187 = vmatprep.mubr.f32.mxu0 0.0
    %v2188 = vand.u32 %v2117, 4294901760
    %v2189 = vsub.f32 %v2117, %v2188
    %v2190 = vand.u32 %v2189, 4294901760
    %v2191 = vsub.f32 %v2189, %v2190
    %v2192 = vand.u32 %v2191, 4294901760
    %2193 = vmatmul.mubr.f32.gmra.mxu0 %v2192
    %v2194 = vpop.f32.mrf.mxu0
    %v2195 = vadd.f32 %v2114, %v2194
    %v2196 = vpop.f32.mrf.mxu0
    %2197 = vdwg.mxu0
    %2198 = vmatprep.subr.mxu0 0.0
    %2199 = vmatpush1.msra.mxu0 0.0
    %2200 = vmatprep.subr.mxu0 0.0
    %2201 = vmatpush1.msra.mxu0 0.0
    %2202 = vmatprep.subr.mxu0 0.0
    %2203 = vmatpush1.msra.mxu0 0.0
    %2204 = vmatprep.subr.mxu0 0.0
    %2205 = vmatpush1.msra.mxu0 0.0
    %2206 = vmatprep.subr.mxu0 0.0
    %2207 = vmatpush1.msra.mxu0 0.0
    %2208 = vmatprep.subr.mxu0 0.0
    %2209 = vmatpush1.msra.mxu0 0.0
    %2210 = vmatprep.subr.mxu0 0.0
    %2211 = vmatpush1.msra.mxu0 0.0
    %2212 = vmatprep.subr.mxu0 0.0
    %2213 = vmatpush1.msra.mxu0 0.0
    %2214 = vmatprep.subr.mxu0 0.0
    %2215 = vmatpush1.msra.mxu0 0.0
    %2216 = vmatprep.subr.mxu0 0.0
    %2217 = vmatpush1.msra.mxu0 0.0
    %2218 = vmatprep.subr.mxu0 0.0
    %2219 = vmatpush1.msra.mxu0 0.0
    %2220 = vmatprep.subr.mxu0 0.0
    %2221 = vmatpush1.msra.mxu0 0.0
    %2222 = vmatprep.subr.mxu0 0.0
    %v2223 = vand.u32 %v2107, 4294901760
    %v2224 = vsub.f32 %v2107, %v2223
    %v2225 = vand.u32 %v2224, 4294901760
    %v2226 = vsub.f32 %v2224, %v2225
    %v2227 = vand.u32 %v2226, 4294901760
    %2228 = vmatpush1.msra.mxu0 %v2227
    %2229 = vmatprep.subr.mxu0 0.0
    %v2230 = vand.u32 %v2106, 4294901760
    %v2231 = vsub.f32 %v2106, %v2230
    %v2232 = vand.u32 %v2231, 4294901760
    %v2233 = vsub.f32 %v2231, %v2232
    %v2234 = vand.u32 %v2233, 4294901760
    %2235 = vmatpush1.msra.mxu0 %v2234
    %2236 = vmatprep.subr.mxu0 0.0
    %v2237 = vand.u32 %v2105, 4294901760
    %v2238 = vsub.f32 %v2105, %v2237
    %v2239 = vand.u32 %v2238, 4294901760
    %v2240 = vsub.f32 %v2238, %v2239
    %v2241 = vand.u32 %v2240, 4294901760
    %2242 = vmatpush1.msra.mxu0 %v2241
    %2243 = vmatprep.subr.mxu0 0.0
    %v2244 = vand.u32 %v2104, 4294901760
    %v2245 = vsub.f32 %v2104, %v2244
    %v2246 = vand.u32 %v2245, 4294901760
    %v2247 = vsub.f32 %v2245, %v2246
    %v2248 = vand.u32 %v2247, 4294901760
    %2249 = vmatpush1.msra.mxu0 %v2248
    %2250 = vmatprep.subr.mxu0 0.0
    %2251 = vmatpush2.msra.mxu0 0.0
    %2252 = vmatprep.subr.mxu0 0.0
    %2253 = vmatpush2.msra.mxu0 0.0
    %2254 = vmatprep.subr.mxu0 0.0
    %2255 = vmatpush2.msra.mxu0 0.0
    %2256 = vmatprep.subr.mxu0 0.0
    %2257 = vmatpush2.msra.mxu0 0.0
    %2258 = vmatprep.subr.mxu0 0.0
    %2259 = vmatpush2.msra.mxu0 0.0
    %2260 = vmatprep.subr.mxu0 0.0
    %2261 = vmatpush2.msra.mxu0 0.0
    %2262 = vmatprep.subr.mxu0 0.0
    %2263 = vmatpush2.msra.mxu0 0.0
    %2264 = vmatprep.subr.mxu0 0.0
    %2265 = vmatpush2.msra.mxu0 0.0
    %2266 = vmatprep.subr.mxu0 0.0
    %2267 = vmatpush2.msra.mxu0 0.0
    %2268 = vmatprep.subr.mxu0 0.0
    %2269 = vmatpush2.msra.mxu0 0.0
    %2270 = vmatprep.subr.mxu0 0.0
    %2271 = vmatpush2.msra.mxu0 0.0
    %2272 = vmatprep.subr.mxu0 0.0
    %2273 = vmatpush2.msra.mxu0 0.0
    %2274 = vmatprep.subr.mxu0 0.0
    %2275 = vmatpush2.msra.mxu0 0.0
    %2276 = vmatprep.subr.mxu0 0.0
    %2277 = vmatpush2.msra.mxu0 0.0
    %2278 = vmatprep.subr.mxu0 0.0
    %2279 = vmatpush2.msra.mxu0 0.0
    %2280 = vmatprep.subr.mxu0 0.0
    %2281 = vmatpush2.msra.mxu0 0.0
    %2282 = vmatprep.mubr.f32.mxu0 0.0
    %v2283 = vand.u32 %v2117, 4294901760
    %2284 = vmatmul.mubr.f32.gmra.mxu0 %v2283
    %v2285 = vpop.f32.mrf.mxu0
    %v2286 = vadd.f32 %v2195, %v2285
    %v2287 = vpop.f32.mrf.mxu0
    %2288 = vdwg.mxu0
    %2289 = vmatprep.subr.mxu0 0.0
    %2290 = vmatpush1.msra.mxu0 0.0
    %2291 = vmatprep.subr.mxu0 0.0
    %2292 = vmatpush1.msra.mxu0 0.0
    %2293 = vmatprep.subr.mxu0 0.0
    %2294 = vmatpush1.msra.mxu0 0.0
    %2295 = vmatprep.subr.mxu0 0.0
    %2296 = vmatpush1.msra.mxu0 0.0
    %2297 = vmatprep.subr.mxu0 0.0
    %2298 = vmatpush1.msra.mxu0 0.0
    %2299 = vmatprep.subr.mxu0 0.0
    %2300 = vmatpush1.msra.mxu0 0.0
    %2301 = vmatprep.subr.mxu0 0.0
    %2302 = vmatpush1.msra.mxu0 0.0
    %2303 = vmatprep.subr.mxu0 0.0
    %2304 = vmatpush1.msra.mxu0 0.0
    %2305 = vmatprep.subr.mxu0 0.0
    %2306 = vmatpush1.msra.mxu0 0.0
    %2307 = vmatprep.subr.mxu0 0.0
    %2308 = vmatpush1.msra.mxu0 0.0
    %2309 = vmatprep.subr.mxu0 0.0
    %2310 = vmatpush1.msra.mxu0 0.0
    %2311 = vmatprep.subr.mxu0 0.0
    %2312 = vmatpush1.msra.mxu0 0.0
    %2313 = vmatprep.subr.mxu0 0.0
    %v2314 = vand.u32 %v2107, 4294901760
    %v2315 = vsub.f32 %v2107, %v2314
    %2316 = vmatpush1.msra.mxu0 %v2315
    %2317 = vmatprep.subr.mxu0 0.0
    %v2318 = vand.u32 %v2106, 4294901760
    %v2319 = vsub.f32 %v2106, %v2318
    %2320 = vmatpush1.msra.mxu0 %v2319
    %2321 = vmatprep.subr.mxu0 0.0
    %v2322 = vand.u32 %v2105, 4294901760
    %v2323 = vsub.f32 %v2105, %v2322
    %2324 = vmatpush1.msra.mxu0 %v2323
    %2325 = vmatprep.subr.mxu0 0.0
    %v2326 = vand.u32 %v2104, 4294901760
    %v2327 = vsub.f32 %v2104, %v2326
    %2328 = vmatpush1.msra.mxu0 %v2327
    %2329 = vmatprep.subr.mxu0 0.0
    %2330 = vmatpush2.msra.mxu0 0.0
    %2331 = vmatprep.subr.mxu0 0.0
    %2332 = vmatpush2.msra.mxu0 0.0
    %2333 = vmatprep.subr.mxu0 0.0
    %2334 = vmatpush2.msra.mxu0 0.0
    %2335 = vmatprep.subr.mxu0 0.0
    %2336 = vmatpush2.msra.mxu0 0.0
    %2337 = vmatprep.subr.mxu0 0.0
    %2338 = vmatpush2.msra.mxu0 0.0
    %2339 = vmatprep.subr.mxu0 0.0
    %2340 = vmatpush2.msra.mxu0 0.0
    %2341 = vmatprep.subr.mxu0 0.0
    %2342 = vmatpush2.msra.mxu0 0.0
    %2343 = vmatprep.subr.mxu0 0.0
    %2344 = vmatpush2.msra.mxu0 0.0
    %2345 = vmatprep.subr.mxu0 0.0
    %2346 = vmatpush2.msra.mxu0 0.0
    %2347 = vmatprep.subr.mxu0 0.0
    %2348 = vmatpush2.msra.mxu0 0.0
    %2349 = vmatprep.subr.mxu0 0.0
    %2350 = vmatpush2.msra.mxu0 0.0
    %2351 = vmatprep.subr.mxu0 0.0
    %2352 = vmatpush2.msra.mxu0 0.0
    %2353 = vmatprep.subr.mxu0 0.0
    %2354 = vmatpush2.msra.mxu0 0.0
    %2355 = vmatprep.subr.mxu0 0.0
    %2356 = vmatpush2.msra.mxu0 0.0
    %2357 = vmatprep.subr.mxu0 0.0
    %2358 = vmatpush2.msra.mxu0 0.0
    %2359 = vmatprep.subr.mxu0 0.0
    %2360 = vmatpush2.msra.mxu0 0.0
    %2361 = vmatprep.mubr.f32.mxu0 0.0
    %v2362 = vand.u32 %v2117, 4294901760
    %v2363 = vsub.f32 %v2117, %v2362
    %2364 = vmatmul.mubr.f32.gmra.mxu0 %v2363
    %v2365 = vpop.f32.mrf.mxu0
    %v2366 = vadd.f32 %v2286, %v2365
    %v2367 = vpop.f32.mrf.mxu0
    %2368 = vdwg.mxu0
    %2369 = vmatprep.subr.mxu0 0.0
    %2370 = vmatpush1.msra.mxu0 0.0
    %2371 = vmatprep.subr.mxu0 0.0
    %2372 = vmatpush1.msra.mxu0 0.0
    %2373 = vmatprep.subr.mxu0 0.0
    %2374 = vmatpush1.msra.mxu0 0.0
    %2375 = vmatprep.subr.mxu0 0.0
    %2376 = vmatpush1.msra.mxu0 0.0
    %2377 = vmatprep.subr.mxu0 0.0
    %2378 = vmatpush1.msra.mxu0 0.0
    %2379 = vmatprep.subr.mxu0 0.0
    %2380 = vmatpush1.msra.mxu0 0.0
    %2381 = vmatprep.subr.mxu0 0.0
    %2382 = vmatpush1.msra.mxu0 0.0
    %2383 = vmatprep.subr.mxu0 0.0
    %2384 = vmatpush1.msra.mxu0 0.0
    %2385 = vmatprep.subr.mxu0 0.0
    %2386 = vmatpush1.msra.mxu0 0.0
    %2387 = vmatprep.subr.mxu0 0.0
    %2388 = vmatpush1.msra.mxu0 0.0
    %2389 = vmatprep.subr.mxu0 0.0
    %2390 = vmatpush1.msra.mxu0 0.0
    %2391 = vmatprep.subr.mxu0 0.0
    %2392 = vmatpush1.msra.mxu0 0.0
    %2393 = vmatprep.subr.mxu0 0.0
    %v2394 = vand.u32 %v2107, 4294901760
    %2395 = vmatpush1.msra.mxu0 %v2394
    %2396 = vmatprep.subr.mxu0 0.0
    %v2397 = vand.u32 %v2106, 4294901760
    %2398 = vmatpush1.msra.mxu0 %v2397
    %2399 = vmatprep.subr.mxu0 0.0
    %v2400 = vand.u32 %v2105, 4294901760
    %2401 = vmatpush1.msra.mxu0 %v2400
    %2402 = vmatprep.subr.mxu0 0.0
    %v2403 = vand.u32 %v2104, 4294901760
    %2404 = vmatpush1.msra.mxu0 %v2403
    %2405 = vmatprep.subr.mxu0 0.0
    %2406 = vmatpush2.msra.mxu0 0.0
    %2407 = vmatprep.subr.mxu0 0.0
    %2408 = vmatpush2.msra.mxu0 0.0
    %2409 = vmatprep.subr.mxu0 0.0
    %2410 = vmatpush2.msra.mxu0 0.0
    %2411 = vmatprep.subr.mxu0 0.0
    %2412 = vmatpush2.msra.mxu0 0.0
    %2413 = vmatprep.subr.mxu0 0.0
    %2414 = vmatpush2.msra.mxu0 0.0
    %2415 = vmatprep.subr.mxu0 0.0
    %2416 = vmatpush2.msra.mxu0 0.0
    %2417 = vmatprep.subr.mxu0 0.0
    %2418 = vmatpush2.msra.mxu0 0.0
    %2419 = vmatprep.subr.mxu0 0.0
    %2420 = vmatpush2.msra.mxu0 0.0
    %2421 = vmatprep.subr.mxu0 0.0
    %2422 = vmatpush2.msra.mxu0 0.0
    %2423 = vmatprep.subr.mxu0 0.0
    %2424 = vmatpush2.msra.mxu0 0.0
    %2425 = vmatprep.subr.mxu0 0.0
    %2426 = vmatpush2.msra.mxu0 0.0
    %2427 = vmatprep.subr.mxu0 0.0
    %2428 = vmatpush2.msra.mxu0 0.0
    %2429 = vmatprep.subr.mxu0 0.0
    %2430 = vmatpush2.msra.mxu0 0.0
    %2431 = vmatprep.subr.mxu0 0.0
    %2432 = vmatpush2.msra.mxu0 0.0
    %2433 = vmatprep.subr.mxu0 0.0
    %2434 = vmatpush2.msra.mxu0 0.0
    %2435 = vmatprep.subr.mxu0 0.0
    %2436 = vmatpush2.msra.mxu0 0.0
    %2437 = vmatprep.mubr.f32.mxu0 0.0
    %v2438 = vand.u32 %v2117, 4294901760
    %v2439 = vsub.f32 %v2117, %v2438
    %v2440 = vand.u32 %v2439, 4294901760
    %2441 = vmatmul.mubr.f32.gmra.mxu0 %v2440
    %v2442 = vpop.f32.mrf.mxu0
    %v2443 = vadd.f32 %v2366, %v2442
    %v2444 = vpop.f32.mrf.mxu0
    %2445 = vdwg.mxu0
    %2446 = vmatprep.subr.mxu0 0.0
    %2447 = vmatpush1.msra.mxu0 0.0
    %2448 = vmatprep.subr.mxu0 0.0
    %2449 = vmatpush1.msra.mxu0 0.0
    %2450 = vmatprep.subr.mxu0 0.0
    %2451 = vmatpush1.msra.mxu0 0.0
    %2452 = vmatprep.subr.mxu0 0.0
    %2453 = vmatpush1.msra.mxu0 0.0
    %2454 = vmatprep.subr.mxu0 0.0
    %2455 = vmatpush1.msra.mxu0 0.0
    %2456 = vmatprep.subr.mxu0 0.0
    %2457 = vmatpush1.msra.mxu0 0.0
    %2458 = vmatprep.subr.mxu0 0.0
    %2459 = vmatpush1.msra.mxu0 0.0
    %2460 = vmatprep.subr.mxu0 0.0
    %2461 = vmatpush1.msra.mxu0 0.0
    %2462 = vmatprep.subr.mxu0 0.0
    %2463 = vmatpush1.msra.mxu0 0.0
    %2464 = vmatprep.subr.mxu0 0.0
    %2465 = vmatpush1.msra.mxu0 0.0
    %2466 = vmatprep.subr.mxu0 0.0
    %2467 = vmatpush1.msra.mxu0 0.0
    %2468 = vmatprep.subr.mxu0 0.0
    %2469 = vmatpush1.msra.mxu0 0.0
    %2470 = vmatprep.subr.mxu0 0.0
    %v2471 = vand.u32 %v2107, 4294901760
    %v2472 = vsub.f32 %v2107, %v2471
    %v2473 = vand.u32 %v2472, 4294901760
    %2474 = vmatpush1.msra.mxu0 %v2473
    %2475 = vmatprep.subr.mxu0 0.0
    %v2476 = vand.u32 %v2106, 4294901760
    %v2477 = vsub.f32 %v2106, %v2476
    %v2478 = vand.u32 %v2477, 4294901760
    %2479 = vmatpush1.msra.mxu0 %v2478
    %2480 = vmatprep.subr.mxu0 0.0
    %v2481 = vand.u32 %v2105, 4294901760
    %v2482 = vsub.f32 %v2105, %v2481
    %v2483 = vand.u32 %v2482, 4294901760
    %2484 = vmatpush1.msra.mxu0 %v2483
    %2485 = vmatprep.subr.mxu0 0.0
    %v2486 = vand.u32 %v2104, 4294901760
    %v2487 = vsub.f32 %v2104, %v2486
    %v2488 = vand.u32 %v2487, 4294901760
    %2489 = vmatpush1.msra.mxu0 %v2488
    %2490 = vmatprep.subr.mxu0 0.0
    %2491 = vmatpush2.msra.mxu0 0.0
    %2492 = vmatprep.subr.mxu0 0.0
    %2493 = vmatpush2.msra.mxu0 0.0
    %2494 = vmatprep.subr.mxu0 0.0
    %2495 = vmatpush2.msra.mxu0 0.0
    %2496 = vmatprep.subr.mxu0 0.0
    %2497 = vmatpush2.msra.mxu0 0.0
    %2498 = vmatprep.subr.mxu0 0.0
    %2499 = vmatpush2.msra.mxu0 0.0
    %2500 = vmatprep.subr.mxu0 0.0
    %2501 = vmatpush2.msra.mxu0 0.0
    %2502 = vmatprep.subr.mxu0 0.0
    %2503 = vmatpush2.msra.mxu0 0.0
    %2504 = vmatprep.subr.mxu0 0.0
    %2505 = vmatpush2.msra.mxu0 0.0
    %2506 = vmatprep.subr.mxu0 0.0
    %2507 = vmatpush2.msra.mxu0 0.0
    %2508 = vmatprep.subr.mxu0 0.0
    %2509 = vmatpush2.msra.mxu0 0.0
    %2510 = vmatprep.subr.mxu0 0.0
    %2511 = vmatpush2.msra.mxu0 0.0
    %2512 = vmatprep.subr.mxu0 0.0
    %2513 = vmatpush2.msra.mxu0 0.0
    %2514 = vmatprep.subr.mxu0 0.0
    %2515 = vmatpush2.msra.mxu0 0.0
    %2516 = vmatprep.subr.mxu0 0.0
    %2517 = vmatpush2.msra.mxu0 0.0
    %2518 = vmatprep.subr.mxu0 0.0
    %2519 = vmatpush2.msra.mxu0 0.0
    %2520 = vmatprep.subr.mxu0 0.0
    %2521 = vmatpush2.msra.mxu0 0.0
    %2522 = vmatprep.mubr.f32.mxu0 0.0
    %v2523 = vand.u32 %v2117, 4294901760
    %2524 = vmatmul.mubr.f32.gmra.mxu0 %v2523
    %v2525 = vpop.f32.mrf.mxu0
    %v2526 = vadd.f32 %v2443, %v2525
    %v2527 = vpop.f32.mrf.mxu0
    %2528 = vdwg.mxu0
    %2529 = vmatprep.subr.mxu0 0.0
    %2530 = vmatpush1.msra.mxu0 0.0
    %2531 = vmatprep.subr.mxu0 0.0
    %2532 = vmatpush1.msra.mxu0 0.0
    %2533 = vmatprep.subr.mxu0 0.0
    %2534 = vmatpush1.msra.mxu0 0.0
    %2535 = vmatprep.subr.mxu0 0.0
    %2536 = vmatpush1.msra.mxu0 0.0
    %2537 = vmatprep.subr.mxu0 0.0
    %2538 = vmatpush1.msra.mxu0 0.0
    %2539 = vmatprep.subr.mxu0 0.0
    %2540 = vmatpush1.msra.mxu0 0.0
    %2541 = vmatprep.subr.mxu0 0.0
    %2542 = vmatpush1.msra.mxu0 0.0
    %2543 = vmatprep.subr.mxu0 0.0
    %2544 = vmatpush1.msra.mxu0 0.0
    %2545 = vmatprep.subr.mxu0 0.0
    %2546 = vmatpush1.msra.mxu0 0.0
    %2547 = vmatprep.subr.mxu0 0.0
    %2548 = vmatpush1.msra.mxu0 0.0
    %2549 = vmatprep.subr.mxu0 0.0
    %2550 = vmatpush1.msra.mxu0 0.0
    %2551 = vmatprep.subr.mxu0 0.0
    %2552 = vmatpush1.msra.mxu0 0.0
    %2553 = vmatprep.subr.mxu0 0.0
    %v2554 = vand.u32 %v2107, 4294901760
    %2555 = vmatpush1.msra.mxu0 %v2554
    %2556 = vmatprep.subr.mxu0 0.0
    %v2557 = vand.u32 %v2106, 4294901760
    %2558 = vmatpush1.msra.mxu0 %v2557
    %2559 = vmatprep.subr.mxu0 0.0
    %v2560 = vand.u32 %v2105, 4294901760
    %2561 = vmatpush1.msra.mxu0 %v2560
    %2562 = vmatprep.subr.mxu0 0.0
    %v2563 = vand.u32 %v2104, 4294901760
    %2564 = vmatpush1.msra.mxu0 %v2563
    %2565 = vmatprep.subr.mxu0 0.0
    %2566 = vmatpush2.msra.mxu0 0.0
    %2567 = vmatprep.subr.mxu0 0.0
    %2568 = vmatpush2.msra.mxu0 0.0
    %2569 = vmatprep.subr.mxu0 0.0
    %2570 = vmatpush2.msra.mxu0 0.0
    %2571 = vmatprep.subr.mxu0 0.0
    %2572 = vmatpush2.msra.mxu0 0.0
    %2573 = vmatprep.subr.mxu0 0.0
    %2574 = vmatpush2.msra.mxu0 0.0
    %2575 = vmatprep.subr.mxu0 0.0
    %2576 = vmatpush2.msra.mxu0 0.0
    %2577 = vmatprep.subr.mxu0 0.0
    %2578 = vmatpush2.msra.mxu0 0.0
    %2579 = vmatprep.subr.mxu0 0.0
    %2580 = vmatpush2.msra.mxu0 0.0
    %2581 = vmatprep.subr.mxu0 0.0
    %2582 = vmatpush2.msra.mxu0 0.0
    %2583 = vmatprep.subr.mxu0 0.0
    %2584 = vmatpush2.msra.mxu0 0.0
    %2585 = vmatprep.subr.mxu0 0.0
    %2586 = vmatpush2.msra.mxu0 0.0
    %2587 = vmatprep.subr.mxu0 0.0
    %2588 = vmatpush2.msra.mxu0 0.0
    %2589 = vmatprep.subr.mxu0 0.0
    %2590 = vmatpush2.msra.mxu0 0.0
    %2591 = vmatprep.subr.mxu0 0.0
    %2592 = vmatpush2.msra.mxu0 0.0
    %2593 = vmatprep.subr.mxu0 0.0
    %2594 = vmatpush2.msra.mxu0 0.0
    %2595 = vmatprep.subr.mxu0 0.0
    %2596 = vmatpush2.msra.mxu0 0.0
    %2597 = vmatprep.mubr.f32.mxu0 0.0
    %v2598 = vand.u32 %v2117, 4294901760
    %2599 = vmatmul.mubr.f32.gmra.mxu0 %v2598
    %v2600 = vpop.f32.mrf.mxu0
    %v2601 = vadd.f32 %v2526, %v2600
    %v2602 = vpop.f32.mrf.mxu0
    %2603 = vdwg.mxu0
    %vm2604 = vcmp.ge.f32.partialorder %v2601, 0.0
    %v2605 = vmul.f32 %v2601, 0.01
    %v2606 = vsel %vm2604, %v2601, %v2605
    %s2607 = scalar_lea.vmem [#allocation8], 128
    %v2608 = vld [vmem:[%s2607] sm:$0xff]
    %v2609 = vld [vmem:[%s2607 + $0x8] sm:$0xff]
    %v2610 = vld [vmem:[%s2607 + $0x10] sm:$0xff]
    %v2611 = vld [vmem:[%s2607 + $0x18] sm:$0xff]
    %s2612 = scalar_lea.vmem %s4, 4
    %v2613 = vld [vmem:[%s2612] sm:$0x1]
    %v2615 = vlaneseq
    %v2616 = vshrl.u32 %v2615, 7
    %v2617 = vsub.s32 0, %v2616
    %v2618 = vrot.slane %v2613, %v2617
    %v2621 = vsel %vm101, %v2606, 0
    %2623 = vmatprep.subr.mxu0 0.0
    %2624 = vmatpush1.msra.mxu0 0.0
    %2625 = vmatprep.subr.mxu0 0.0
    %2626 = vmatpush1.msra.mxu0 0.0
    %2627 = vmatprep.subr.mxu0 0.0
    %2628 = vmatpush1.msra.mxu0 0.0
    %2629 = vmatprep.subr.mxu0 0.0
    %2630 = vmatpush1.msra.mxu0 0.0
    %2631 = vmatprep.subr.mxu0 0.0
    %2632 = vmatpush1.msra.mxu0 0.0
    %2633 = vmatprep.subr.mxu0 0.0
    %2634 = vmatpush1.msra.mxu0 0.0
    %2635 = vmatprep.subr.mxu0 0.0
    %2636 = vmatpush1.msra.mxu0 0.0
    %2637 = vmatprep.subr.mxu0 0.0
    %2638 = vmatpush1.msra.mxu0 0.0
    %2639 = vmatprep.subr.mxu0 0.0
    %2640 = vmatpush1.msra.mxu0 0.0
    %2641 = vmatprep.subr.mxu0 0.0
    %2642 = vmatpush1.msra.mxu0 0.0
    %2643 = vmatprep.subr.mxu0 0.0
    %2644 = vmatpush1.msra.mxu0 0.0
    %2645 = vmatprep.subr.mxu0 0.0
    %2646 = vmatpush1.msra.mxu0 0.0
    %2647 = vmatprep.subr.mxu0 0.0
    %v2648 = vand.u32 %v2611, 4294901760
    %2649 = vmatpush1.msra.mxu0 %v2648
    %2650 = vmatprep.subr.mxu0 0.0
    %v2651 = vand.u32 %v2610, 4294901760
    %2652 = vmatpush1.msra.mxu0 %v2651
    %2653 = vmatprep.subr.mxu0 0.0
    %v2654 = vand.u32 %v2609, 4294901760
    %2655 = vmatpush1.msra.mxu0 %v2654
    %2656 = vmatprep.subr.mxu0 0.0
    %v2657 = vand.u32 %v2608, 4294901760
    %2658 = vmatpush1.msra.mxu0 %v2657
    %2659 = vmatprep.subr.mxu0 0.0
    %2660 = vmatpush2.msra.mxu0 0.0
    %2661 = vmatprep.subr.mxu0 0.0
    %2662 = vmatpush2.msra.mxu0 0.0
    %2663 = vmatprep.subr.mxu0 0.0
    %2664 = vmatpush2.msra.mxu0 0.0
    %2665 = vmatprep.subr.mxu0 0.0
    %2666 = vmatpush2.msra.mxu0 0.0
    %2667 = vmatprep.subr.mxu0 0.0
    %2668 = vmatpush2.msra.mxu0 0.0
    %2669 = vmatprep.subr.mxu0 0.0
    %2670 = vmatpush2.msra.mxu0 0.0
    %2671 = vmatprep.subr.mxu0 0.0
    %2672 = vmatpush2.msra.mxu0 0.0
    %2673 = vmatprep.subr.mxu0 0.0
    %2674 = vmatpush2.msra.mxu0 0.0
    %2675 = vmatprep.subr.mxu0 0.0
    %2676 = vmatpush2.msra.mxu0 0.0
    %2677 = vmatprep.subr.mxu0 0.0
    %2678 = vmatpush2.msra.mxu0 0.0
    %2679 = vmatprep.subr.mxu0 0.0
    %2680 = vmatpush2.msra.mxu0 0.0
    %2681 = vmatprep.subr.mxu0 0.0
    %2682 = vmatpush2.msra.mxu0 0.0
    %2683 = vmatprep.subr.mxu0 0.0
    %2684 = vmatpush2.msra.mxu0 0.0
    %2685 = vmatprep.subr.mxu0 0.0
    %2686 = vmatpush2.msra.mxu0 0.0
    %2687 = vmatprep.subr.mxu0 0.0
    %2688 = vmatpush2.msra.mxu0 0.0
    %2689 = vmatprep.subr.mxu0 0.0
    %2690 = vmatpush2.msra.mxu0 0.0
    %2691 = vmatprep.mubr.f32.mxu0 0.0
    %v2692 = vand.u32 %v2621, 4294901760
    %v2693 = vsub.f32 %v2621, %v2692
    %v2694 = vand.u32 %v2693, 4294901760
    %v2695 = vsub.f32 %v2693, %v2694
    %v2696 = vand.u32 %v2695, 4294901760
    %2697 = vmatmul.mubr.f32.gmra.mxu0 %v2696
    %v2698 = vpop.f32.mrf.mxu0
    %v2699 = vadd.f32 %v2618, %v2698
    %v2700 = vpop.f32.mrf.mxu0
    %2701 = vdwg.mxu0
    %2702 = vmatprep.subr.mxu0 0.0
    %2703 = vmatpush1.msra.mxu0 0.0
    %2704 = vmatprep.subr.mxu0 0.0
    %2705 = vmatpush1.msra.mxu0 0.0
    %2706 = vmatprep.subr.mxu0 0.0
    %2707 = vmatpush1.msra.mxu0 0.0
    %2708 = vmatprep.subr.mxu0 0.0
    %2709 = vmatpush1.msra.mxu0 0.0
    %2710 = vmatprep.subr.mxu0 0.0
    %2711 = vmatpush1.msra.mxu0 0.0
    %2712 = vmatprep.subr.mxu0 0.0
    %2713 = vmatpush1.msra.mxu0 0.0
    %2714 = vmatprep.subr.mxu0 0.0
    %2715 = vmatpush1.msra.mxu0 0.0
    %2716 = vmatprep.subr.mxu0 0.0
    %2717 = vmatpush1.msra.mxu0 0.0
    %2718 = vmatprep.subr.mxu0 0.0
    %2719 = vmatpush1.msra.mxu0 0.0
    %2720 = vmatprep.subr.mxu0 0.0
    %2721 = vmatpush1.msra.mxu0 0.0
    %2722 = vmatprep.subr.mxu0 0.0
    %2723 = vmatpush1.msra.mxu0 0.0
    %2724 = vmatprep.subr.mxu0 0.0
    %2725 = vmatpush1.msra.mxu0 0.0
    %2726 = vmatprep.subr.mxu0 0.0
    %v2727 = vand.u32 %v2611, 4294901760
    %v2728 = vsub.f32 %v2611, %v2727
    %v2729 = vand.u32 %v2728, 4294901760
    %v2730 = vsub.f32 %v2728, %v2729
    %v2731 = vand.u32 %v2730, 4294901760
    %2732 = vmatpush1.msra.mxu0 %v2731
    %2733 = vmatprep.subr.mxu0 0.0
    %v2734 = vand.u32 %v2610, 4294901760
    %v2735 = vsub.f32 %v2610, %v2734
    %v2736 = vand.u32 %v2735, 4294901760
    %v2737 = vsub.f32 %v2735, %v2736
    %v2738 = vand.u32 %v2737, 4294901760
    %2739 = vmatpush1.msra.mxu0 %v2738
    %2740 = vmatprep.subr.mxu0 0.0
    %v2741 = vand.u32 %v2609, 4294901760
    %v2742 = vsub.f32 %v2609, %v2741
    %v2743 = vand.u32 %v2742, 4294901760
    %v2744 = vsub.f32 %v2742, %v2743
    %v2745 = vand.u32 %v2744, 4294901760
    %2746 = vmatpush1.msra.mxu0 %v2745
    %2747 = vmatprep.subr.mxu0 0.0
    %v2748 = vand.u32 %v2608, 4294901760
    %v2749 = vsub.f32 %v2608, %v2748
    %v2750 = vand.u32 %v2749, 4294901760
    %v2751 = vsub.f32 %v2749, %v2750
    %v2752 = vand.u32 %v2751, 4294901760
    %2753 = vmatpush1.msra.mxu0 %v2752
    %2754 = vmatprep.subr.mxu0 0.0
    %2755 = vmatpush2.msra.mxu0 0.0
    %2756 = vmatprep.subr.mxu0 0.0
    %2757 = vmatpush2.msra.mxu0 0.0
    %2758 = vmatprep.subr.mxu0 0.0
    %2759 = vmatpush2.msra.mxu0 0.0
    %2760 = vmatprep.subr.mxu0 0.0
    %2761 = vmatpush2.msra.mxu0 0.0
    %2762 = vmatprep.subr.mxu0 0.0
    %2763 = vmatpush2.msra.mxu0 0.0
    %2764 = vmatprep.subr.mxu0 0.0
    %2765 = vmatpush2.msra.mxu0 0.0
    %2766 = vmatprep.subr.mxu0 0.0
    %2767 = vmatpush2.msra.mxu0 0.0
    %2768 = vmatprep.subr.mxu0 0.0
    %2769 = vmatpush2.msra.mxu0 0.0
    %2770 = vmatprep.subr.mxu0 0.0
    %2771 = vmatpush2.msra.mxu0 0.0
    %2772 = vmatprep.subr.mxu0 0.0
    %2773 = vmatpush2.msra.mxu0 0.0
    %2774 = vmatprep.subr.mxu0 0.0
    %2775 = vmatpush2.msra.mxu0 0.0
    %2776 = vmatprep.subr.mxu0 0.0
    %2777 = vmatpush2.msra.mxu0 0.0
    %2778 = vmatprep.subr.mxu0 0.0
    %2779 = vmatpush2.msra.mxu0 0.0
    %2780 = vmatprep.subr.mxu0 0.0
    %2781 = vmatpush2.msra.mxu0 0.0
    %2782 = vmatprep.subr.mxu0 0.0
    %2783 = vmatpush2.msra.mxu0 0.0
    %2784 = vmatprep.subr.mxu0 0.0
    %2785 = vmatpush2.msra.mxu0 0.0
    %2786 = vmatprep.mubr.f32.mxu0 0.0
    %v2787 = vand.u32 %v2621, 4294901760
    %2788 = vmatmul.mubr.f32.gmra.mxu0 %v2787
    %v2789 = vpop.f32.mrf.mxu0
    %v2790 = vadd.f32 %v2699, %v2789
    %v2791 = vpop.f32.mrf.mxu0
    %2792 = vdwg.mxu0
    %2793 = vmatprep.subr.mxu0 0.0
    %2794 = vmatpush1.msra.mxu0 0.0
    %2795 = vmatprep.subr.mxu0 0.0
    %2796 = vmatpush1.msra.mxu0 0.0
    %2797 = vmatprep.subr.mxu0 0.0
    %2798 = vmatpush1.msra.mxu0 0.0
    %2799 = vmatprep.subr.mxu0 0.0
    %2800 = vmatpush1.msra.mxu0 0.0
    %2801 = vmatprep.subr.mxu0 0.0
    %2802 = vmatpush1.msra.mxu0 0.0
    %2803 = vmatprep.subr.mxu0 0.0
    %2804 = vmatpush1.msra.mxu0 0.0
    %2805 = vmatprep.subr.mxu0 0.0
    %2806 = vmatpush1.msra.mxu0 0.0
    %2807 = vmatprep.subr.mxu0 0.0
    %2808 = vmatpush1.msra.mxu0 0.0
    %2809 = vmatprep.subr.mxu0 0.0
    %2810 = vmatpush1.msra.mxu0 0.0
    %2811 = vmatprep.subr.mxu0 0.0
    %2812 = vmatpush1.msra.mxu0 0.0
    %2813 = vmatprep.subr.mxu0 0.0
    %2814 = vmatpush1.msra.mxu0 0.0
    %2815 = vmatprep.subr.mxu0 0.0
    %2816 = vmatpush1.msra.mxu0 0.0
    %2817 = vmatprep.subr.mxu0 0.0
    %v2818 = vand.u32 %v2611, 4294901760
    %v2819 = vsub.f32 %v2611, %v2818
    %2820 = vmatpush1.msra.mxu0 %v2819
    %2821 = vmatprep.subr.mxu0 0.0
    %v2822 = vand.u32 %v2610, 4294901760
    %v2823 = vsub.f32 %v2610, %v2822
    %2824 = vmatpush1.msra.mxu0 %v2823
    %2825 = vmatprep.subr.mxu0 0.0
    %v2826 = vand.u32 %v2609, 4294901760
    %v2827 = vsub.f32 %v2609, %v2826
    %2828 = vmatpush1.msra.mxu0 %v2827
    %2829 = vmatprep.subr.mxu0 0.0
    %v2830 = vand.u32 %v2608, 4294901760
    %v2831 = vsub.f32 %v2608, %v2830
    %2832 = vmatpush1.msra.mxu0 %v2831
    %2833 = vmatprep.subr.mxu0 0.0
    %2834 = vmatpush2.msra.mxu0 0.0
    %2835 = vmatprep.subr.mxu0 0.0
    %2836 = vmatpush2.msra.mxu0 0.0
    %2837 = vmatprep.subr.mxu0 0.0
    %2838 = vmatpush2.msra.mxu0 0.0
    %2839 = vmatprep.subr.mxu0 0.0
    %2840 = vmatpush2.msra.mxu0 0.0
    %2841 = vmatprep.subr.mxu0 0.0
    %2842 = vmatpush2.msra.mxu0 0.0
    %2843 = vmatprep.subr.mxu0 0.0
    %2844 = vmatpush2.msra.mxu0 0.0
    %2845 = vmatprep.subr.mxu0 0.0
    %2846 = vmatpush2.msra.mxu0 0.0
    %2847 = vmatprep.subr.mxu0 0.0
    %2848 = vmatpush2.msra.mxu0 0.0
    %2849 = vmatprep.subr.mxu0 0.0
    %2850 = vmatpush2.msra.mxu0 0.0
    %2851 = vmatprep.subr.mxu0 0.0
    %2852 = vmatpush2.msra.mxu0 0.0
    %2853 = vmatprep.subr.mxu0 0.0
    %2854 = vmatpush2.msra.mxu0 0.0
    %2855 = vmatprep.subr.mxu0 0.0
    %2856 = vmatpush2.msra.mxu0 0.0
    %2857 = vmatprep.subr.mxu0 0.0
    %2858 = vmatpush2.msra.mxu0 0.0
    %2859 = vmatprep.subr.mxu0 0.0
    %2860 = vmatpush2.msra.mxu0 0.0
    %2861 = vmatprep.subr.mxu0 0.0
    %2862 = vmatpush2.msra.mxu0 0.0
    %2863 = vmatprep.subr.mxu0 0.0
    %2864 = vmatpush2.msra.mxu0 0.0
    %2865 = vmatprep.mubr.f32.mxu0 0.0
    %v2866 = vand.u32 %v2621, 4294901760
    %v2867 = vsub.f32 %v2621, %v2866
    %2868 = vmatmul.mubr.f32.gmra.mxu0 %v2867
    %v2869 = vpop.f32.mrf.mxu0
    %v2870 = vadd.f32 %v2790, %v2869
    %v2871 = vpop.f32.mrf.mxu0
    %2872 = vdwg.mxu0
    %2873 = vmatprep.subr.mxu0 0.0
    %2874 = vmatpush1.msra.mxu0 0.0
    %2875 = vmatprep.subr.mxu0 0.0
    %2876 = vmatpush1.msra.mxu0 0.0
    %2877 = vmatprep.subr.mxu0 0.0
    %2878 = vmatpush1.msra.mxu0 0.0
    %2879 = vmatprep.subr.mxu0 0.0
    %2880 = vmatpush1.msra.mxu0 0.0
    %2881 = vmatprep.subr.mxu0 0.0
    %2882 = vmatpush1.msra.mxu0 0.0
    %2883 = vmatprep.subr.mxu0 0.0
    %2884 = vmatpush1.msra.mxu0 0.0
    %2885 = vmatprep.subr.mxu0 0.0
    %2886 = vmatpush1.msra.mxu0 0.0
    %2887 = vmatprep.subr.mxu0 0.0
    %2888 = vmatpush1.msra.mxu0 0.0
    %2889 = vmatprep.subr.mxu0 0.0
    %2890 = vmatpush1.msra.mxu0 0.0
    %2891 = vmatprep.subr.mxu0 0.0
    %2892 = vmatpush1.msra.mxu0 0.0
    %2893 = vmatprep.subr.mxu0 0.0
    %2894 = vmatpush1.msra.mxu0 0.0
    %2895 = vmatprep.subr.mxu0 0.0
    %2896 = vmatpush1.msra.mxu0 0.0
    %2897 = vmatprep.subr.mxu0 0.0
    %v2898 = vand.u32 %v2611, 4294901760
    %2899 = vmatpush1.msra.mxu0 %v2898
    %2900 = vmatprep.subr.mxu0 0.0
    %v2901 = vand.u32 %v2610, 4294901760
    %2902 = vmatpush1.msra.mxu0 %v2901
    %2903 = vmatprep.subr.mxu0 0.0
    %v2904 = vand.u32 %v2609, 4294901760
    %2905 = vmatpush1.msra.mxu0 %v2904
    %2906 = vmatprep.subr.mxu0 0.0
    %v2907 = vand.u32 %v2608, 4294901760
    %2908 = vmatpush1.msra.mxu0 %v2907
    %2909 = vmatprep.subr.mxu0 0.0
    %2910 = vmatpush2.msra.mxu0 0.0
    %2911 = vmatprep.subr.mxu0 0.0
    %2912 = vmatpush2.msra.mxu0 0.0
    %2913 = vmatprep.subr.mxu0 0.0
    %2914 = vmatpush2.msra.mxu0 0.0
    %2915 = vmatprep.subr.mxu0 0.0
    %2916 = vmatpush2.msra.mxu0 0.0
    %2917 = vmatprep.subr.mxu0 0.0
    %2918 = vmatpush2.msra.mxu0 0.0
    %2919 = vmatprep.subr.mxu0 0.0
    %2920 = vmatpush2.msra.mxu0 0.0
    %2921 = vmatprep.subr.mxu0 0.0
    %2922 = vmatpush2.msra.mxu0 0.0
    %2923 = vmatprep.subr.mxu0 0.0
    %2924 = vmatpush2.msra.mxu0 0.0
    %2925 = vmatprep.subr.mxu0 0.0
    %2926 = vmatpush2.msra.mxu0 0.0
    %2927 = vmatprep.subr.mxu0 0.0
    %2928 = vmatpush2.msra.mxu0 0.0
    %2929 = vmatprep.subr.mxu0 0.0
    %2930 = vmatpush2.msra.mxu0 0.0
    %2931 = vmatprep.subr.mxu0 0.0
    %2932 = vmatpush2.msra.mxu0 0.0
    %2933 = vmatprep.subr.mxu0 0.0
    %2934 = vmatpush2.msra.mxu0 0.0
    %2935 = vmatprep.subr.mxu0 0.0
    %2936 = vmatpush2.msra.mxu0 0.0
    %2937 = vmatprep.subr.mxu0 0.0
    %2938 = vmatpush2.msra.mxu0 0.0
    %2939 = vmatprep.subr.mxu0 0.0
    %2940 = vmatpush2.msra.mxu0 0.0
    %2941 = vmatprep.mubr.f32.mxu0 0.0
    %v2942 = vand.u32 %v2621, 4294901760
    %v2943 = vsub.f32 %v2621, %v2942
    %v2944 = vand.u32 %v2943, 4294901760
    %2945 = vmatmul.mubr.f32.gmra.mxu0 %v2944
    %v2946 = vpop.f32.mrf.mxu0
    %v2947 = vadd.f32 %v2870, %v2946
    %v2948 = vpop.f32.mrf.mxu0
    %2949 = vdwg.mxu0
    %2950 = vmatprep.subr.mxu0 0.0
    %2951 = vmatpush1.msra.mxu0 0.0
    %2952 = vmatprep.subr.mxu0 0.0
    %2953 = vmatpush1.msra.mxu0 0.0
    %2954 = vmatprep.subr.mxu0 0.0
    %2955 = vmatpush1.msra.mxu0 0.0
    %2956 = vmatprep.subr.mxu0 0.0
    %2957 = vmatpush1.msra.mxu0 0.0
    %2958 = vmatprep.subr.mxu0 0.0
    %2959 = vmatpush1.msra.mxu0 0.0
    %2960 = vmatprep.subr.mxu0 0.0
    %2961 = vmatpush1.msra.mxu0 0.0
    %2962 = vmatprep.subr.mxu0 0.0
    %2963 = vmatpush1.msra.mxu0 0.0
    %2964 = vmatprep.subr.mxu0 0.0
    %2965 = vmatpush1.msra.mxu0 0.0
    %2966 = vmatprep.subr.mxu0 0.0
    %2967 = vmatpush1.msra.mxu0 0.0
    %2968 = vmatprep.subr.mxu0 0.0
    %2969 = vmatpush1.msra.mxu0 0.0
    %2970 = vmatprep.subr.mxu0 0.0
    %2971 = vmatpush1.msra.mxu0 0.0
    %2972 = vmatprep.subr.mxu0 0.0
    %2973 = vmatpush1.msra.mxu0 0.0
    %2974 = vmatprep.subr.mxu0 0.0
    %v2975 = vand.u32 %v2611, 4294901760
    %v2976 = vsub.f32 %v2611, %v2975
    %v2977 = vand.u32 %v2976, 4294901760
    %2978 = vmatpush1.msra.mxu0 %v2977
    %2979 = vmatprep.subr.mxu0 0.0
    %v2980 = vand.u32 %v2610, 4294901760
    %v2981 = vsub.f32 %v2610, %v2980
    %v2982 = vand.u32 %v2981, 4294901760
    %2983 = vmatpush1.msra.mxu0 %v2982
    %2984 = vmatprep.subr.mxu0 0.0
    %v2985 = vand.u32 %v2609, 4294901760
    %v2986 = vsub.f32 %v2609, %v2985
    %v2987 = vand.u32 %v2986, 4294901760
    %2988 = vmatpush1.msra.mxu0 %v2987
    %2989 = vmatprep.subr.mxu0 0.0
    %v2990 = vand.u32 %v2608, 4294901760
    %v2991 = vsub.f32 %v2608, %v2990
    %v2992 = vand.u32 %v2991, 4294901760
    %2993 = vmatpush1.msra.mxu0 %v2992
    %2994 = vmatprep.subr.mxu0 0.0
    %2995 = vmatpush2.msra.mxu0 0.0
    %2996 = vmatprep.subr.mxu0 0.0
    %2997 = vmatpush2.msra.mxu0 0.0
    %2998 = vmatprep.subr.mxu0 0.0
    %2999 = vmatpush2.msra.mxu0 0.0
    %3000 = vmatprep.subr.mxu0 0.0
    %3001 = vmatpush2.msra.mxu0 0.0
    %3002 = vmatprep.subr.mxu0 0.0
    %3003 = vmatpush2.msra.mxu0 0.0
    %3004 = vmatprep.subr.mxu0 0.0
    %3005 = vmatpush2.msra.mxu0 0.0
    %3006 = vmatprep.subr.mxu0 0.0
    %3007 = vmatpush2.msra.mxu0 0.0
    %3008 = vmatprep.subr.mxu0 0.0
    %3009 = vmatpush2.msra.mxu0 0.0
    %3010 = vmatprep.subr.mxu0 0.0
    %3011 = vmatpush2.msra.mxu0 0.0
    %3012 = vmatprep.subr.mxu0 0.0
    %3013 = vmatpush2.msra.mxu0 0.0
    %3014 = vmatprep.subr.mxu0 0.0
    %3015 = vmatpush2.msra.mxu0 0.0
    %3016 = vmatprep.subr.mxu0 0.0
    %3017 = vmatpush2.msra.mxu0 0.0
    %3018 = vmatprep.subr.mxu0 0.0
    %3019 = vmatpush2.msra.mxu0 0.0
    %3020 = vmatprep.subr.mxu0 0.0
    %3021 = vmatpush2.msra.mxu0 0.0
    %3022 = vmatprep.subr.mxu0 0.0
    %3023 = vmatpush2.msra.mxu0 0.0
    %3024 = vmatprep.subr.mxu0 0.0
    %3025 = vmatpush2.msra.mxu0 0.0
    %3026 = vmatprep.mubr.f32.mxu0 0.0
    %v3027 = vand.u32 %v2621, 4294901760
    %3028 = vmatmul.mubr.f32.gmra.mxu0 %v3027
    %v3029 = vpop.f32.mrf.mxu0
    %v3030 = vadd.f32 %v2947, %v3029
    %v3031 = vpop.f32.mrf.mxu0
    %3032 = vdwg.mxu0
    %3033 = vmatprep.subr.mxu0 0.0
    %3034 = vmatpush1.msra.mxu0 0.0
    %3035 = vmatprep.subr.mxu0 0.0
    %3036 = vmatpush1.msra.mxu0 0.0
    %3037 = vmatprep.subr.mxu0 0.0
    %3038 = vmatpush1.msra.mxu0 0.0
    %3039 = vmatprep.subr.mxu0 0.0
    %3040 = vmatpush1.msra.mxu0 0.0
    %3041 = vmatprep.subr.mxu0 0.0
    %3042 = vmatpush1.msra.mxu0 0.0
    %3043 = vmatprep.subr.mxu0 0.0
    %3044 = vmatpush1.msra.mxu0 0.0
    %3045 = vmatprep.subr.mxu0 0.0
    %3046 = vmatpush1.msra.mxu0 0.0
    %3047 = vmatprep.subr.mxu0 0.0
    %3048 = vmatpush1.msra.mxu0 0.0
    %3049 = vmatprep.subr.mxu0 0.0
    %3050 = vmatpush1.msra.mxu0 0.0
    %3051 = vmatprep.subr.mxu0 0.0
    %3052 = vmatpush1.msra.mxu0 0.0
    %3053 = vmatprep.subr.mxu0 0.0
    %3054 = vmatpush1.msra.mxu0 0.0
    %3055 = vmatprep.subr.mxu0 0.0
    %3056 = vmatpush1.msra.mxu0 0.0
    %3057 = vmatprep.subr.mxu0 0.0
    %v3058 = vand.u32 %v2611, 4294901760
    %3059 = vmatpush1.msra.mxu0 %v3058
    %3060 = vmatprep.subr.mxu0 0.0
    %v3061 = vand.u32 %v2610, 4294901760
    %3062 = vmatpush1.msra.mxu0 %v3061
    %3063 = vmatprep.subr.mxu0 0.0
    %v3064 = vand.u32 %v2609, 4294901760
    %3065 = vmatpush1.msra.mxu0 %v3064
    %3066 = vmatprep.subr.mxu0 0.0
    %v3067 = vand.u32 %v2608, 4294901760
    %3068 = vmatpush1.msra.mxu0 %v3067
    %3069 = vmatprep.subr.mxu0 0.0
    %3070 = vmatpush2.msra.mxu0 0.0
    %3071 = vmatprep.subr.mxu0 0.0
    %3072 = vmatpush2.msra.mxu0 0.0
    %3073 = vmatprep.subr.mxu0 0.0
    %3074 = vmatpush2.msra.mxu0 0.0
    %3075 = vmatprep.subr.mxu0 0.0
    %3076 = vmatpush2.msra.mxu0 0.0
    %3077 = vmatprep.subr.mxu0 0.0
    %3078 = vmatpush2.msra.mxu0 0.0
    %3079 = vmatprep.subr.mxu0 0.0
    %3080 = vmatpush2.msra.mxu0 0.0
    %3081 = vmatprep.subr.mxu0 0.0
    %3082 = vmatpush2.msra.mxu0 0.0
    %3083 = vmatprep.subr.mxu0 0.0
    %3084 = vmatpush2.msra.mxu0 0.0
    %3085 = vmatprep.subr.mxu0 0.0
    %3086 = vmatpush2.msra.mxu0 0.0
    %3087 = vmatprep.subr.mxu0 0.0
    %3088 = vmatpush2.msra.mxu0 0.0
    %3089 = vmatprep.subr.mxu0 0.0
    %3090 = vmatpush2.msra.mxu0 0.0
    %3091 = vmatprep.subr.mxu0 0.0
    %3092 = vmatpush2.msra.mxu0 0.0
    %3093 = vmatprep.subr.mxu0 0.0
    %3094 = vmatpush2.msra.mxu0 0.0
    %3095 = vmatprep.subr.mxu0 0.0
    %3096 = vmatpush2.msra.mxu0 0.0
    %3097 = vmatprep.subr.mxu0 0.0
    %3098 = vmatpush2.msra.mxu0 0.0
    %3099 = vmatprep.subr.mxu0 0.0
    %3100 = vmatpush2.msra.mxu0 0.0
    %3101 = vmatprep.mubr.f32.mxu0 0.0
    %v3102 = vand.u32 %v2621, 4294901760
    %3103 = vmatmul.mubr.f32.gmra.mxu0 %v3102
    %v3104 = vpop.f32.mrf.mxu0
    %v3105 = vadd.f32 %v3030, %v3104
    %v3106 = vpop.f32.mrf.mxu0
    %3107 = vdwg.mxu0
    %vm3108 = vcmp.ge.f32.partialorder %v3105, 0.0
    %v3109 = vmul.f32 %v3105, 0.01
    %v3110 = vsel %vm3108, %v3105, %v3109
    %s3111 = scalar_lea.vmem [#allocation8], 160
    %v3112 = vld [vmem:[%s3111] sm:$0xff]
    %v3113 = vld [vmem:[%s3111 + $0x8] sm:$0xff]
    %v3114 = vld [vmem:[%s3111 + $0x10] sm:$0xff]
    %v3115 = vld [vmem:[%s3111 + $0x18] sm:$0xff]
    %s3116 = scalar_lea.vmem %s4, 5
    %v3117 = vld [vmem:[%s3116] sm:$0x1]
    %v3119 = vlaneseq
    %v3120 = vshrl.u32 %v3119, 7
    %v3121 = vsub.s32 0, %v3120
    %v3122 = vrot.slane %v3117, %v3121
    %v3125 = vsel %vm101, %v3110, 0
    %3127 = vmatprep.subr.mxu0 0.0
    %3128 = vmatpush1.msra.mxu0 0.0
    %3129 = vmatprep.subr.mxu0 0.0
    %3130 = vmatpush1.msra.mxu0 0.0
    %3131 = vmatprep.subr.mxu0 0.0
    %3132 = vmatpush1.msra.mxu0 0.0
    %3133 = vmatprep.subr.mxu0 0.0
    %3134 = vmatpush1.msra.mxu0 0.0
    %3135 = vmatprep.subr.mxu0 0.0
    %3136 = vmatpush1.msra.mxu0 0.0
    %3137 = vmatprep.subr.mxu0 0.0
    %3138 = vmatpush1.msra.mxu0 0.0
    %3139 = vmatprep.subr.mxu0 0.0
    %3140 = vmatpush1.msra.mxu0 0.0
    %3141 = vmatprep.subr.mxu0 0.0
    %3142 = vmatpush1.msra.mxu0 0.0
    %3143 = vmatprep.subr.mxu0 0.0
    %3144 = vmatpush1.msra.mxu0 0.0
    %3145 = vmatprep.subr.mxu0 0.0
    %3146 = vmatpush1.msra.mxu0 0.0
    %3147 = vmatprep.subr.mxu0 0.0
    %3148 = vmatpush1.msra.mxu0 0.0
    %3149 = vmatprep.subr.mxu0 0.0
    %3150 = vmatpush1.msra.mxu0 0.0
    %3151 = vmatprep.subr.mxu0 0.0
    %v3152 = vand.u32 %v3115, 4294901760
    %3153 = vmatpush1.msra.mxu0 %v3152
    %3154 = vmatprep.subr.mxu0 0.0
    %v3155 = vand.u32 %v3114, 4294901760
    %3156 = vmatpush1.msra.mxu0 %v3155
    %3157 = vmatprep.subr.mxu0 0.0
    %v3158 = vand.u32 %v3113, 4294901760
    %3159 = vmatpush1.msra.mxu0 %v3158
    %3160 = vmatprep.subr.mxu0 0.0
    %v3161 = vand.u32 %v3112, 4294901760
    %3162 = vmatpush1.msra.mxu0 %v3161
    %3163 = vmatprep.subr.mxu0 0.0
    %3164 = vmatpush2.msra.mxu0 0.0
    %3165 = vmatprep.subr.mxu0 0.0
    %3166 = vmatpush2.msra.mxu0 0.0
    %3167 = vmatprep.subr.mxu0 0.0
    %3168 = vmatpush2.msra.mxu0 0.0
    %3169 = vmatprep.subr.mxu0 0.0
    %3170 = vmatpush2.msra.mxu0 0.0
    %3171 = vmatprep.subr.mxu0 0.0
    %3172 = vmatpush2.msra.mxu0 0.0
    %3173 = vmatprep.subr.mxu0 0.0
    %3174 = vmatpush2.msra.mxu0 0.0
    %3175 = vmatprep.subr.mxu0 0.0
    %3176 = vmatpush2.msra.mxu0 0.0
    %3177 = vmatprep.subr.mxu0 0.0
    %3178 = vmatpush2.msra.mxu0 0.0
    %3179 = vmatprep.subr.mxu0 0.0
    %3180 = vmatpush2.msra.mxu0 0.0
    %3181 = vmatprep.subr.mxu0 0.0
    %3182 = vmatpush2.msra.mxu0 0.0
    %3183 = vmatprep.subr.mxu0 0.0
    %3184 = vmatpush2.msra.mxu0 0.0
    %3185 = vmatprep.subr.mxu0 0.0
    %3186 = vmatpush2.msra.mxu0 0.0
    %3187 = vmatprep.subr.mxu0 0.0
    %3188 = vmatpush2.msra.mxu0 0.0
    %3189 = vmatprep.subr.mxu0 0.0
    %3190 = vmatpush2.msra.mxu0 0.0
    %3191 = vmatprep.subr.mxu0 0.0
    %3192 = vmatpush2.msra.mxu0 0.0
    %3193 = vmatprep.subr.mxu0 0.0
    %3194 = vmatpush2.msra.mxu0 0.0
    %3195 = vmatprep.mubr.f32.mxu0 0.0
    %v3196 = vand.u32 %v3125, 4294901760
    %v3197 = vsub.f32 %v3125, %v3196
    %v3198 = vand.u32 %v3197, 4294901760
    %v3199 = vsub.f32 %v3197, %v3198
    %v3200 = vand.u32 %v3199, 4294901760
    %3201 = vmatmul.mubr.f32.gmra.mxu0 %v3200
    %v3202 = vpop.f32.mrf.mxu0
    %v3203 = vadd.f32 %v3122, %v3202
    %v3204 = vpop.f32.mrf.mxu0
    %3205 = vdwg.mxu0
    %3206 = vmatprep.subr.mxu0 0.0
    %3207 = vmatpush1.msra.mxu0 0.0
    %3208 = vmatprep.subr.mxu0 0.0
    %3209 = vmatpush1.msra.mxu0 0.0
    %3210 = vmatprep.subr.mxu0 0.0
    %3211 = vmatpush1.msra.mxu0 0.0
    %3212 = vmatprep.subr.mxu0 0.0
    %3213 = vmatpush1.msra.mxu0 0.0
    %3214 = vmatprep.subr.mxu0 0.0
    %3215 = vmatpush1.msra.mxu0 0.0
    %3216 = vmatprep.subr.mxu0 0.0
    %3217 = vmatpush1.msra.mxu0 0.0
    %3218 = vmatprep.subr.mxu0 0.0
    %3219 = vmatpush1.msra.mxu0 0.0
    %3220 = vmatprep.subr.mxu0 0.0
    %3221 = vmatpush1.msra.mxu0 0.0
    %3222 = vmatprep.subr.mxu0 0.0
    %3223 = vmatpush1.msra.mxu0 0.0
    %3224 = vmatprep.subr.mxu0 0.0
    %3225 = vmatpush1.msra.mxu0 0.0
    %3226 = vmatprep.subr.mxu0 0.0
    %3227 = vmatpush1.msra.mxu0 0.0
    %3228 = vmatprep.subr.mxu0 0.0
    %3229 = vmatpush1.msra.mxu0 0.0
    %3230 = vmatprep.subr.mxu0 0.0
    %v3231 = vand.u32 %v3115, 4294901760
    %v3232 = vsub.f32 %v3115, %v3231
    %v3233 = vand.u32 %v3232, 4294901760
    %v3234 = vsub.f32 %v3232, %v3233
    %v3235 = vand.u32 %v3234, 4294901760
    %3236 = vmatpush1.msra.mxu0 %v3235
    %3237 = vmatprep.subr.mxu0 0.0
    %v3238 = vand.u32 %v3114, 4294901760
    %v3239 = vsub.f32 %v3114, %v3238
    %v3240 = vand.u32 %v3239, 4294901760
    %v3241 = vsub.f32 %v3239, %v3240
    %v3242 = vand.u32 %v3241, 4294901760
    %3243 = vmatpush1.msra.mxu0 %v3242
    %3244 = vmatprep.subr.mxu0 0.0
    %v3245 = vand.u32 %v3113, 4294901760
    %v3246 = vsub.f32 %v3113, %v3245
    %v3247 = vand.u32 %v3246, 4294901760
    %v3248 = vsub.f32 %v3246, %v3247
    %v3249 = vand.u32 %v3248, 4294901760
    %3250 = vmatpush1.msra.mxu0 %v3249
    %3251 = vmatprep.subr.mxu0 0.0
    %v3252 = vand.u32 %v3112, 4294901760
    %v3253 = vsub.f32 %v3112, %v3252
    %v3254 = vand.u32 %v3253, 4294901760
    %v3255 = vsub.f32 %v3253, %v3254
    %v3256 = vand.u32 %v3255, 4294901760
    %3257 = vmatpush1.msra.mxu0 %v3256
    %3258 = vmatprep.subr.mxu0 0.0
    %3259 = vmatpush2.msra.mxu0 0.0
    %3260 = vmatprep.subr.mxu0 0.0
    %3261 = vmatpush2.msra.mxu0 0.0
    %3262 = vmatprep.subr.mxu0 0.0
    %3263 = vmatpush2.msra.mxu0 0.0
    %3264 = vmatprep.subr.mxu0 0.0
    %3265 = vmatpush2.msra.mxu0 0.0
    %3266 = vmatprep.subr.mxu0 0.0
    %3267 = vmatpush2.msra.mxu0 0.0
    %3268 = vmatprep.subr.mxu0 0.0
    %3269 = vmatpush2.msra.mxu0 0.0
    %3270 = vmatprep.subr.mxu0 0.0
    %3271 = vmatpush2.msra.mxu0 0.0
    %3272 = vmatprep.subr.mxu0 0.0
    %3273 = vmatpush2.msra.mxu0 0.0
    %3274 = vmatprep.subr.mxu0 0.0
    %3275 = vmatpush2.msra.mxu0 0.0
    %3276 = vmatprep.subr.mxu0 0.0
    %3277 = vmatpush2.msra.mxu0 0.0
    %3278 = vmatprep.subr.mxu0 0.0
    %3279 = vmatpush2.msra.mxu0 0.0
    %3280 = vmatprep.subr.mxu0 0.0
    %3281 = vmatpush2.msra.mxu0 0.0
    %3282 = vmatprep.subr.mxu0 0.0
    %3283 = vmatpush2.msra.mxu0 0.0
    %3284 = vmatprep.subr.mxu0 0.0
    %3285 = vmatpush2.msra.mxu0 0.0
    %3286 = vmatprep.subr.mxu0 0.0
    %3287 = vmatpush2.msra.mxu0 0.0
    %3288 = vmatprep.subr.mxu0 0.0
    %3289 = vmatpush2.msra.mxu0 0.0
    %3290 = vmatprep.mubr.f32.mxu0 0.0
    %v3291 = vand.u32 %v3125, 4294901760
    %3292 = vmatmul.mubr.f32.gmra.mxu0 %v3291
    %v3293 = vpop.f32.mrf.mxu0
    %v3294 = vadd.f32 %v3203, %v3293
    %v3295 = vpop.f32.mrf.mxu0
    %3296 = vdwg.mxu0
    %3297 = vmatprep.subr.mxu0 0.0
    %3298 = vmatpush1.msra.mxu0 0.0
    %3299 = vmatprep.subr.mxu0 0.0
    %3300 = vmatpush1.msra.mxu0 0.0
    %3301 = vmatprep.subr.mxu0 0.0
    %3302 = vmatpush1.msra.mxu0 0.0
    %3303 = vmatprep.subr.mxu0 0.0
    %3304 = vmatpush1.msra.mxu0 0.0
    %3305 = vmatprep.subr.mxu0 0.0
    %3306 = vmatpush1.msra.mxu0 0.0
    %3307 = vmatprep.subr.mxu0 0.0
    %3308 = vmatpush1.msra.mxu0 0.0
    %3309 = vmatprep.subr.mxu0 0.0
    %3310 = vmatpush1.msra.mxu0 0.0
    %3311 = vmatprep.subr.mxu0 0.0
    %3312 = vmatpush1.msra.mxu0 0.0
    %3313 = vmatprep.subr.mxu0 0.0
    %3314 = vmatpush1.msra.mxu0 0.0
    %3315 = vmatprep.subr.mxu0 0.0
    %3316 = vmatpush1.msra.mxu0 0.0
    %3317 = vmatprep.subr.mxu0 0.0
    %3318 = vmatpush1.msra.mxu0 0.0
    %3319 = vmatprep.subr.mxu0 0.0
    %3320 = vmatpush1.msra.mxu0 0.0
    %3321 = vmatprep.subr.mxu0 0.0
    %v3322 = vand.u32 %v3115, 4294901760
    %v3323 = vsub.f32 %v3115, %v3322
    %3324 = vmatpush1.msra.mxu0 %v3323
    %3325 = vmatprep.subr.mxu0 0.0
    %v3326 = vand.u32 %v3114, 4294901760
    %v3327 = vsub.f32 %v3114, %v3326
    %3328 = vmatpush1.msra.mxu0 %v3327
    %3329 = vmatprep.subr.mxu0 0.0
    %v3330 = vand.u32 %v3113, 4294901760
    %v3331 = vsub.f32 %v3113, %v3330
    %3332 = vmatpush1.msra.mxu0 %v3331
    %3333 = vmatprep.subr.mxu0 0.0
    %v3334 = vand.u32 %v3112, 4294901760
    %v3335 = vsub.f32 %v3112, %v3334
    %3336 = vmatpush1.msra.mxu0 %v3335
    %3337 = vmatprep.subr.mxu0 0.0
    %3338 = vmatpush2.msra.mxu0 0.0
    %3339 = vmatprep.subr.mxu0 0.0
    %3340 = vmatpush2.msra.mxu0 0.0
    %3341 = vmatprep.subr.mxu0 0.0
    %3342 = vmatpush2.msra.mxu0 0.0
    %3343 = vmatprep.subr.mxu0 0.0
    %3344 = vmatpush2.msra.mxu0 0.0
    %3345 = vmatprep.subr.mxu0 0.0
    %3346 = vmatpush2.msra.mxu0 0.0
    %3347 = vmatprep.subr.mxu0 0.0
    %3348 = vmatpush2.msra.mxu0 0.0
    %3349 = vmatprep.subr.mxu0 0.0
    %3350 = vmatpush2.msra.mxu0 0.0
    %3351 = vmatprep.subr.mxu0 0.0
    %3352 = vmatpush2.msra.mxu0 0.0
    %3353 = vmatprep.subr.mxu0 0.0
    %3354 = vmatpush2.msra.mxu0 0.0
    %3355 = vmatprep.subr.mxu0 0.0
    %3356 = vmatpush2.msra.mxu0 0.0
    %3357 = vmatprep.subr.mxu0 0.0
    %3358 = vmatpush2.msra.mxu0 0.0
    %3359 = vmatprep.subr.mxu0 0.0
    %3360 = vmatpush2.msra.mxu0 0.0
    %3361 = vmatprep.subr.mxu0 0.0
    %3362 = vmatpush2.msra.mxu0 0.0
    %3363 = vmatprep.subr.mxu0 0.0
    %3364 = vmatpush2.msra.mxu0 0.0
    %3365 = vmatprep.subr.mxu0 0.0
    %3366 = vmatpush2.msra.mxu0 0.0
    %3367 = vmatprep.subr.mxu0 0.0
    %3368 = vmatpush2.msra.mxu0 0.0
    %3369 = vmatprep.mubr.f32.mxu0 0.0
    %v3370 = vand.u32 %v3125, 4294901760
    %v3371 = vsub.f32 %v3125, %v3370
    %3372 = vmatmul.mubr.f32.gmra.mxu0 %v3371
    %v3373 = vpop.f32.mrf.mxu0
    %v3374 = vadd.f32 %v3294, %v3373
    %v3375 = vpop.f32.mrf.mxu0
    %3376 = vdwg.mxu0
    %3377 = vmatprep.subr.mxu0 0.0
    %3378 = vmatpush1.msra.mxu0 0.0
    %3379 = vmatprep.subr.mxu0 0.0
    %3380 = vmatpush1.msra.mxu0 0.0
    %3381 = vmatprep.subr.mxu0 0.0
    %3382 = vmatpush1.msra.mxu0 0.0
    %3383 = vmatprep.subr.mxu0 0.0
    %3384 = vmatpush1.msra.mxu0 0.0
    %3385 = vmatprep.subr.mxu0 0.0
    %3386 = vmatpush1.msra.mxu0 0.0
    %3387 = vmatprep.subr.mxu0 0.0
    %3388 = vmatpush1.msra.mxu0 0.0
    %3389 = vmatprep.subr.mxu0 0.0
    %3390 = vmatpush1.msra.mxu0 0.0
    %3391 = vmatprep.subr.mxu0 0.0
    %3392 = vmatpush1.msra.mxu0 0.0
    %3393 = vmatprep.subr.mxu0 0.0
    %3394 = vmatpush1.msra.mxu0 0.0
    %3395 = vmatprep.subr.mxu0 0.0
    %3396 = vmatpush1.msra.mxu0 0.0
    %3397 = vmatprep.subr.mxu0 0.0
    %3398 = vmatpush1.msra.mxu0 0.0
    %3399 = vmatprep.subr.mxu0 0.0
    %3400 = vmatpush1.msra.mxu0 0.0
    %3401 = vmatprep.subr.mxu0 0.0
    %v3402 = vand.u32 %v3115, 4294901760
    %3403 = vmatpush1.msra.mxu0 %v3402
    %3404 = vmatprep.subr.mxu0 0.0
    %v3405 = vand.u32 %v3114, 4294901760
    %3406 = vmatpush1.msra.mxu0 %v3405
    %3407 = vmatprep.subr.mxu0 0.0
    %v3408 = vand.u32 %v3113, 4294901760
    %3409 = vmatpush1.msra.mxu0 %v3408
    %3410 = vmatprep.subr.mxu0 0.0
    %v3411 = vand.u32 %v3112, 4294901760
    %3412 = vmatpush1.msra.mxu0 %v3411
    %3413 = vmatprep.subr.mxu0 0.0
    %3414 = vmatpush2.msra.mxu0 0.0
    %3415 = vmatprep.subr.mxu0 0.0
    %3416 = vmatpush2.msra.mxu0 0.0
    %3417 = vmatprep.subr.mxu0 0.0
    %3418 = vmatpush2.msra.mxu0 0.0
    %3419 = vmatprep.subr.mxu0 0.0
    %3420 = vmatpush2.msra.mxu0 0.0
    %3421 = vmatprep.subr.mxu0 0.0
    %3422 = vmatpush2.msra.mxu0 0.0
    %3423 = vmatprep.subr.mxu0 0.0
    %3424 = vmatpush2.msra.mxu0 0.0
    %3425 = vmatprep.subr.mxu0 0.0
    %3426 = vmatpush2.msra.mxu0 0.0
    %3427 = vmatprep.subr.mxu0 0.0
    %3428 = vmatpush2.msra.mxu0 0.0
    %3429 = vmatprep.subr.mxu0 0.0
    %3430 = vmatpush2.msra.mxu0 0.0
    %3431 = vmatprep.subr.mxu0 0.0
    %3432 = vmatpush2.msra.mxu0 0.0
    %3433 = vmatprep.subr.mxu0 0.0
    %3434 = vmatpush2.msra.mxu0 0.0
    %3435 = vmatprep.subr.mxu0 0.0
    %3436 = vmatpush2.msra.mxu0 0.0
    %3437 = vmatprep.subr.mxu0 0.0
    %3438 = vmatpush2.msra.mxu0 0.0
    %3439 = vmatprep.subr.mxu0 0.0
    %3440 = vmatpush2.msra.mxu0 0.0
    %3441 = vmatprep.subr.mxu0 0.0
    %3442 = vmatpush2.msra.mxu0 0.0
    %3443 = vmatprep.subr.mxu0 0.0
    %3444 = vmatpush2.msra.mxu0 0.0
    %3445 = vmatprep.mubr.f32.mxu0 0.0
    %v3446 = vand.u32 %v3125, 4294901760
    %v3447 = vsub.f32 %v3125, %v3446
    %v3448 = vand.u32 %v3447, 4294901760
    %3449 = vmatmul.mubr.f32.gmra.mxu0 %v3448
    %v3450 = vpop.f32.mrf.mxu0
    %v3451 = vadd.f32 %v3374, %v3450
    %v3452 = vpop.f32.mrf.mxu0
    %3453 = vdwg.mxu0
    %3454 = vmatprep.subr.mxu0 0.0
    %3455 = vmatpush1.msra.mxu0 0.0
    %3456 = vmatprep.subr.mxu0 0.0
    %3457 = vmatpush1.msra.mxu0 0.0
    %3458 = vmatprep.subr.mxu0 0.0
    %3459 = vmatpush1.msra.mxu0 0.0
    %3460 = vmatprep.subr.mxu0 0.0
    %3461 = vmatpush1.msra.mxu0 0.0
    %3462 = vmatprep.subr.mxu0 0.0
    %3463 = vmatpush1.msra.mxu0 0.0
    %3464 = vmatprep.subr.mxu0 0.0
    %3465 = vmatpush1.msra.mxu0 0.0
    %3466 = vmatprep.subr.mxu0 0.0
    %3467 = vmatpush1.msra.mxu0 0.0
    %3468 = vmatprep.subr.mxu0 0.0
    %3469 = vmatpush1.msra.mxu0 0.0
    %3470 = vmatprep.subr.mxu0 0.0
    %3471 = vmatpush1.msra.mxu0 0.0
    %3472 = vmatprep.subr.mxu0 0.0
    %3473 = vmatpush1.msra.mxu0 0.0
    %3474 = vmatprep.subr.mxu0 0.0
    %3475 = vmatpush1.msra.mxu0 0.0
    %3476 = vmatprep.subr.mxu0 0.0
    %3477 = vmatpush1.msra.mxu0 0.0
    %3478 = vmatprep.subr.mxu0 0.0
    %v3479 = vand.u32 %v3115, 4294901760
    %v3480 = vsub.f32 %v3115, %v3479
    %v3481 = vand.u32 %v3480, 4294901760
    %3482 = vmatpush1.msra.mxu0 %v3481
    %3483 = vmatprep.subr.mxu0 0.0
    %v3484 = vand.u32 %v3114, 4294901760
    %v3485 = vsub.f32 %v3114, %v3484
    %v3486 = vand.u32 %v3485, 4294901760
    %3487 = vmatpush1.msra.mxu0 %v3486
    %3488 = vmatprep.subr.mxu0 0.0
    %v3489 = vand.u32 %v3113, 4294901760
    %v3490 = vsub.f32 %v3113, %v3489
    %v3491 = vand.u32 %v3490, 4294901760
    %3492 = vmatpush1.msra.mxu0 %v3491
    %3493 = vmatprep.subr.mxu0 0.0
    %v3494 = vand.u32 %v3112, 4294901760
    %v3495 = vsub.f32 %v3112, %v3494
    %v3496 = vand.u32 %v3495, 4294901760
    %3497 = vmatpush1.msra.mxu0 %v3496
    %3498 = vmatprep.subr.mxu0 0.0
    %3499 = vmatpush2.msra.mxu0 0.0
    %3500 = vmatprep.subr.mxu0 0.0
    %3501 = vmatpush2.msra.mxu0 0.0
    %3502 = vmatprep.subr.mxu0 0.0
    %3503 = vmatpush2.msra.mxu0 0.0
    %3504 = vmatprep.subr.mxu0 0.0
    %3505 = vmatpush2.msra.mxu0 0.0
    %3506 = vmatprep.subr.mxu0 0.0
    %3507 = vmatpush2.msra.mxu0 0.0
    %3508 = vmatprep.subr.mxu0 0.0
    %3509 = vmatpush2.msra.mxu0 0.0
    %3510 = vmatprep.subr.mxu0 0.0
    %3511 = vmatpush2.msra.mxu0 0.0
    %3512 = vmatprep.subr.mxu0 0.0
    %3513 = vmatpush2.msra.mxu0 0.0
    %3514 = vmatprep.subr.mxu0 0.0
    %3515 = vmatpush2.msra.mxu0 0.0
    %3516 = vmatprep.subr.mxu0 0.0
    %3517 = vmatpush2.msra.mxu0 0.0
    %3518 = vmatprep.subr.mxu0 0.0
    %3519 = vmatpush2.msra.mxu0 0.0
    %3520 = vmatprep.subr.mxu0 0.0
    %3521 = vmatpush2.msra.mxu0 0.0
    %3522 = vmatprep.subr.mxu0 0.0
    %3523 = vmatpush2.msra.mxu0 0.0
    %3524 = vmatprep.subr.mxu0 0.0
    %3525 = vmatpush2.msra.mxu0 0.0
    %3526 = vmatprep.subr.mxu0 0.0
    %3527 = vmatpush2.msra.mxu0 0.0
    %3528 = vmatprep.subr.mxu0 0.0
    %3529 = vmatpush2.msra.mxu0 0.0
    %3530 = vmatprep.mubr.f32.mxu0 0.0
    %v3531 = vand.u32 %v3125, 4294901760
    %3532 = vmatmul.mubr.f32.gmra.mxu0 %v3531
    %v3533 = vpop.f32.mrf.mxu0
    %v3534 = vadd.f32 %v3451, %v3533
    %v3535 = vpop.f32.mrf.mxu0
    %3536 = vdwg.mxu0
    %3537 = vmatprep.subr.mxu0 0.0
    %3538 = vmatpush1.msra.mxu0 0.0
    %3539 = vmatprep.subr.mxu0 0.0
    %3540 = vmatpush1.msra.mxu0 0.0
    %3541 = vmatprep.subr.mxu0 0.0
    %3542 = vmatpush1.msra.mxu0 0.0
    %3543 = vmatprep.subr.mxu0 0.0
    %3544 = vmatpush1.msra.mxu0 0.0
    %3545 = vmatprep.subr.mxu0 0.0
    %3546 = vmatpush1.msra.mxu0 0.0
    %3547 = vmatprep.subr.mxu0 0.0
    %3548 = vmatpush1.msra.mxu0 0.0
    %3549 = vmatprep.subr.mxu0 0.0
    %3550 = vmatpush1.msra.mxu0 0.0
    %3551 = vmatprep.subr.mxu0 0.0
    %3552 = vmatpush1.msra.mxu0 0.0
    %3553 = vmatprep.subr.mxu0 0.0
    %3554 = vmatpush1.msra.mxu0 0.0
    %3555 = vmatprep.subr.mxu0 0.0
    %3556 = vmatpush1.msra.mxu0 0.0
    %3557 = vmatprep.subr.mxu0 0.0
    %3558 = vmatpush1.msra.mxu0 0.0
    %3559 = vmatprep.subr.mxu0 0.0
    %3560 = vmatpush1.msra.mxu0 0.0
    %3561 = vmatprep.subr.mxu0 0.0
    %v3562 = vand.u32 %v3115, 4294901760
    %3563 = vmatpush1.msra.mxu0 %v3562
    %3564 = vmatprep.subr.mxu0 0.0
    %v3565 = vand.u32 %v3114, 4294901760
    %3566 = vmatpush1.msra.mxu0 %v3565
    %3567 = vmatprep.subr.mxu0 0.0
    %v3568 = vand.u32 %v3113, 4294901760
    %3569 = vmatpush1.msra.mxu0 %v3568
    %3570 = vmatprep.subr.mxu0 0.0
    %v3571 = vand.u32 %v3112, 4294901760
    %3572 = vmatpush1.msra.mxu0 %v3571
    %3573 = vmatprep.subr.mxu0 0.0
    %3574 = vmatpush2.msra.mxu0 0.0
    %3575 = vmatprep.subr.mxu0 0.0
    %3576 = vmatpush2.msra.mxu0 0.0
    %3577 = vmatprep.subr.mxu0 0.0
    %3578 = vmatpush2.msra.mxu0 0.0
    %3579 = vmatprep.subr.mxu0 0.0
    %3580 = vmatpush2.msra.mxu0 0.0
    %3581 = vmatprep.subr.mxu0 0.0
    %3582 = vmatpush2.msra.mxu0 0.0
    %3583 = vmatprep.subr.mxu0 0.0
    %3584 = vmatpush2.msra.mxu0 0.0
    %3585 = vmatprep.subr.mxu0 0.0
    %3586 = vmatpush2.msra.mxu0 0.0
    %3587 = vmatprep.subr.mxu0 0.0
    %3588 = vmatpush2.msra.mxu0 0.0
    %3589 = vmatprep.subr.mxu0 0.0
    %3590 = vmatpush2.msra.mxu0 0.0
    %3591 = vmatprep.subr.mxu0 0.0
    %3592 = vmatpush2.msra.mxu0 0.0
    %3593 = vmatprep.subr.mxu0 0.0
    %3594 = vmatpush2.msra.mxu0 0.0
    %3595 = vmatprep.subr.mxu0 0.0
    %3596 = vmatpush2.msra.mxu0 0.0
    %3597 = vmatprep.subr.mxu0 0.0
    %3598 = vmatpush2.msra.mxu0 0.0
    %3599 = vmatprep.subr.mxu0 0.0
    %3600 = vmatpush2.msra.mxu0 0.0
    %3601 = vmatprep.subr.mxu0 0.0
    %3602 = vmatpush2.msra.mxu0 0.0
    %3603 = vmatprep.subr.mxu0 0.0
    %3604 = vmatpush2.msra.mxu0 0.0
    %3605 = vmatprep.mubr.f32.mxu0 0.0
    %v3606 = vand.u32 %v3125, 4294901760
    %3607 = vmatmul.mubr.f32.gmra.mxu0 %v3606
    %v3608 = vpop.f32.mrf.mxu0
    %v3609 = vadd.f32 %v3534, %v3608
    %v3610 = vpop.f32.mrf.mxu0
    %3611 = vdwg.mxu0
    %vm3612 = vcmp.ge.f32.partialorder %v3609, 0.0
    %v3613 = vmul.f32 %v3609, 0.01
    %v3614 = vsel %vm3612, %v3609, %v3613
    %s3615 = scalar_lea.vmem [#allocation8], 192
    %v3616 = vld [vmem:[%s3615] sm:$0xff]
    %v3617 = vld [vmem:[%s3615 + $0x8] sm:$0xff]
    %v3618 = vld [vmem:[%s3615 + $0x10] sm:$0xff]
    %v3619 = vld [vmem:[%s3615 + $0x18] sm:$0xff]
    %s3620 = scalar_lea.vmem %s4, 6
    %v3621 = vld [vmem:[%s3620] sm:$0x1]
    %v3623 = vlaneseq
    %v3624 = vshrl.u32 %v3623, 7
    %v3625 = vsub.s32 0, %v3624
    %v3626 = vrot.slane %v3621, %v3625
    %v3629 = vsel %vm101, %v3614, 0
    %3631 = vmatprep.subr.mxu0 0.0
    %3632 = vmatpush1.msra.mxu0 0.0
    %3633 = vmatprep.subr.mxu0 0.0
    %3634 = vmatpush1.msra.mxu0 0.0
    %3635 = vmatprep.subr.mxu0 0.0
    %3636 = vmatpush1.msra.mxu0 0.0
    %3637 = vmatprep.subr.mxu0 0.0
    %3638 = vmatpush1.msra.mxu0 0.0
    %3639 = vmatprep.subr.mxu0 0.0
    %3640 = vmatpush1.msra.mxu0 0.0
    %3641 = vmatprep.subr.mxu0 0.0
    %3642 = vmatpush1.msra.mxu0 0.0
    %3643 = vmatprep.subr.mxu0 0.0
    %3644 = vmatpush1.msra.mxu0 0.0
    %3645 = vmatprep.subr.mxu0 0.0
    %3646 = vmatpush1.msra.mxu0 0.0
    %3647 = vmatprep.subr.mxu0 0.0
    %3648 = vmatpush1.msra.mxu0 0.0
    %3649 = vmatprep.subr.mxu0 0.0
    %3650 = vmatpush1.msra.mxu0 0.0
    %3651 = vmatprep.subr.mxu0 0.0
    %3652 = vmatpush1.msra.mxu0 0.0
    %3653 = vmatprep.subr.mxu0 0.0
    %3654 = vmatpush1.msra.mxu0 0.0
    %3655 = vmatprep.subr.mxu0 0.0
    %v3656 = vand.u32 %v3619, 4294901760
    %3657 = vmatpush1.msra.mxu0 %v3656
    %3658 = vmatprep.subr.mxu0 0.0
    %v3659 = vand.u32 %v3618, 4294901760
    %3660 = vmatpush1.msra.mxu0 %v3659
    %3661 = vmatprep.subr.mxu0 0.0
    %v3662 = vand.u32 %v3617, 4294901760
    %3663 = vmatpush1.msra.mxu0 %v3662
    %3664 = vmatprep.subr.mxu0 0.0
    %v3665 = vand.u32 %v3616, 4294901760
    %3666 = vmatpush1.msra.mxu0 %v3665
    %3667 = vmatprep.subr.mxu0 0.0
    %3668 = vmatpush2.msra.mxu0 0.0
    %3669 = vmatprep.subr.mxu0 0.0
    %3670 = vmatpush2.msra.mxu0 0.0
    %3671 = vmatprep.subr.mxu0 0.0
    %3672 = vmatpush2.msra.mxu0 0.0
    %3673 = vmatprep.subr.mxu0 0.0
    %3674 = vmatpush2.msra.mxu0 0.0
    %3675 = vmatprep.subr.mxu0 0.0
    %3676 = vmatpush2.msra.mxu0 0.0
    %3677 = vmatprep.subr.mxu0 0.0
    %3678 = vmatpush2.msra.mxu0 0.0
    %3679 = vmatprep.subr.mxu0 0.0
    %3680 = vmatpush2.msra.mxu0 0.0
    %3681 = vmatprep.subr.mxu0 0.0
    %3682 = vmatpush2.msra.mxu0 0.0
    %3683 = vmatprep.subr.mxu0 0.0
    %3684 = vmatpush2.msra.mxu0 0.0
    %3685 = vmatprep.subr.mxu0 0.0
    %3686 = vmatpush2.msra.mxu0 0.0
    %3687 = vmatprep.subr.mxu0 0.0
    %3688 = vmatpush2.msra.mxu0 0.0
    %3689 = vmatprep.subr.mxu0 0.0
    %3690 = vmatpush2.msra.mxu0 0.0
    %3691 = vmatprep.subr.mxu0 0.0
    %3692 = vmatpush2.msra.mxu0 0.0
    %3693 = vmatprep.subr.mxu0 0.0
    %3694 = vmatpush2.msra.mxu0 0.0
    %3695 = vmatprep.subr.mxu0 0.0
    %3696 = vmatpush2.msra.mxu0 0.0
    %3697 = vmatprep.subr.mxu0 0.0
    %3698 = vmatpush2.msra.mxu0 0.0
    %3699 = vmatprep.mubr.f32.mxu0 0.0
    %v3700 = vand.u32 %v3629, 4294901760
    %v3701 = vsub.f32 %v3629, %v3700
    %v3702 = vand.u32 %v3701, 4294901760
    %v3703 = vsub.f32 %v3701, %v3702
    %v3704 = vand.u32 %v3703, 4294901760
    %3705 = vmatmul.mubr.f32.gmra.mxu0 %v3704
    %v3706 = vpop.f32.mrf.mxu0
    %v3707 = vadd.f32 %v3626, %v3706
    %v3708 = vpop.f32.mrf.mxu0
    %3709 = vdwg.mxu0
    %3710 = vmatprep.subr.mxu0 0.0
    %3711 = vmatpush1.msra.mxu0 0.0
    %3712 = vmatprep.subr.mxu0 0.0
    %3713 = vmatpush1.msra.mxu0 0.0
    %3714 = vmatprep.subr.mxu0 0.0
    %3715 = vmatpush1.msra.mxu0 0.0
    %3716 = vmatprep.subr.mxu0 0.0
    %3717 = vmatpush1.msra.mxu0 0.0
    %3718 = vmatprep.subr.mxu0 0.0
    %3719 = vmatpush1.msra.mxu0 0.0
    %3720 = vmatprep.subr.mxu0 0.0
    %3721 = vmatpush1.msra.mxu0 0.0
    %3722 = vmatprep.subr.mxu0 0.0
    %3723 = vmatpush1.msra.mxu0 0.0
    %3724 = vmatprep.subr.mxu0 0.0
    %3725 = vmatpush1.msra.mxu0 0.0
    %3726 = vmatprep.subr.mxu0 0.0
    %3727 = vmatpush1.msra.mxu0 0.0
    %3728 = vmatprep.subr.mxu0 0.0
    %3729 = vmatpush1.msra.mxu0 0.0
    %3730 = vmatprep.subr.mxu0 0.0
    %3731 = vmatpush1.msra.mxu0 0.0
    %3732 = vmatprep.subr.mxu0 0.0
    %3733 = vmatpush1.msra.mxu0 0.0
    %3734 = vmatprep.subr.mxu0 0.0
    %v3735 = vand.u32 %v3619, 4294901760
    %v3736 = vsub.f32 %v3619, %v3735
    %v3737 = vand.u32 %v3736, 4294901760
    %v3738 = vsub.f32 %v3736, %v3737
    %v3739 = vand.u32 %v3738, 4294901760
    %3740 = vmatpush1.msra.mxu0 %v3739
    %3741 = vmatprep.subr.mxu0 0.0
    %v3742 = vand.u32 %v3618, 4294901760
    %v3743 = vsub.f32 %v3618, %v3742
    %v3744 = vand.u32 %v3743, 4294901760
    %v3745 = vsub.f32 %v3743, %v3744
    %v3746 = vand.u32 %v3745, 4294901760
    %3747 = vmatpush1.msra.mxu0 %v3746
    %3748 = vmatprep.subr.mxu0 0.0
    %v3749 = vand.u32 %v3617, 4294901760
    %v3750 = vsub.f32 %v3617, %v3749
    %v3751 = vand.u32 %v3750, 4294901760
    %v3752 = vsub.f32 %v3750, %v3751
    %v3753 = vand.u32 %v3752, 4294901760
    %3754 = vmatpush1.msra.mxu0 %v3753
    %3755 = vmatprep.subr.mxu0 0.0
    %v3756 = vand.u32 %v3616, 4294901760
    %v3757 = vsub.f32 %v3616, %v3756
    %v3758 = vand.u32 %v3757, 4294901760
    %v3759 = vsub.f32 %v3757, %v3758
    %v3760 = vand.u32 %v3759, 4294901760
    %3761 = vmatpush1.msra.mxu0 %v3760
    %3762 = vmatprep.subr.mxu0 0.0
    %3763 = vmatpush2.msra.mxu0 0.0
    %3764 = vmatprep.subr.mxu0 0.0
    %3765 = vmatpush2.msra.mxu0 0.0
    %3766 = vmatprep.subr.mxu0 0.0
    %3767 = vmatpush2.msra.mxu0 0.0
    %3768 = vmatprep.subr.mxu0 0.0
    %3769 = vmatpush2.msra.mxu0 0.0
    %3770 = vmatprep.subr.mxu0 0.0
    %3771 = vmatpush2.msra.mxu0 0.0
    %3772 = vmatprep.subr.mxu0 0.0
    %3773 = vmatpush2.msra.mxu0 0.0
    %3774 = vmatprep.subr.mxu0 0.0
    %3775 = vmatpush2.msra.mxu0 0.0
    %3776 = vmatprep.subr.mxu0 0.0
    %3777 = vmatpush2.msra.mxu0 0.0
    %3778 = vmatprep.subr.mxu0 0.0
    %3779 = vmatpush2.msra.mxu0 0.0
    %3780 = vmatprep.subr.mxu0 0.0
    %3781 = vmatpush2.msra.mxu0 0.0
    %3782 = vmatprep.subr.mxu0 0.0
    %3783 = vmatpush2.msra.mxu0 0.0
    %3784 = vmatprep.subr.mxu0 0.0
    %3785 = vmatpush2.msra.mxu0 0.0
    %3786 = vmatprep.subr.mxu0 0.0
    %3787 = vmatpush2.msra.mxu0 0.0
    %3788 = vmatprep.subr.mxu0 0.0
    %3789 = vmatpush2.msra.mxu0 0.0
    %3790 = vmatprep.subr.mxu0 0.0
    %3791 = vmatpush2.msra.mxu0 0.0
    %3792 = vmatprep.subr.mxu0 0.0
    %3793 = vmatpush2.msra.mxu0 0.0
    %3794 = vmatprep.mubr.f32.mxu0 0.0
    %v3795 = vand.u32 %v3629, 4294901760
    %3796 = vmatmul.mubr.f32.gmra.mxu0 %v3795
    %v3797 = vpop.f32.mrf.mxu0
    %v3798 = vadd.f32 %v3707, %v3797
    %v3799 = vpop.f32.mrf.mxu0
    %3800 = vdwg.mxu0
    %3801 = vmatprep.subr.mxu0 0.0
    %3802 = vmatpush1.msra.mxu0 0.0
    %3803 = vmatprep.subr.mxu0 0.0
    %3804 = vmatpush1.msra.mxu0 0.0
    %3805 = vmatprep.subr.mxu0 0.0
    %3806 = vmatpush1.msra.mxu0 0.0
    %3807 = vmatprep.subr.mxu0 0.0
    %3808 = vmatpush1.msra.mxu0 0.0
    %3809 = vmatprep.subr.mxu0 0.0
    %3810 = vmatpush1.msra.mxu0 0.0
    %3811 = vmatprep.subr.mxu0 0.0
    %3812 = vmatpush1.msra.mxu0 0.0
    %3813 = vmatprep.subr.mxu0 0.0
    %3814 = vmatpush1.msra.mxu0 0.0
    %3815 = vmatprep.subr.mxu0 0.0
    %3816 = vmatpush1.msra.mxu0 0.0
    %3817 = vmatprep.subr.mxu0 0.0
    %3818 = vmatpush1.msra.mxu0 0.0
    %3819 = vmatprep.subr.mxu0 0.0
    %3820 = vmatpush1.msra.mxu0 0.0
    %3821 = vmatprep.subr.mxu0 0.0
    %3822 = vmatpush1.msra.mxu0 0.0
    %3823 = vmatprep.subr.mxu0 0.0
    %3824 = vmatpush1.msra.mxu0 0.0
    %3825 = vmatprep.subr.mxu0 0.0
    %v3826 = vand.u32 %v3619, 4294901760
    %v3827 = vsub.f32 %v3619, %v3826
    %3828 = vmatpush1.msra.mxu0 %v3827
    %3829 = vmatprep.subr.mxu0 0.0
    %v3830 = vand.u32 %v3618, 4294901760
    %v3831 = vsub.f32 %v3618, %v3830
    %3832 = vmatpush1.msra.mxu0 %v3831
    %3833 = vmatprep.subr.mxu0 0.0
    %v3834 = vand.u32 %v3617, 4294901760
    %v3835 = vsub.f32 %v3617, %v3834
    %3836 = vmatpush1.msra.mxu0 %v3835
    %3837 = vmatprep.subr.mxu0 0.0
    %v3838 = vand.u32 %v3616, 4294901760
    %v3839 = vsub.f32 %v3616, %v3838
    %3840 = vmatpush1.msra.mxu0 %v3839
    %3841 = vmatprep.subr.mxu0 0.0
    %3842 = vmatpush2.msra.mxu0 0.0
    %3843 = vmatprep.subr.mxu0 0.0
    %3844 = vmatpush2.msra.mxu0 0.0
    %3845 = vmatprep.subr.mxu0 0.0
    %3846 = vmatpush2.msra.mxu0 0.0
    %3847 = vmatprep.subr.mxu0 0.0
    %3848 = vmatpush2.msra.mxu0 0.0
    %3849 = vmatprep.subr.mxu0 0.0
    %3850 = vmatpush2.msra.mxu0 0.0
    %3851 = vmatprep.subr.mxu0 0.0
    %3852 = vmatpush2.msra.mxu0 0.0
    %3853 = vmatprep.subr.mxu0 0.0
    %3854 = vmatpush2.msra.mxu0 0.0
    %3855 = vmatprep.subr.mxu0 0.0
    %3856 = vmatpush2.msra.mxu0 0.0
    %3857 = vmatprep.subr.mxu0 0.0
    %3858 = vmatpush2.msra.mxu0 0.0
    %3859 = vmatprep.subr.mxu0 0.0
    %3860 = vmatpush2.msra.mxu0 0.0
    %3861 = vmatprep.subr.mxu0 0.0
    %3862 = vmatpush2.msra.mxu0 0.0
    %3863 = vmatprep.subr.mxu0 0.0
    %3864 = vmatpush2.msra.mxu0 0.0
    %3865 = vmatprep.subr.mxu0 0.0
    %3866 = vmatpush2.msra.mxu0 0.0
    %3867 = vmatprep.subr.mxu0 0.0
    %3868 = vmatpush2.msra.mxu0 0.0
    %3869 = vmatprep.subr.mxu0 0.0
    %3870 = vmatpush2.msra.mxu0 0.0
    %3871 = vmatprep.subr.mxu0 0.0
    %3872 = vmatpush2.msra.mxu0 0.0
    %3873 = vmatprep.mubr.f32.mxu0 0.0
    %v3874 = vand.u32 %v3629, 4294901760
    %v3875 = vsub.f32 %v3629, %v3874
    %3876 = vmatmul.mubr.f32.gmra.mxu0 %v3875
    %v3877 = vpop.f32.mrf.mxu0
    %v3878 = vadd.f32 %v3798, %v3877
    %v3879 = vpop.f32.mrf.mxu0
    %3880 = vdwg.mxu0
    %3881 = vmatprep.subr.mxu0 0.0
    %3882 = vmatpush1.msra.mxu0 0.0
    %3883 = vmatprep.subr.mxu0 0.0
    %3884 = vmatpush1.msra.mxu0 0.0
    %3885 = vmatprep.subr.mxu0 0.0
    %3886 = vmatpush1.msra.mxu0 0.0
    %3887 = vmatprep.subr.mxu0 0.0
    %3888 = vmatpush1.msra.mxu0 0.0
    %3889 = vmatprep.subr.mxu0 0.0
    %3890 = vmatpush1.msra.mxu0 0.0
    %3891 = vmatprep.subr.mxu0 0.0
    %3892 = vmatpush1.msra.mxu0 0.0
    %3893 = vmatprep.subr.mxu0 0.0
    %3894 = vmatpush1.msra.mxu0 0.0
    %3895 = vmatprep.subr.mxu0 0.0
    %3896 = vmatpush1.msra.mxu0 0.0
    %3897 = vmatprep.subr.mxu0 0.0
    %3898 = vmatpush1.msra.mxu0 0.0
    %3899 = vmatprep.subr.mxu0 0.0
    %3900 = vmatpush1.msra.mxu0 0.0
    %3901 = vmatprep.subr.mxu0 0.0
    %3902 = vmatpush1.msra.mxu0 0.0
    %3903 = vmatprep.subr.mxu0 0.0
    %3904 = vmatpush1.msra.mxu0 0.0
    %3905 = vmatprep.subr.mxu0 0.0
    %v3906 = vand.u32 %v3619, 4294901760
    %3907 = vmatpush1.msra.mxu0 %v3906
    %3908 = vmatprep.subr.mxu0 0.0
    %v3909 = vand.u32 %v3618, 4294901760
    %3910 = vmatpush1.msra.mxu0 %v3909
    %3911 = vmatprep.subr.mxu0 0.0
    %v3912 = vand.u32 %v3617, 4294901760
    %3913 = vmatpush1.msra.mxu0 %v3912
    %3914 = vmatprep.subr.mxu0 0.0
    %v3915 = vand.u32 %v3616, 4294901760
    %3916 = vmatpush1.msra.mxu0 %v3915
    %3917 = vmatprep.subr.mxu0 0.0
    %3918 = vmatpush2.msra.mxu0 0.0
    %3919 = vmatprep.subr.mxu0 0.0
    %3920 = vmatpush2.msra.mxu0 0.0
    %3921 = vmatprep.subr.mxu0 0.0
    %3922 = vmatpush2.msra.mxu0 0.0
    %3923 = vmatprep.subr.mxu0 0.0
    %3924 = vmatpush2.msra.mxu0 0.0
    %3925 = vmatprep.subr.mxu0 0.0
    %3926 = vmatpush2.msra.mxu0 0.0
    %3927 = vmatprep.subr.mxu0 0.0
    %3928 = vmatpush2.msra.mxu0 0.0
    %3929 = vmatprep.subr.mxu0 0.0
    %3930 = vmatpush2.msra.mxu0 0.0
    %3931 = vmatprep.subr.mxu0 0.0
    %3932 = vmatpush2.msra.mxu0 0.0
    %3933 = vmatprep.subr.mxu0 0.0
    %3934 = vmatpush2.msra.mxu0 0.0
    %3935 = vmatprep.subr.mxu0 0.0
    %3936 = vmatpush2.msra.mxu0 0.0
    %3937 = vmatprep.subr.mxu0 0.0
    %3938 = vmatpush2.msra.mxu0 0.0
    %3939 = vmatprep.subr.mxu0 0.0
    %3940 = vmatpush2.msra.mxu0 0.0
    %3941 = vmatprep.subr.mxu0 0.0
    %3942 = vmatpush2.msra.mxu0 0.0
    %3943 = vmatprep.subr.mxu0 0.0
    %3944 = vmatpush2.msra.mxu0 0.0
    %3945 = vmatprep.subr.mxu0 0.0
    %3946 = vmatpush2.msra.mxu0 0.0
    %3947 = vmatprep.subr.mxu0 0.0
    %3948 = vmatpush2.msra.mxu0 0.0
    %3949 = vmatprep.mubr.f32.mxu0 0.0
    %v3950 = vand.u32 %v3629, 4294901760
    %v3951 = vsub.f32 %v3629, %v3950
    %v3952 = vand.u32 %v3951, 4294901760
    %3953 = vmatmul.mubr.f32.gmra.mxu0 %v3952
    %v3954 = vpop.f32.mrf.mxu0
    %v3955 = vadd.f32 %v3878, %v3954
    %v3956 = vpop.f32.mrf.mxu0
    %3957 = vdwg.mxu0
    %3958 = vmatprep.subr.mxu0 0.0
    %3959 = vmatpush1.msra.mxu0 0.0
    %3960 = vmatprep.subr.mxu0 0.0
    %3961 = vmatpush1.msra.mxu0 0.0
    %3962 = vmatprep.subr.mxu0 0.0
    %3963 = vmatpush1.msra.mxu0 0.0
    %3964 = vmatprep.subr.mxu0 0.0
    %3965 = vmatpush1.msra.mxu0 0.0
    %3966 = vmatprep.subr.mxu0 0.0
    %3967 = vmatpush1.msra.mxu0 0.0
    %3968 = vmatprep.subr.mxu0 0.0
    %3969 = vmatpush1.msra.mxu0 0.0
    %3970 = vmatprep.subr.mxu0 0.0
    %3971 = vmatpush1.msra.mxu0 0.0
    %3972 = vmatprep.subr.mxu0 0.0
    %3973 = vmatpush1.msra.mxu0 0.0
    %3974 = vmatprep.subr.mxu0 0.0
    %3975 = vmatpush1.msra.mxu0 0.0
    %3976 = vmatprep.subr.mxu0 0.0
    %3977 = vmatpush1.msra.mxu0 0.0
    %3978 = vmatprep.subr.mxu0 0.0
    %3979 = vmatpush1.msra.mxu0 0.0
    %3980 = vmatprep.subr.mxu0 0.0
    %3981 = vmatpush1.msra.mxu0 0.0
    %3982 = vmatprep.subr.mxu0 0.0
    %v3983 = vand.u32 %v3619, 4294901760
    %v3984 = vsub.f32 %v3619, %v3983
    %v3985 = vand.u32 %v3984, 4294901760
    %3986 = vmatpush1.msra.mxu0 %v3985
    %3987 = vmatprep.subr.mxu0 0.0
    %v3988 = vand.u32 %v3618, 4294901760
    %v3989 = vsub.f32 %v3618, %v3988
    %v3990 = vand.u32 %v3989, 4294901760
    %3991 = vmatpush1.msra.mxu0 %v3990
    %3992 = vmatprep.subr.mxu0 0.0
    %v3993 = vand.u32 %v3617, 4294901760
    %v3994 = vsub.f32 %v3617, %v3993
    %v3995 = vand.u32 %v3994, 4294901760
    %3996 = vmatpush1.msra.mxu0 %v3995
    %3997 = vmatprep.subr.mxu0 0.0
    %v3998 = vand.u32 %v3616, 4294901760
    %v3999 = vsub.f32 %v3616, %v3998
    %v4000 = vand.u32 %v3999, 4294901760
    %4001 = vmatpush1.msra.mxu0 %v4000
    %4002 = vmatprep.subr.mxu0 0.0
    %4003 = vmatpush2.msra.mxu0 0.0
    %4004 = vmatprep.subr.mxu0 0.0
    %4005 = vmatpush2.msra.mxu0 0.0
    %4006 = vmatprep.subr.mxu0 0.0
    %4007 = vmatpush2.msra.mxu0 0.0
    %4008 = vmatprep.subr.mxu0 0.0
    %4009 = vmatpush2.msra.mxu0 0.0
    %4010 = vmatprep.subr.mxu0 0.0
    %4011 = vmatpush2.msra.mxu0 0.0
    %4012 = vmatprep.subr.mxu0 0.0
    %4013 = vmatpush2.msra.mxu0 0.0
    %4014 = vmatprep.subr.mxu0 0.0
    %4015 = vmatpush2.msra.mxu0 0.0
    %4016 = vmatprep.subr.mxu0 0.0
    %4017 = vmatpush2.msra.mxu0 0.0
    %4018 = vmatprep.subr.mxu0 0.0
    %4019 = vmatpush2.msra.mxu0 0.0
    %4020 = vmatprep.subr.mxu0 0.0
    %4021 = vmatpush2.msra.mxu0 0.0
    %4022 = vmatprep.subr.mxu0 0.0
    %4023 = vmatpush2.msra.mxu0 0.0
    %4024 = vmatprep.subr.mxu0 0.0
    %4025 = vmatpush2.msra.mxu0 0.0
    %4026 = vmatprep.subr.mxu0 0.0
    %4027 = vmatpush2.msra.mxu0 0.0
    %4028 = vmatprep.subr.mxu0 0.0
    %4029 = vmatpush2.msra.mxu0 0.0
    %4030 = vmatprep.subr.mxu0 0.0
    %4031 = vmatpush2.msra.mxu0 0.0
    %4032 = vmatprep.subr.mxu0 0.0
    %4033 = vmatpush2.msra.mxu0 0.0
    %4034 = vmatprep.mubr.f32.mxu0 0.0
    %v4035 = vand.u32 %v3629, 4294901760
    %4036 = vmatmul.mubr.f32.gmra.mxu0 %v4035
    %v4037 = vpop.f32.mrf.mxu0
    %v4038 = vadd.f32 %v3955, %v4037
    %v4039 = vpop.f32.mrf.mxu0
    %4040 = vdwg.mxu0
    %4041 = vmatprep.subr.mxu0 0.0
    %4042 = vmatpush1.msra.mxu0 0.0
    %4043 = vmatprep.subr.mxu0 0.0
    %4044 = vmatpush1.msra.mxu0 0.0
    %4045 = vmatprep.subr.mxu0 0.0
    %4046 = vmatpush1.msra.mxu0 0.0
    %4047 = vmatprep.subr.mxu0 0.0
    %4048 = vmatpush1.msra.mxu0 0.0
    %4049 = vmatprep.subr.mxu0 0.0
    %4050 = vmatpush1.msra.mxu0 0.0
    %4051 = vmatprep.subr.mxu0 0.0
    %4052 = vmatpush1.msra.mxu0 0.0
    %4053 = vmatprep.subr.mxu0 0.0
    %4054 = vmatpush1.msra.mxu0 0.0
    %4055 = vmatprep.subr.mxu0 0.0
    %4056 = vmatpush1.msra.mxu0 0.0
    %4057 = vmatprep.subr.mxu0 0.0
    %4058 = vmatpush1.msra.mxu0 0.0
    %4059 = vmatprep.subr.mxu0 0.0
    %4060 = vmatpush1.msra.mxu0 0.0
    %4061 = vmatprep.subr.mxu0 0.0
    %4062 = vmatpush1.msra.mxu0 0.0
    %4063 = vmatprep.subr.mxu0 0.0
    %4064 = vmatpush1.msra.mxu0 0.0
    %4065 = vmatprep.subr.mxu0 0.0
    %v4066 = vand.u32 %v3619, 4294901760
    %4067 = vmatpush1.msra.mxu0 %v4066
    %4068 = vmatprep.subr.mxu0 0.0
    %v4069 = vand.u32 %v3618, 4294901760
    %4070 = vmatpush1.msra.mxu0 %v4069
    %4071 = vmatprep.subr.mxu0 0.0
    %v4072 = vand.u32 %v3617, 4294901760
    %4073 = vmatpush1.msra.mxu0 %v4072
    %4074 = vmatprep.subr.mxu0 0.0
    %v4075 = vand.u32 %v3616, 4294901760
    %4076 = vmatpush1.msra.mxu0 %v4075
    %4077 = vmatprep.subr.mxu0 0.0
    %4078 = vmatpush2.msra.mxu0 0.0
    %4079 = vmatprep.subr.mxu0 0.0
    %4080 = vmatpush2.msra.mxu0 0.0
    %4081 = vmatprep.subr.mxu0 0.0
    %4082 = vmatpush2.msra.mxu0 0.0
    %4083 = vmatprep.subr.mxu0 0.0
    %4084 = vmatpush2.msra.mxu0 0.0
    %4085 = vmatprep.subr.mxu0 0.0
    %4086 = vmatpush2.msra.mxu0 0.0
    %4087 = vmatprep.subr.mxu0 0.0
    %4088 = vmatpush2.msra.mxu0 0.0
    %4089 = vmatprep.subr.mxu0 0.0
    %4090 = vmatpush2.msra.mxu0 0.0
    %4091 = vmatprep.subr.mxu0 0.0
    %4092 = vmatpush2.msra.mxu0 0.0
    %4093 = vmatprep.subr.mxu0 0.0
    %4094 = vmatpush2.msra.mxu0 0.0
    %4095 = vmatprep.subr.mxu0 0.0
    %4096 = vmatpush2.msra.mxu0 0.0
    %4097 = vmatprep.subr.mxu0 0.0
    %4098 = vmatpush2.msra.mxu0 0.0
    %4099 = vmatprep.subr.mxu0 0.0
    %4100 = vmatpush2.msra.mxu0 0.0
    %4101 = vmatprep.subr.mxu0 0.0
    %4102 = vmatpush2.msra.mxu0 0.0
    %4103 = vmatprep.subr.mxu0 0.0
    %4104 = vmatpush2.msra.mxu0 0.0
    %4105 = vmatprep.subr.mxu0 0.0
    %4106 = vmatpush2.msra.mxu0 0.0
    %4107 = vmatprep.subr.mxu0 0.0
    %4108 = vmatpush2.msra.mxu0 0.0
    %4109 = vmatprep.mubr.f32.mxu0 0.0
    %v4110 = vand.u32 %v3629, 4294901760
    %4111 = vmatmul.mubr.f32.gmra.mxu0 %v4110
    %v4112 = vpop.f32.mrf.mxu0
    %v4113 = vadd.f32 %v4038, %v4112
    %v4114 = vpop.f32.mrf.mxu0
    %4115 = vdwg.mxu0
    %vm4116 = vcmp.ge.f32.partialorder %v4113, 0.0
    %v4117 = vmul.f32 %v4113, 0.01
    %v4118 = vsel %vm4116, %v4113, %v4117
    %4119 = vst.msk [vmem:[#allocation10] sm:$0x3] %vm74, %v4118
    // Predicated region
    $region38: #{tpu_custom_call.1} parent=1 // pred_check
      _
    $region39: #{tpu_custom_call.1} parent=1 // pred_check_branch
      %4121 = sbr.rel (0) target = $region41
    $region40: #{tpu_custom_call.1} parent=1 // pred_region
      %s4123 = ssub.s32 32, 32
      %4124 = vsyncadd [#allocation4], %s4123
      %s4126 = sshll.u32 [#allocation10], 4
      %s4127 = int_to_ptr.vmem [resolvable:$true] %s4126
      %4129 = dma.vmem_to_hbm [thread:$0]  %s4127, 32, %s5, [#allocation4]
    $region41: #{tpu_custom_call.1} parent=1 // pred_fallthru
      _
    // Predicated region
    $region42: #{tpu_custom_call.1} parent=1 // pred_check
      _
    $region43: #{tpu_custom_call.1} parent=1 // pred_check_branch
      %4131 = sbr.rel (0) target = $region45
    $region44: #{tpu_custom_call.1} parent=1 // pred_region
      %4132 = dma.done [#allocation4], 32
    $region45: #{tpu_custom_call.1} parent=1 // pred_fallthru
      _
    %4133 = vsyncpa [#allocation3], 1
    %4134 = vsyncpa [#allocation6], 1
    %4135 = vsyncpa [#allocation9], 1
    %4136 = vsyncpa [#allocation4], 1

</llo_original>
